<compile_context>
chip_gen: v5e
topology: v5e:2x2
jax: 0.10.0
libtpu: 0.0.40
codegen_flags: <defaults>
</compile_context>

<pallas_src>
import jax
import jax.numpy as jnp
import numpy as np
from jax.experimental import pallas as pl
from jax.experimental.pallas import tpu as pltpu

# ---------------------------------------------------------------------------
# Problem sizes (input_dim == hidden_dim so the encoder residual add applies).
# ---------------------------------------------------------------------------
D = 64                 # input_dim
H = 64                 # hidden_dim
C = 16                 # compressed_dim
H8 = H // 8
H2 = H // 2
LN_EPS = 1e-5

TB = 128               # batch tile (rows per grid step)
SLAB_W = 128           # lane width of the parameter slabs / output slab
OUT_W = 128            # output slab width: recon(64) | mu(16) | logvar(16) | pad(32)

# ---------------------------------------------------------------------------
# Parameter slab layouts (shared between host packer and kernel).
# Every weight's row count is a multiple of 8, so all static slices are
# sublane-aligned.
# ---------------------------------------------------------------------------
_WEIGHT_SHAPES = [
    ("enc_r1_w1", D, H),
    ("enc_r1_w2", H, H),
    ("enc_att_w1", H, H8),
    ("enc_att_w2", H8, H),
    ("enc_fin_w", H, H2),
    ("muv_w", H2, 2 * C),      # fc_mu || fc_logvar fused
    ("dec_first_w", C, H2),
    ("dec_r1_w1", H2, H),
    ("dec_r1_w2", H, H),
    ("dec_att_w1", H, H8),
    ("dec_att_w2", H8, H),
    ("dec_fin_w", H, D),
]
WEIGHT_LAYOUT = {}
_off = 0
for _name, _rows, _cols in _WEIGHT_SHAPES:
    WEIGHT_LAYOUT[_name] = (_off, _rows, _cols)
    _off += _rows
W_ROWS = _off          # 544

_VEC_SHAPES = [
    ("enc_r1_b1", H), ("enc_r1_g1", H), ("enc_r1_be1", H),
    ("enc_r1_b2", H), ("enc_r1_g2", H), ("enc_r1_be2", H),
    ("enc_att_b1", H8), ("enc_att_b2", H),
    ("enc_fin_b", H2), ("enc_fin_g", H2), ("enc_fin_be", H2),
    ("muv_b", 2 * C),
    ("dec_first_b", H2), ("dec_first_g", H2), ("dec_first_be", H2),
    ("dec_r1_b1", H), ("dec_r1_g1", H), ("dec_r1_be1", H),
    ("dec_r1_b2", H), ("dec_r1_g2", H), ("dec_r1_be2", H),
    ("dec_att_b1", H8), ("dec_att_b2", H),
    ("dec_fin_b", D),
]
VEC_LAYOUT = {name: (i, width) for i, (name, width) in enumerate(_VEC_SHAPES)}
V_ROWS = len(_VEC_SHAPES)   # 24 (multiple of 8)


# ---------------------------------------------------------------------------
# In-kernel helpers
# ---------------------------------------------------------------------------
def _linear(x, w, b):
    return jnp.dot(x, w, preferred_element_type=jnp.float32) + b


def _layernorm(x, gamma, beta):
    # One-pass: sum(x) and sum(x*x) are independent cross-lane reductions.
    n = x.shape[-1]
    inv_n = 1.0 / n
    s = jnp.sum(x, axis=-1, keepdims=True)
    s2 = jnp.sum(x * x, axis=-1, keepdims=True)
    mean = s * inv_n
    var = s2 * inv_n - mean * mean
    return (x - mean) * jax.lax.rsqrt(var + LN_EPS) * gamma + beta


def _leaky_relu(x):
    return jnp.where(x >= 0, x, 0.2 * x)


def _sigmoid(x):
    # exp and approximate reciprocal both run on the EUP slot.
    return pl.reciprocal(1.0 + jnp.exp(-x), approx=True)


# ---------------------------------------------------------------------------
# Kernel: one batch tile per grid step; both parameter slabs stay resident.
# ---------------------------------------------------------------------------
def vae_kernel(x_ref, eps_ref, w_ref, v_ref, out_ref):
    def W(name):
        off, rows, cols = WEIGHT_LAYOUT[name]
        return w_ref[off:off + rows, 0:cols]

    def V(name):
        row, width = VEC_LAYOUT[name]
        return v_ref[row:row + 1, 0:width]

    x = x_ref[...]
    eps = eps_ref[...]

    # ---------------- encode ----------------
    # encoder_res1: Linear -> LN -> LeakyReLU -> Linear -> LN
    h = _layernorm(_linear(x, W("enc_r1_w1"), V("enc_r1_b1")),
                   V("enc_r1_g1"), V("enc_r1_be1"))
    h = _leaky_relu(h)
    res1 = _layernorm(_linear(h, W("enc_r1_w2"), V("enc_r1_b2")),
                      V("enc_r1_g2"), V("enc_r1_be2"))
    xe = x + res1            # input_dim == hidden_dim -> plain residual add

    # encoder_attention: Linear -> LeakyReLU -> Linear -> Sigmoid
    att = _leaky_relu(_linear(xe, W("enc_att_w1"), V("enc_att_b1")))
    att = _sigmoid(_linear(att, W("enc_att_w2"), V("enc_att_b2")))
    xe = xe * att

    # encoder_final: Linear -> LN -> LeakyReLU
    xe = _leaky_relu(_layernorm(_linear(xe, W("enc_fin_w"), V("enc_fin_b")),
                                V("enc_fin_g"), V("enc_fin_be")))

    # fused fc_mu || fc_logvar
    muv = _linear(xe, W("muv_w"), V("muv_b"))
    mu = muv[:, 0:C]
    logvar = muv[:, C:2 * C]

    # ---------------- reparameterize ----------------
    z = mu + eps * jnp.exp(0.5 * logvar)

    # ---------------- decode ----------------
    xd = _leaky_relu(_layernorm(_linear(z, W("dec_first_w"), V("dec_first_b")),
                                V("dec_first_g"), V("dec_first_be")))

    r = _layernorm(_linear(xd, W("dec_r1_w1"), V("dec_r1_b1")),
                   V("dec_r1_g1"), V("dec_r1_be1"))
    r = _leaky_relu(r)
    r = _layernorm(_linear(r, W("dec_r1_w2"), V("dec_r1_b2")),
                   V("dec_r1_g2"), V("dec_r1_be2"))
    # PyTorch decode() overwrites the expanded skip with res1_out, so no add.
    xd = r

    att_d = _leaky_relu(_linear(xd, W("dec_att_w1"), V("dec_att_b1")))
    att_d = _sigmoid(_linear(att_d, W("dec_att_w2"), V("dec_att_b2")))
    xd = xd * att_d

    recon = _linear(xd, W("dec_fin_w"), V("dec_fin_b"))

    # single lane-dense (TB, 128) output: recon | mu | logvar | zero-pad
    pad = jnp.zeros((recon.shape[0], OUT_W - D - 2 * C), jnp.float32)
    out_ref[...] = jnp.concatenate([recon, mu, logvar, pad], axis=-1)


# ---------------------------------------------------------------------------
# Parameter construction & packing
# ---------------------------------------------------------------------------
def _xavier_normal(key, shape, gain=0.7):
    fan_in, fan_out = shape
    std = gain * np.sqrt(2.0 / (fan_in + fan_out))
    return (std * jax.random.normal(key, shape, dtype=jnp.float32)).astype(jnp.float32)


def make_params(key):
    keys = iter(jax.random.split(key, 16))
    p = {}

    def lin(wn, bn, i, o):
        p[wn] = _xavier_normal(next(keys), (i, o))
        p[bn] = jnp.zeros((o,), jnp.float32)

    def ln(gn, bn, o):
        p[gn] = jnp.ones((o,), jnp.float32)
        p[bn] = jnp.zeros((o,), jnp.float32)

    lin("enc_r1_w1", "enc_r1_b1", D, H); ln("enc_r1_g1", "enc_r1_be1", H)
    lin("enc_r1_w2", "enc_r1_b2", H, H); ln("enc_r1_g2", "enc_r1_be2", H)
    lin("enc_att_w1", "enc_att_b1", H, H8)
    lin("enc_att_w2", "enc_att_b2", H8, H)
    lin("enc_fin_w", "enc_fin_b", H, H2); ln("enc_fin_g", "enc_fin_be", H2)
    # fused heads: fc_mu || fc_logvar (initialized independently, then packed)
    mu_w = _xavier_normal(next(keys), (H2, C))
    lv_w = _xavier_normal(next(keys), (H2, C))
    p["muv_w"] = jnp.concatenate([mu_w, lv_w], axis=1)
    p["muv_b"] = jnp.zeros((2 * C,), jnp.float32)
    lin("dec_first_w", "dec_first_b", C, H2); ln("dec_first_g", "dec_first_be", H2)
    lin("dec_r1_w1", "dec_r1_b1", H2, H); ln("dec_r1_g1", "dec_r1_be1", H)
    lin("dec_r1_w2", "dec_r1_b2", H, H); ln("dec_r1_g2", "dec_r1_be2", H)
    lin("dec_att_w1", "dec_att_b1", H, H8)
    lin("dec_att_w2", "dec_att_b2", H8, H)
    lin("dec_fin_w", "dec_fin_b", H, D)
    return p


def pack_params(p):
    w_slab = np.zeros((W_ROWS, SLAB_W), np.float32)
    for name, (off, rows, cols) in WEIGHT_LAYOUT.items():
        w_slab[off:off + rows, :cols] = np.asarray(p[name])
    v_slab = np.zeros((V_ROWS, SLAB_W), np.float32)
    for name, (row, width) in VEC_LAYOUT.items():
        v_slab[row, :width] = np.asarray(p[name])
    return jnp.asarray(w_slab), jnp.asarray(v_slab)


# ---------------------------------------------------------------------------
# Wrapper
# ---------------------------------------------------------------------------
@jax.jit
def vae_forward(x, eps, w_slab, v_slab):
    B = x.shape[0]
    Bp = ((B + TB - 1) // TB) * TB
    if Bp != B:
        x = jnp.pad(x, ((0, Bp - B), (0, 0)))
        eps = jnp.pad(eps, ((0, Bp - B), (0, 0)))

    out = pl.pallas_call(
        vae_kernel,
        out_shape=jax.ShapeDtypeStruct((Bp, OUT_W), jnp.float32),
        grid_spec=pltpu.PrefetchScalarGridSpec(
            num_scalar_prefetch=0,
            grid=(Bp // TB,),
            in_specs=[
                pl.BlockSpec((TB, D), lambda i: (i, 0)),          # x tile
                pl.BlockSpec((TB, C), lambda i: (i, 0)),          # eps tile
                pl.BlockSpec((W_ROWS, SLAB_W), lambda i: (0, 0)),  # weights (resident)
                pl.BlockSpec((V_ROWS, SLAB_W), lambda i: (0, 0)),  # vectors (resident)
            ],
            out_specs=pl.BlockSpec((TB, OUT_W), lambda i: (i, 0)),
        ),
        compiler_params=pltpu.CompilerParams(
            dimension_semantics=("parallel",)),
    )(x, eps, w_slab, v_slab)

    recon = out[:B, 0:D]
    mu = out[:B, D:D + C]
    logvar = out[:B, D + C:D + 2 * C]
    return recon, mu, logvar


# ---------------------------------------------------------------------------
# Pure-JAX reference (same math, outside Pallas)
# ---------------------------------------------------------------------------
def vae_reference(x, eps, p):
    lin = lambda a, w, b: a @ w + b

    def ln(a, g, bb):
        m = a.mean(-1, keepdims=True)
        v = ((a - m) ** 2).mean(-1, keepdims=True)
        return (a - m) * jax.lax.rsqrt(v + LN_EPS) * g + bb

    lrelu = lambda a: jnp.where(a >= 0, a, 0.2 * a)
    sig = jax.nn.sigmoid

    h = lrelu(ln(lin(x, p["enc_r1_w1"], p["enc_r1_b1"]), p["enc_r1_g1"], p["enc_r1_be1"]))
    res1 = ln(lin(h, p["enc_r1_w2"], p["enc_r1_b2"]), p["enc_r1_g2"], p["enc_r1_be2"])
    xe = x + res1
    att = sig(lin(lrelu(lin(xe, p["enc_att_w1"], p["enc_att_b1"])),
                  p["enc_att_w2"], p["enc_att_b2"]))
    xe = xe * att
    xe = lrelu(ln(lin(xe, p["enc_fin_w"], p["enc_fin_b"]), p["enc_fin_g"], p["enc_fin_be"]))
    muv = lin(xe, p["muv_w"], p["muv_b"])
    mu, logvar = muv[:, :C], muv[:, C:]
    z = mu + eps * jnp.exp(0.5 * logvar)

    xd = lrelu(ln(lin(z, p["dec_first_w"], p["dec_first_b"]),
                  p["dec_first_g"], p["dec_first_be"]))
    r = lrelu(ln(lin(xd, p["dec_r1_w1"], p["dec_r1_b1"]), p["dec_r1_g1"], p["dec_r1_be1"]))
    r = ln(lin(r, p["dec_r1_w2"], p["dec_r1_b2"]), p["dec_r1_g2"], p["dec_r1_be2"])
    xd = r
    att_d = sig(lin(lrelu(lin(xd, p["dec_att_w1"], p["dec_att_b1"])),
                    p["dec_att_w2"], p["dec_att_b2"]))
    xd = xd * att_d
    recon = lin(xd, p["dec_fin_w"], p["dec_fin_b"])
    return recon, mu, logvar


if __name__ == "__main__":
    key = jax.random.PRNGKey(0)
    k_x, k_eps, k_params = jax.random.split(key, 3)

    BATCH = 256  # 2 grid steps of TB=128 rows; exercises the batch pipeline
    x = jax.random.normal(k_x, (BATCH, D), dtype=jnp.float32)
    # eps supplied explicitly so the reparameterization trick is deterministic
    eps = jax.random.normal(k_eps, (BATCH, C), dtype=jnp.float32)

    params = make_params(k_params)
    w_slab, v_slab = pack_params(params)

    recon, mu, logvar = vae_forward(x, eps, w_slab, v_slab)
    jax.block_until_ready((recon, mu, logvar))

    # sanity check against a pure-JAX reference of the same math
    # (tolerance covers the approximate EUP reciprocal used for sigmoid)
    r_ref, mu_ref, lv_ref = vae_reference(x, eps, params)
    np.testing.assert_allclose(np.asarray(recon), np.asarray(r_ref), rtol=5e-3, atol=5e-3)
    np.testing.assert_allclose(np.asarray(mu), np.asarray(mu_ref), rtol=5e-3, atol=5e-3)
    np.testing.assert_allclose(np.asarray(logvar), np.asarray(lv_ref), rtol=5e-3, atol=5e-3)

    print("KERNEL_OK")
</pallas_src>

<mosaic_0001>
module attributes {stable_mosaic.version = 11 : i64} {
  func.func @vae_kernel(%arg0: i32, %arg1: memref<128x64xf32, #tpu.memory_space<vmem>>, %arg2: memref<128x16xf32, #tpu.memory_space<vmem>>, %arg3: memref<544x128xf32, #tpu.memory_space<vmem>>, %arg4: memref<24x128xf32, #tpu.memory_space<vmem>>, %arg5: memref<128x128xf32, #tpu.memory_space<vmem>>) attributes {dimension_semantics = [#tpu.dimension_semantics<parallel>], iteration_bounds = array<i64: 2>, scalar_prefetch = 0 : i64, scratch_operands = 0 : i64, tpu.core_type = #tpu.core_type<tc>, window_params = [{transform_indices = @transform_0, window_bounds = array<i64: 128, 64>}, {transform_indices = @transform_1, window_bounds = array<i64: 128, 16>}, {pipeline_mode = #tpu.pipeline_mode<synchronous>, transform_indices = @transform_2, window_bounds = array<i64: 544, 128>}, {pipeline_mode = #tpu.pipeline_mode<synchronous>, transform_indices = @transform_3, window_bounds = array<i64: 24, 128>}, {transform_indices = @transform_4, window_bounds = array<i64: 128, 128>}]} {
    %c0 = arith.constant 0 : index
    %c0_0 = arith.constant 0 : index
    %0 = vector.load %arg1[%c0, %c0_0] : memref<128x64xf32, #tpu.memory_space<vmem>>, vector<128x64xf32>
    %c0_1 = arith.constant 0 : index
    %c0_2 = arith.constant 0 : index
    %1 = vector.load %arg2[%c0_1, %c0_2] : memref<128x16xf32, #tpu.memory_space<vmem>>, vector<128x16xf32>
    %c0_3 = arith.constant 0 : index
    %c0_4 = arith.constant 0 : index
    %2 = vector.load %arg3[%c0_3, %c0_4] : memref<544x128xf32, #tpu.memory_space<vmem>>, vector<64x64xf32>
    %c0_5 = arith.constant 0 : index
    %c0_6 = arith.constant 0 : index
    %3 = vector.load %arg4[%c0_5, %c0_6] : memref<24x128xf32, #tpu.memory_space<vmem>>, vector<1x64xf32>
    %cst = arith.constant dense<0.000000e+00> : vector<128x64xf32>
    %4 = tpu.matmul %0, %2, %cst {dimension_numbers = #tpu.dot_dimension_numbers<[1], [0], [0], [1], [0, 0, 1, 1], [], []>} : vector<128x64xf32>, vector<64x64xf32>, vector<128x64xf32> -> vector<128x64xf32>
    %5 = vector.broadcast %3 : vector<1x64xf32> to vector<128x64xf32>
    %6 = arith.addf %4, %5 : vector<128x64xf32>
    %c1 = arith.constant 1 : index
    %c0_7 = arith.constant 0 : index
    %7 = vector.load %arg4[%c1, %c0_7] : memref<24x128xf32, #tpu.memory_space<vmem>>, vector<1x64xf32>
    %c2 = arith.constant 2 : index
    %c0_8 = arith.constant 0 : index
    %8 = vector.load %arg4[%c2, %c0_8] : memref<24x128xf32, #tpu.memory_space<vmem>>, vector<1x64xf32>
    %cst_9 = arith.constant dense<0.000000e+00> : vector<128xf32>
    %9 = vector.multi_reduction <add>, %6, %cst_9 [1] : vector<128x64xf32> to vector<128xf32>
    %10 = vector.shape_cast %9 : vector<128xf32> to vector<128x1xf32>
    %11 = arith.mulf %6, %6 : vector<128x64xf32>
    %cst_10 = arith.constant dense<0.000000e+00> : vector<128xf32>
    %12 = vector.multi_reduction <add>, %11, %cst_10 [1] : vector<128x64xf32> to vector<128xf32>
    %13 = vector.shape_cast %12 : vector<128xf32> to vector<128x1xf32>
    %cst_11 = arith.constant 1.562500e-02 : f32
    %14 = vector.broadcast %cst_11 : f32 to vector<128x1xf32>
    %15 = arith.mulf %10, %14 : vector<128x1xf32>
    %cst_12 = arith.constant 1.562500e-02 : f32
    %16 = vector.broadcast %cst_12 : f32 to vector<128x1xf32>
    %17 = arith.mulf %13, %16 : vector<128x1xf32>
    %18 = arith.mulf %15, %15 : vector<128x1xf32>
    %19 = arith.subf %17, %18 : vector<128x1xf32>
    %20 = vector.broadcast %15 : vector<128x1xf32> to vector<128x64xf32>
    %21 = arith.subf %6, %20 : vector<128x64xf32>
    %cst_13 = arith.constant 9.99999974E-6 : f32
    %22 = vector.broadcast %cst_13 : f32 to vector<128x1xf32>
    %23 = arith.addf %19, %22 : vector<128x1xf32>
    %24 = math.rsqrt %23 : vector<128x1xf32>
    %25 = vector.broadcast %24 : vector<128x1xf32> to vector<128x64xf32>
    %26 = arith.mulf %21, %25 : vector<128x64xf32>
    %27 = vector.broadcast %7 : vector<1x64xf32> to vector<128x64xf32>
    %28 = arith.mulf %26, %27 : vector<128x64xf32>
    %29 = vector.broadcast %8 : vector<1x64xf32> to vector<128x64xf32>
    %30 = arith.addf %28, %29 : vector<128x64xf32>
    %cst_14 = arith.constant 0.000000e+00 : f32
    %31 = vector.broadcast %cst_14 : f32 to vector<128x64xf32>
    %32 = arith.cmpf oge, %30, %31 : vector<128x64xf32>
    %cst_15 = arith.constant 2.000000e-01 : f32
    %33 = vector.broadcast %cst_15 : f32 to vector<128x64xf32>
    %34 = arith.mulf %33, %30 : vector<128x64xf32>
    %35 = arith.select %32, %30, %34 : vector<128x64xi1>, vector<128x64xf32>
    %c64 = arith.constant 64 : index
    %c0_16 = arith.constant 0 : index
    %36 = vector.load %arg3[%c64, %c0_16] : memref<544x128xf32, #tpu.memory_space<vmem>>, vector<64x64xf32>
    %c3 = arith.constant 3 : index
    %c0_17 = arith.constant 0 : index
    %37 = vector.load %arg4[%c3, %c0_17] : memref<24x128xf32, #tpu.memory_space<vmem>>, vector<1x64xf32>
    %cst_18 = arith.constant dense<0.000000e+00> : vector<128x64xf32>
    %38 = tpu.matmul %35, %36, %cst_18 {dimension_numbers = #tpu.dot_dimension_numbers<[1], [0], [0], [1], [0, 0, 1, 1], [], []>} : vector<128x64xf32>, vector<64x64xf32>, vector<128x64xf32> -> vector<128x64xf32>
    %39 = vector.broadcast %37 : vector<1x64xf32> to vector<128x64xf32>
    %40 = arith.addf %38, %39 : vector<128x64xf32>
    %c4 = arith.constant 4 : index
    %c0_19 = arith.constant 0 : index
    %41 = vector.load %arg4[%c4, %c0_19] : memref<24x128xf32, #tpu.memory_space<vmem>>, vector<1x64xf32>
    %c5 = arith.constant 5 : index
    %c0_20 = arith.constant 0 : index
    %42 = vector.load %arg4[%c5, %c0_20] : memref<24x128xf32, #tpu.memory_space<vmem>>, vector<1x64xf32>
    %cst_21 = arith.constant dense<0.000000e+00> : vector<128xf32>
    %43 = vector.multi_reduction <add>, %40, %cst_21 [1] : vector<128x64xf32> to vector<128xf32>
    %44 = vector.shape_cast %43 : vector<128xf32> to vector<128x1xf32>
    %45 = arith.mulf %40, %40 : vector<128x64xf32>
    %cst_22 = arith.constant dense<0.000000e+00> : vector<128xf32>
    %46 = vector.multi_reduction <add>, %45, %cst_22 [1] : vector<128x64xf32> to vector<128xf32>
    %47 = vector.shape_cast %46 : vector<128xf32> to vector<128x1xf32>
    %cst_23 = arith.constant 1.562500e-02 : f32
    %48 = vector.broadcast %cst_23 : f32 to vector<128x1xf32>
    %49 = arith.mulf %44, %48 : vector<128x1xf32>
    %cst_24 = arith.constant 1.562500e-02 : f32
    %50 = vector.broadcast %cst_24 : f32 to vector<128x1xf32>
    %51 = arith.mulf %47, %50 : vector<128x1xf32>
    %52 = arith.mulf %49, %49 : vector<128x1xf32>
    %53 = arith.subf %51, %52 : vector<128x1xf32>
    %54 = vector.broadcast %49 : vector<128x1xf32> to vector<128x64xf32>
    %55 = arith.subf %40, %54 : vector<128x64xf32>
    %cst_25 = arith.constant 9.99999974E-6 : f32
    %56 = vector.broadcast %cst_25 : f32 to vector<128x1xf32>
    %57 = arith.addf %53, %56 : vector<128x1xf32>
    %58 = math.rsqrt %57 : vector<128x1xf32>
    %59 = vector.broadcast %58 : vector<128x1xf32> to vector<128x64xf32>
    %60 = arith.mulf %55, %59 : vector<128x64xf32>
    %61 = vector.broadcast %41 : vector<1x64xf32> to vector<128x64xf32>
    %62 = arith.mulf %60, %61 : vector<128x64xf32>
    %63 = vector.broadcast %42 : vector<1x64xf32> to vector<128x64xf32>
    %64 = arith.addf %62, %63 : vector<128x64xf32>
    %65 = arith.addf %0, %64 : vector<128x64xf32>
    %c128 = arith.constant 128 : index
    %c0_26 = arith.constant 0 : index
    %66 = vector.load %arg3[%c128, %c0_26] : memref<544x128xf32, #tpu.memory_space<vmem>>, vector<64x8xf32>
    %c6 = arith.constant 6 : index
    %c0_27 = arith.constant 0 : index
    %67 = vector.load %arg4[%c6, %c0_27] : memref<24x128xf32, #tpu.memory_space<vmem>>, vector<1x8xf32>
    %cst_28 = arith.constant dense<0.000000e+00> : vector<128x8xf32>
    %68 = tpu.matmul %65, %66, %cst_28 {dimension_numbers = #tpu.dot_dimension_numbers<[1], [0], [0], [1], [0, 0, 1, 1], [], []>} : vector<128x64xf32>, vector<64x8xf32>, vector<128x8xf32> -> vector<128x8xf32>
    %69 = vector.broadcast %67 : vector<1x8xf32> to vector<128x8xf32>
    %70 = arith.addf %68, %69 : vector<128x8xf32>
    %cst_29 = arith.constant 0.000000e+00 : f32
    %71 = vector.broadcast %cst_29 : f32 to vector<128x8xf32>
    %72 = arith.cmpf oge, %70, %71 : vector<128x8xf32>
    %cst_30 = arith.constant 2.000000e-01 : f32
    %73 = vector.broadcast %cst_30 : f32 to vector<128x8xf32>
    %74 = arith.mulf %73, %70 : vector<128x8xf32>
    %75 = arith.select %72, %70, %74 : vector<128x8xi1>, vector<128x8xf32>
    %c192 = arith.constant 192 : index
    %c0_31 = arith.constant 0 : index
    %76 = vector.load %arg3[%c192, %c0_31] : memref<544x128xf32, #tpu.memory_space<vmem>>, vector<8x64xf32>
    %c7 = arith.constant 7 : index
    %c0_32 = arith.constant 0 : index
    %77 = vector.load %arg4[%c7, %c0_32] : memref<24x128xf32, #tpu.memory_space<vmem>>, vector<1x64xf32>
    %cst_33 = arith.constant dense<0.000000e+00> : vector<128x64xf32>
    %78 = tpu.matmul %75, %76, %cst_33 {dimension_numbers = #tpu.dot_dimension_numbers<[1], [0], [0], [1], [0, 0, 1, 1], [], []>} : vector<128x8xf32>, vector<8x64xf32>, vector<128x64xf32> -> vector<128x64xf32>
    %79 = vector.broadcast %77 : vector<1x64xf32> to vector<128x64xf32>
    %80 = arith.addf %78, %79 : vector<128x64xf32>
    %cst_34 = arith.constant 0.000000e+00 : f32
    %81 = vector.broadcast %cst_34 : f32 to vector<128x64xf32>
    %82 = arith.subf %81, %80 : vector<128x64xf32>
    %83 = math.exp %82 : vector<128x64xf32>
    %cst_35 = arith.constant 1.000000e+00 : f32
    %84 = vector.broadcast %cst_35 : f32 to vector<128x64xf32>
    %85 = arith.addf %84, %83 : vector<128x64xf32>
    %86 = tpu.reciprocal %85 {approx = true} : vector<128x64xf32> -> vector<128x64xf32>
    %87 = arith.mulf %65, %86 : vector<128x64xf32>
    %c200 = arith.constant 200 : index
    %c0_36 = arith.constant 0 : index
    %88 = vector.load %arg3[%c200, %c0_36] : memref<544x128xf32, #tpu.memory_space<vmem>>, vector<64x32xf32>
    %c8 = arith.constant 8 : index
    %c0_37 = arith.constant 0 : index
    %89 = vector.load %arg4[%c8, %c0_37] : memref<24x128xf32, #tpu.memory_space<vmem>>, vector<1x32xf32>
    %cst_38 = arith.constant dense<0.000000e+00> : vector<128x32xf32>
    %90 = tpu.matmul %87, %88, %cst_38 {dimension_numbers = #tpu.dot_dimension_numbers<[1], [0], [0], [1], [0, 0, 1, 1], [], []>} : vector<128x64xf32>, vector<64x32xf32>, vector<128x32xf32> -> vector<128x32xf32>
    %91 = vector.broadcast %89 : vector<1x32xf32> to vector<128x32xf32>
    %92 = arith.addf %90, %91 : vector<128x32xf32>
    %c9 = arith.constant 9 : index
    %c0_39 = arith.constant 0 : index
    %93 = vector.load %arg4[%c9, %c0_39] : memref<24x128xf32, #tpu.memory_space<vmem>>, vector<1x32xf32>
    %c10 = arith.constant 10 : index
    %c0_40 = arith.constant 0 : index
    %94 = vector.load %arg4[%c10, %c0_40] : memref<24x128xf32, #tpu.memory_space<vmem>>, vector<1x32xf32>
    %cst_41 = arith.constant dense<0.000000e+00> : vector<128xf32>
    %95 = vector.multi_reduction <add>, %92, %cst_41 [1] : vector<128x32xf32> to vector<128xf32>
    %96 = vector.shape_cast %95 : vector<128xf32> to vector<128x1xf32>
    %97 = arith.mulf %92, %92 : vector<128x32xf32>
    %cst_42 = arith.constant dense<0.000000e+00> : vector<128xf32>
    %98 = vector.multi_reduction <add>, %97, %cst_42 [1] : vector<128x32xf32> to vector<128xf32>
    %99 = vector.shape_cast %98 : vector<128xf32> to vector<128x1xf32>
    %cst_43 = arith.constant 3.125000e-02 : f32
    %100 = vector.broadcast %cst_43 : f32 to vector<128x1xf32>
    %101 = arith.mulf %96, %100 : vector<128x1xf32>
    %cst_44 = arith.constant 3.125000e-02 : f32
    %102 = vector.broadcast %cst_44 : f32 to vector<128x1xf32>
    %103 = arith.mulf %99, %102 : vector<128x1xf32>
    %104 = arith.mulf %101, %101 : vector<128x1xf32>
    %105 = arith.subf %103, %104 : vector<128x1xf32>
    %106 = vector.broadcast %101 : vector<128x1xf32> to vector<128x32xf32>
    %107 = arith.subf %92, %106 : vector<128x32xf32>
    %cst_45 = arith.constant 9.99999974E-6 : f32
    %108 = vector.broadcast %cst_45 : f32 to vector<128x1xf32>
    %109 = arith.addf %105, %108 : vector<128x1xf32>
    %110 = math.rsqrt %109 : vector<128x1xf32>
    %111 = vector.broadcast %110 : vector<128x1xf32> to vector<128x32xf32>
    %112 = arith.mulf %107, %111 : vector<128x32xf32>
    %113 = vector.broadcast %93 : vector<1x32xf32> to vector<128x32xf32>
    %114 = arith.mulf %112, %113 : vector<128x32xf32>
    %115 = vector.broadcast %94 : vector<1x32xf32> to vector<128x32xf32>
    %116 = arith.addf %114, %115 : vector<128x32xf32>
    %cst_46 = arith.constant 0.000000e+00 : f32
    %117 = vector.broadcast %cst_46 : f32 to vector<128x32xf32>
    %118 = arith.cmpf oge, %116, %117 : vector<128x32xf32>
    %cst_47 = arith.constant 2.000000e-01 : f32
    %119 = vector.broadcast %cst_47 : f32 to vector<128x32xf32>
    %120 = arith.mulf %119, %116 : vector<128x32xf32>
    %121 = arith.select %118, %116, %120 : vector<128x32xi1>, vector<128x32xf32>
    %c264 = arith.constant 264 : index
    %c0_48 = arith.constant 0 : index
    %122 = vector.load %arg3[%c264, %c0_48] : memref<544x128xf32, #tpu.memory_space<vmem>>, vector<32x32xf32>
    %c11 = arith.constant 11 : index
    %c0_49 = arith.constant 0 : index
    %123 = vector.load %arg4[%c11, %c0_49] : memref<24x128xf32, #tpu.memory_space<vmem>>, vector<1x32xf32>
    %cst_50 = arith.constant dense<0.000000e+00> : vector<128x32xf32>
    %124 = tpu.matmul %121, %122, %cst_50 {dimension_numbers = #tpu.dot_dimension_numbers<[1], [0], [0], [1], [0, 0, 1, 1], [], []>} : vector<128x32xf32>, vector<32x32xf32>, vector<128x32xf32> -> vector<128x32xf32>
    %125 = vector.broadcast %123 : vector<1x32xf32> to vector<128x32xf32>
    %126 = arith.addf %124, %125 : vector<128x32xf32>
    %127 = vector.extract_strided_slice %126 {offsets = [0, 0], sizes = [128, 16], strides = [1, 1]} : vector<128x32xf32> to vector<128x16xf32>
    %128 = vector.extract_strided_slice %126 {offsets = [0, 16], sizes = [128, 16], strides = [1, 1]} : vector<128x32xf32> to vector<128x16xf32>
    %cst_51 = arith.constant 5.000000e-01 : f32
    %129 = vector.broadcast %cst_51 : f32 to vector<128x16xf32>
    %130 = arith.mulf %129, %128 : vector<128x16xf32>
    %131 = math.exp %130 : vector<128x16xf32>
    %132 = arith.mulf %1, %131 : vector<128x16xf32>
    %133 = arith.addf %127, %132 : vector<128x16xf32>
    %c296 = arith.constant 296 : index
    %c0_52 = arith.constant 0 : index
    %134 = vector.load %arg3[%c296, %c0_52] : memref<544x128xf32, #tpu.memory_space<vmem>>, vector<16x32xf32>
    %c12 = arith.constant 12 : index
    %c0_53 = arith.constant 0 : index
    %135 = vector.load %arg4[%c12, %c0_53] : memref<24x128xf32, #tpu.memory_space<vmem>>, vector<1x32xf32>
    %cst_54 = arith.constant dense<0.000000e+00> : vector<128x32xf32>
    %136 = tpu.matmul %133, %134, %cst_54 {dimension_numbers = #tpu.dot_dimension_numbers<[1], [0], [0], [1], [0, 0, 1, 1], [], []>} : vector<128x16xf32>, vector<16x32xf32>, vector<128x32xf32> -> vector<128x32xf32>
    %137 = vector.broadcast %135 : vector<1x32xf32> to vector<128x32xf32>
    %138 = arith.addf %136, %137 : vector<128x32xf32>
    %c13 = arith.constant 13 : index
    %c0_55 = arith.constant 0 : index
    %139 = vector.load %arg4[%c13, %c0_55] : memref<24x128xf32, #tpu.memory_space<vmem>>, vector<1x32xf32>
    %c14 = arith.constant 14 : index
    %c0_56 = arith.constant 0 : index
    %140 = vector.load %arg4[%c14, %c0_56] : memref<24x128xf32, #tpu.memory_space<vmem>>, vector<1x32xf32>
    %cst_57 = arith.constant dense<0.000000e+00> : vector<128xf32>
    %141 = vector.multi_reduction <add>, %138, %cst_57 [1] : vector<128x32xf32> to vector<128xf32>
    %142 = vector.shape_cast %141 : vector<128xf32> to vector<128x1xf32>
    %143 = arith.mulf %138, %138 : vector<128x32xf32>
    %cst_58 = arith.constant dense<0.000000e+00> : vector<128xf32>
    %144 = vector.multi_reduction <add>, %143, %cst_58 [1] : vector<128x32xf32> to vector<128xf32>
    %145 = vector.shape_cast %144 : vector<128xf32> to vector<128x1xf32>
    %cst_59 = arith.constant 3.125000e-02 : f32
    %146 = vector.broadcast %cst_59 : f32 to vector<128x1xf32>
    %147 = arith.mulf %142, %146 : vector<128x1xf32>
    %cst_60 = arith.constant 3.125000e-02 : f32
    %148 = vector.broadcast %cst_60 : f32 to vector<128x1xf32>
    %149 = arith.mulf %145, %148 : vector<128x1xf32>
    %150 = arith.mulf %147, %147 : vector<128x1xf32>
    %151 = arith.subf %149, %150 : vector<128x1xf32>
    %152 = vector.broadcast %147 : vector<128x1xf32> to vector<128x32xf32>
    %153 = arith.subf %138, %152 : vector<128x32xf32>
    %cst_61 = arith.constant 9.99999974E-6 : f32
    %154 = vector.broadcast %cst_61 : f32 to vector<128x1xf32>
    %155 = arith.addf %151, %154 : vector<128x1xf32>
    %156 = math.rsqrt %155 : vector<128x1xf32>
    %157 = vector.broadcast %156 : vector<128x1xf32> to vector<128x32xf32>
    %158 = arith.mulf %153, %157 : vector<128x32xf32>
    %159 = vector.broadcast %139 : vector<1x32xf32> to vector<128x32xf32>
    %160 = arith.mulf %158, %159 : vector<128x32xf32>
    %161 = vector.broadcast %140 : vector<1x32xf32> to vector<128x32xf32>
    %162 = arith.addf %160, %161 : vector<128x32xf32>
    %cst_62 = arith.constant 0.000000e+00 : f32
    %163 = vector.broadcast %cst_62 : f32 to vector<128x32xf32>
    %164 = arith.cmpf oge, %162, %163 : vector<128x32xf32>
    %cst_63 = arith.constant 2.000000e-01 : f32
    %165 = vector.broadcast %cst_63 : f32 to vector<128x32xf32>
    %166 = arith.mulf %165, %162 : vector<128x32xf32>
    %167 = arith.select %164, %162, %166 : vector<128x32xi1>, vector<128x32xf32>
    %c312 = arith.constant 312 : index
    %c0_64 = arith.constant 0 : index
    %168 = vector.load %arg3[%c312, %c0_64] : memref<544x128xf32, #tpu.memory_space<vmem>>, vector<32x64xf32>
    %c15 = arith.constant 15 : index
    %c0_65 = arith.constant 0 : index
    %169 = vector.load %arg4[%c15, %c0_65] : memref<24x128xf32, #tpu.memory_space<vmem>>, vector<1x64xf32>
    %cst_66 = arith.constant dense<0.000000e+00> : vector<128x64xf32>
    %170 = tpu.matmul %167, %168, %cst_66 {dimension_numbers = #tpu.dot_dimension_numbers<[1], [0], [0], [1], [0, 0, 1, 1], [], []>} : vector<128x32xf32>, vector<32x64xf32>, vector<128x64xf32> -> vector<128x64xf32>
    %171 = vector.broadcast %169 : vector<1x64xf32> to vector<128x64xf32>
    %172 = arith.addf %170, %171 : vector<128x64xf32>
    %c16 = arith.constant 16 : index
    %c0_67 = arith.constant 0 : index
    %173 = vector.load %arg4[%c16, %c0_67] : memref<24x128xf32, #tpu.memory_space<vmem>>, vector<1x64xf32>
    %c17 = arith.constant 17 : index
    %c0_68 = arith.constant 0 : index
    %174 = vector.load %arg4[%c17, %c0_68] : memref<24x128xf32, #tpu.memory_space<vmem>>, vector<1x64xf32>
    %cst_69 = arith.constant dense<0.000000e+00> : vector<128xf32>
    %175 = vector.multi_reduction <add>, %172, %cst_69 [1] : vector<128x64xf32> to vector<128xf32>
    %176 = vector.shape_cast %175 : vector<128xf32> to vector<128x1xf32>
    %177 = arith.mulf %172, %172 : vector<128x64xf32>
    %cst_70 = arith.constant dense<0.000000e+00> : vector<128xf32>
    %178 = vector.multi_reduction <add>, %177, %cst_70 [1] : vector<128x64xf32> to vector<128xf32>
    %179 = vector.shape_cast %178 : vector<128xf32> to vector<128x1xf32>
    %cst_71 = arith.constant 1.562500e-02 : f32
    %180 = vector.broadcast %cst_71 : f32 to vector<128x1xf32>
    %181 = arith.mulf %176, %180 : vector<128x1xf32>
    %cst_72 = arith.constant 1.562500e-02 : f32
    %182 = vector.broadcast %cst_72 : f32 to vector<128x1xf32>
    %183 = arith.mulf %179, %182 : vector<128x1xf32>
    %184 = arith.mulf %181, %181 : vector<128x1xf32>
    %185 = arith.subf %183, %184 : vector<128x1xf32>
    %186 = vector.broadcast %181 : vector<128x1xf32> to vector<128x64xf32>
    %187 = arith.subf %172, %186 : vector<128x64xf32>
    %cst_73 = arith.constant 9.99999974E-6 : f32
    %188 = vector.broadcast %cst_73 : f32 to vector<128x1xf32>
    %189 = arith.addf %185, %188 : vector<128x1xf32>
    %190 = math.rsqrt %189 : vector<128x1xf32>
    %191 = vector.broadcast %190 : vector<128x1xf32> to vector<128x64xf32>
    %192 = arith.mulf %187, %191 : vector<128x64xf32>
    %193 = vector.broadcast %173 : vector<1x64xf32> to vector<128x64xf32>
    %194 = arith.mulf %192, %193 : vector<128x64xf32>
    %195 = vector.broadcast %174 : vector<1x64xf32> to vector<128x64xf32>
    %196 = arith.addf %194, %195 : vector<128x64xf32>
    %cst_74 = arith.constant 0.000000e+00 : f32
    %197 = vector.broadcast %cst_74 : f32 to vector<128x64xf32>
    %198 = arith.cmpf oge, %196, %197 : vector<128x64xf32>
    %cst_75 = arith.constant 2.000000e-01 : f32
    %199 = vector.broadcast %cst_75 : f32 to vector<128x64xf32>
    %200 = arith.mulf %199, %196 : vector<128x64xf32>
    %201 = arith.select %198, %196, %200 : vector<128x64xi1>, vector<128x64xf32>
    %c344 = arith.constant 344 : index
    %c0_76 = arith.constant 0 : index
    %202 = vector.load %arg3[%c344, %c0_76] : memref<544x128xf32, #tpu.memory_space<vmem>>, vector<64x64xf32>
    %c18 = arith.constant 18 : index
    %c0_77 = arith.constant 0 : index
    %203 = vector.load %arg4[%c18, %c0_77] : memref<24x128xf32, #tpu.memory_space<vmem>>, vector<1x64xf32>
    %cst_78 = arith.constant dense<0.000000e+00> : vector<128x64xf32>
    %204 = tpu.matmul %201, %202, %cst_78 {dimension_numbers = #tpu.dot_dimension_numbers<[1], [0], [0], [1], [0, 0, 1, 1], [], []>} : vector<128x64xf32>, vector<64x64xf32>, vector<128x64xf32> -> vector<128x64xf32>
    %205 = vector.broadcast %203 : vector<1x64xf32> to vector<128x64xf32>
    %206 = arith.addf %204, %205 : vector<128x64xf32>
    %c19 = arith.constant 19 : index
    %c0_79 = arith.constant 0 : index
    %207 = vector.load %arg4[%c19, %c0_79] : memref<24x128xf32, #tpu.memory_space<vmem>>, vector<1x64xf32>
    %c20 = arith.constant 20 : index
    %c0_80 = arith.constant 0 : index
    %208 = vector.load %arg4[%c20, %c0_80] : memref<24x128xf32, #tpu.memory_space<vmem>>, vector<1x64xf32>
    %cst_81 = arith.constant dense<0.000000e+00> : vector<128xf32>
    %209 = vector.multi_reduction <add>, %206, %cst_81 [1] : vector<128x64xf32> to vector<128xf32>
    %210 = vector.shape_cast %209 : vector<128xf32> to vector<128x1xf32>
    %211 = arith.mulf %206, %206 : vector<128x64xf32>
    %cst_82 = arith.constant dense<0.000000e+00> : vector<128xf32>
    %212 = vector.multi_reduction <add>, %211, %cst_82 [1] : vector<128x64xf32> to vector<128xf32>
    %213 = vector.shape_cast %212 : vector<128xf32> to vector<128x1xf32>
    %cst_83 = arith.constant 1.562500e-02 : f32
    %214 = vector.broadcast %cst_83 : f32 to vector<128x1xf32>
    %215 = arith.mulf %210, %214 : vector<128x1xf32>
    %cst_84 = arith.constant 1.562500e-02 : f32
    %216 = vector.broadcast %cst_84 : f32 to vector<128x1xf32>
    %217 = arith.mulf %213, %216 : vector<128x1xf32>
    %218 = arith.mulf %215, %215 : vector<128x1xf32>
    %219 = arith.subf %217, %218 : vector<128x1xf32>
    %220 = vector.broadcast %215 : vector<128x1xf32> to vector<128x64xf32>
    %221 = arith.subf %206, %220 : vector<128x64xf32>
    %cst_85 = arith.constant 9.99999974E-6 : f32
    %222 = vector.broadcast %cst_85 : f32 to vector<128x1xf32>
    %223 = arith.addf %219, %222 : vector<128x1xf32>
    %224 = math.rsqrt %223 : vector<128x1xf32>
    %225 = vector.broadcast %224 : vector<128x1xf32> to vector<128x64xf32>
    %226 = arith.mulf %221, %225 : vector<128x64xf32>
    %227 = vector.broadcast %207 : vector<1x64xf32> to vector<128x64xf32>
    %228 = arith.mulf %226, %227 : vector<128x64xf32>
    %229 = vector.broadcast %208 : vector<1x64xf32> to vector<128x64xf32>
    %230 = arith.addf %228, %229 : vector<128x64xf32>
    %c408 = arith.constant 408 : index
    %c0_86 = arith.constant 0 : index
    %231 = vector.load %arg3[%c408, %c0_86] : memref<544x128xf32, #tpu.memory_space<vmem>>, vector<64x8xf32>
    %c21 = arith.constant 21 : index
    %c0_87 = arith.constant 0 : index
    %232 = vector.load %arg4[%c21, %c0_87] : memref<24x128xf32, #tpu.memory_space<vmem>>, vector<1x8xf32>
    %cst_88 = arith.constant dense<0.000000e+00> : vector<128x8xf32>
    %233 = tpu.matmul %230, %231, %cst_88 {dimension_numbers = #tpu.dot_dimension_numbers<[1], [0], [0], [1], [0, 0, 1, 1], [], []>} : vector<128x64xf32>, vector<64x8xf32>, vector<128x8xf32> -> vector<128x8xf32>
    %234 = vector.broadcast %232 : vector<1x8xf32> to vector<128x8xf32>
    %235 = arith.addf %233, %234 : vector<128x8xf32>
    %cst_89 = arith.constant 0.000000e+00 : f32
    %236 = vector.broadcast %cst_89 : f32 to vector<128x8xf32>
    %237 = arith.cmpf oge, %235, %236 : vector<128x8xf32>
    %cst_90 = arith.constant 2.000000e-01 : f32
    %238 = vector.broadcast %cst_90 : f32 to vector<128x8xf32>
    %239 = arith.mulf %238, %235 : vector<128x8xf32>
    %240 = arith.select %237, %235, %239 : vector<128x8xi1>, vector<128x8xf32>
    %c472 = arith.constant 472 : index
    %c0_91 = arith.constant 0 : index
    %241 = vector.load %arg3[%c472, %c0_91] : memref<544x128xf32, #tpu.memory_space<vmem>>, vector<8x64xf32>
    %c22 = arith.constant 22 : index
    %c0_92 = arith.constant 0 : index
    %242 = vector.load %arg4[%c22, %c0_92] : memref<24x128xf32, #tpu.memory_space<vmem>>, vector<1x64xf32>
    %cst_93 = arith.constant dense<0.000000e+00> : vector<128x64xf32>
    %243 = tpu.matmul %240, %241, %cst_93 {dimension_numbers = #tpu.dot_dimension_numbers<[1], [0], [0], [1], [0, 0, 1, 1], [], []>} : vector<128x8xf32>, vector<8x64xf32>, vector<128x64xf32> -> vector<128x64xf32>
    %244 = vector.broadcast %242 : vector<1x64xf32> to vector<128x64xf32>
    %245 = arith.addf %243, %244 : vector<128x64xf32>
    %cst_94 = arith.constant 0.000000e+00 : f32
    %246 = vector.broadcast %cst_94 : f32 to vector<128x64xf32>
    %247 = arith.subf %246, %245 : vector<128x64xf32>
    %248 = math.exp %247 : vector<128x64xf32>
    %cst_95 = arith.constant 1.000000e+00 : f32
    %249 = vector.broadcast %cst_95 : f32 to vector<128x64xf32>
    %250 = arith.addf %249, %248 : vector<128x64xf32>
    %251 = tpu.reciprocal %250 {approx = true} : vector<128x64xf32> -> vector<128x64xf32>
    %252 = arith.mulf %230, %251 : vector<128x64xf32>
    %c480 = arith.constant 480 : index
    %c0_96 = arith.constant 0 : index
    %253 = vector.load %arg3[%c480, %c0_96] : memref<544x128xf32, #tpu.memory_space<vmem>>, vector<64x64xf32>
    %c23 = arith.constant 23 : index
    %c0_97 = arith.constant 0 : index
    %254 = vector.load %arg4[%c23, %c0_97] : memref<24x128xf32, #tpu.memory_space<vmem>>, vector<1x64xf32>
    %cst_98 = arith.constant dense<0.000000e+00> : vector<128x64xf32>
    %255 = tpu.matmul %252, %253, %cst_98 {dimension_numbers = #tpu.dot_dimension_numbers<[1], [0], [0], [1], [0, 0, 1, 1], [], []>} : vector<128x64xf32>, vector<64x64xf32>, vector<128x64xf32> -> vector<128x64xf32>
    %256 = vector.broadcast %254 : vector<1x64xf32> to vector<128x64xf32>
    %257 = arith.addf %255, %256 : vector<128x64xf32>
    %cst_99 = arith.constant 0.000000e+00 : f32
    %258 = vector.broadcast %cst_99 : f32 to vector<128x32xf32>
    %259 = tpu.concatenate %257, %127, %128, %258 in 1 : vector<128x64xf32>, vector<128x16xf32>, vector<128x16xf32>, vector<128x32xf32> -> vector<128x128xf32>
    %c0_100 = arith.constant 0 : index
    %c0_101 = arith.constant 0 : index
    %260 = vector.load %arg5[%c0_100, %c0_101] : memref<128x128xf32, #tpu.memory_space<vmem>>, vector<128x128xf32>
    tpu.vector_store %arg5[%c0_100, %c0_101], %259 {strides = array<i32>} : memref<128x128xf32, #tpu.memory_space<vmem>>, vector<128x128xf32>,
    return
  }
  func.func @transform_0(%arg0: i32) -> (i32, i32) {
    %c0_i32 = arith.constant 0 : i32
    %c0_i32_0 = arith.constant 0 : i32
    return %arg0, %c0_i32 : i32, i32
  }
  func.func @transform_1(%arg0: i32) -> (i32, i32) {
    %c0_i32 = arith.constant 0 : i32
    %c0_i32_0 = arith.constant 0 : i32
    return %arg0, %c0_i32 : i32, i32
  }
  func.func @transform_2(%arg0: i32) -> (i32, i32) {
    %c0_i32 = arith.constant 0 : i32
    %c0_i32_0 = arith.constant 0 : i32
    %c0_i32_1 = arith.constant 0 : i32
    return %c0_i32, %c0_i32_0 : i32, i32
  }
  func.func @transform_3(%arg0: i32) -> (i32, i32) {
    %c0_i32 = arith.constant 0 : i32
    %c0_i32_0 = arith.constant 0 : i32
    %c0_i32_1 = arith.constant 0 : i32
    return %c0_i32, %c0_i32_0 : i32, i32
  }
  func.func @transform_4(%arg0: i32) -> (i32, i32) {
    %c0_i32 = arith.constant 0 : i32
    %c0_i32_0 = arith.constant 0 : i32
    return %arg0, %c0_i32 : i32, i32
  }
}

</mosaic_0001>

<llo_original>
// kernel: vae_forward.1
$region0: #{vae_forward.1}
  #allocation0 [shape = 'u32[]', space=smem, size = 0x4, offset = 0x4, fixed_abs, tag = 'smem constant byte address 0x4 - core index']
  #allocation1 [shape = 'u32[72,128]{1,0:T(1,128)}', space=vmem, size = 0x9000, scoped, tag = 'internal scratch']
  %s0 = inlined_call_operand.vmem [shape: f32[256,64], index: 0, kind: input, shape index: {}]
  %s1 = inlined_call_operand.vmem [shape: f32[256,16], index: 1, kind: input, shape index: {}]
  %s2 = inlined_call_operand.vmem [shape: f32[544,128], index: 2, kind: input, shape index: {}]
  %s3 = inlined_call_operand.vmem [shape: f32[24,128], index: 3, kind: input, shape index: {}]
  %s4 = inlined_call_operand.vmem [shape: f32[256,128], index: 4, kind: output, shape index: {}]
  %s5 = sld [smem:[#allocation0]]
  $region49: #{vae_forward.1} parent=0
    _
  %s7 = ssub.s32 1, %s5
  %s8 = scalar_select 0, %s7, %s5
  loop: start=0, step=1, limit=4
  $region2: #{vae_forward.1} parent=0 // loop_pre_header
    _
  $region3: #{vae_forward.1} parent=0 // loop_header
    %s10 = sphi 0, %s14
    %p11 = scmp.ge.s32.totalorder %s10, 4
    %s20 = sphi 0, %s22
    %s23 = sphi 0, %s20
    %s24 = sphi 0, %s23
    %s40 = sphi 0, %s24
    %s46 = sphi 0, %s48
    %s49 = sphi 0, %s46
    %s50 = sphi 0, %s49
    %s66 = sphi 0, %s50
    %s70 = sphi 0, %s70
    %s72 = sphi 0, %s70
    %s73 = sphi 0, %s72
    %s87 = sphi 0, %s73
    %s91 = sphi 0, %s91
    %s93 = sphi 0, %s91
    %s94 = sphi 0, %s93
    %s108 = sphi 0, %s94
    %s114 = sphi 0, %s116
    %s117 = sphi 0, %s114
    %s118 = sphi 0, %s117
    %s134 = sphi 0, %s118
  $region4: #{vae_forward.1} parent=0 // loop_header_branch
    %13 = sbr.rel (%p11) target = $region8
  $region5: #{vae_forward.1} parent=0 // loop_body
    %s15 = ssub.s32 %s10, 1
    %s16 = ssub.s32 %s10, 2
    %s17 = sadd.s32 %s10, 1
    %s18 = ssub.s32 %s10, %s17
    %p19 = scmp.eq.s32.totalorder %s18, 0
    %s21 = sadd.s32 %s20, 1
    %s22 = scalar_select %p19, %s20, %s21
    %p25 = pneg %p19
    %p26 = scmp.eq.s32.totalorder %s10, 1
    %p27 = por %p25, %p26
    %p28 = scmp.ne.s32.totalorder %s20, %s23
    %p29 = scmp.eq.s32.totalorder %s10, 0
    %p30 = por %p28, %p29
    %p31 = scmp.ne.s32.totalorder %s20, %s23
    %p32 = scmp.eq.s32.totalorder %s15, 1
    %p33 = por %p31, %p32
    %p34 = scmp.ne.s32.totalorder %s23, %s24
    %p35 = scmp.eq.s32.totalorder %s15, 0
    %p36 = por %p34, %p35
    %p37 = scmp.ne.s32.totalorder %s23, %s24
    %p38 = scmp.eq.s32.totalorder %s16, 1
    %p39 = por %p37, %p38
    %p41 = scmp.ne.s32.totalorder %s24, %s40
    %p42 = scmp.eq.s32.totalorder %s16, 0
    %p43 = por %p41, %p42
    %s44 = ssub.s32 %s10, %s17
    %p45 = scmp.eq.s32.totalorder %s44, 0
    %s47 = sadd.s32 %s46, 1
    %s48 = scalar_select %p45, %s46, %s47
    %p51 = pneg %p45
    %p52 = scmp.eq.s32.totalorder %s10, 1
    %p53 = por %p51, %p52
    %p54 = scmp.ne.s32.totalorder %s46, %s49
    %p55 = scmp.eq.s32.totalorder %s10, 0
    %p56 = por %p54, %p55
    %p57 = scmp.ne.s32.totalorder %s46, %s49
    %p58 = scmp.eq.s32.totalorder %s15, 1
    %p59 = por %p57, %p58
    %p60 = scmp.ne.s32.totalorder %s49, %s50
    %p61 = scmp.eq.s32.totalorder %s15, 0
    %p62 = por %p60, %p61
    %p63 = scmp.ne.s32.totalorder %s49, %s50
    %p64 = scmp.eq.s32.totalorder %s16, 1
    %p65 = por %p63, %p64
    %p67 = scmp.ne.s32.totalorder %s50, %s66
    %p68 = scmp.eq.s32.totalorder %s16, 0
    %p69 = por %p67, %p68
    %s71 = sadd.s32 %s70, 1
    %p74 = scmp.eq.s32.totalorder %s10, 1
    %p75 = scmp.ne.s32.totalorder %s70, %s72
    %p76 = scmp.eq.s32.totalorder %s10, 0
    %p77 = por %p75, %p76
    %p78 = scmp.ne.s32.totalorder %s70, %s72
    %p79 = scmp.eq.s32.totalorder %s15, 1
    %p80 = por %p78, %p79
    %p81 = scmp.ne.s32.totalorder %s72, %s73
    %p82 = scmp.eq.s32.totalorder %s15, 0
    %p83 = por %p81, %p82
    %p84 = scmp.ne.s32.totalorder %s72, %s73
    %p85 = scmp.eq.s32.totalorder %s16, 1
    %p86 = por %p84, %p85
    %p88 = scmp.ne.s32.totalorder %s73, %s87
    %p89 = scmp.eq.s32.totalorder %s16, 0
    %p90 = por %p88, %p89
    %s92 = sadd.s32 %s91, 1
    %p95 = scmp.eq.s32.totalorder %s10, 1
    %p96 = scmp.ne.s32.totalorder %s91, %s93
    %p97 = scmp.eq.s32.totalorder %s10, 0
    %p98 = por %p96, %p97
    %p99 = scmp.ne.s32.totalorder %s91, %s93
    %p100 = scmp.eq.s32.totalorder %s15, 1
    %p101 = por %p99, %p100
    %p102 = scmp.ne.s32.totalorder %s93, %s94
    %p103 = scmp.eq.s32.totalorder %s15, 0
    %p104 = por %p102, %p103
    %p105 = scmp.ne.s32.totalorder %s93, %s94
    %p106 = scmp.eq.s32.totalorder %s16, 1
    %p107 = por %p105, %p106
    %p109 = scmp.ne.s32.totalorder %s94, %s108
    %p110 = scmp.eq.s32.totalorder %s16, 0
    %p111 = por %p109, %p110
    %s112 = ssub.s32 %s10, %s17
    %p113 = scmp.eq.s32.totalorder %s112, 0
    %s115 = sadd.s32 %s114, 1
    %s116 = scalar_select %p113, %s114, %s115
    %p119 = pneg %p113
    %p120 = scmp.eq.s32.totalorder %s10, 1
    %p121 = por %p119, %p120
    %p122 = scmp.ne.s32.totalorder %s114, %s117
    %p123 = scmp.eq.s32.totalorder %s10, 0
    %p124 = por %p122, %p123
    %p125 = scmp.ne.s32.totalorder %s114, %s117
    %p126 = scmp.eq.s32.totalorder %s15, 1
    %p127 = por %p125, %p126
    %p128 = scmp.ne.s32.totalorder %s117, %s118
    %p129 = scmp.eq.s32.totalorder %s15, 0
    %p130 = por %p128, %p129
    %p131 = scmp.ne.s32.totalorder %s117, %s118
    %p132 = scmp.eq.s32.totalorder %s16, 1
    %p133 = por %p131, %p132
    %p135 = scmp.ne.s32.totalorder %s118, %s134
    %p136 = scmp.eq.s32.totalorder %s16, 0
    %p137 = por %p135, %p136
    %p138 = scmp.le.s32.totalorder 1, %s10
    %p139 = scmp.lt.s32.totalorder %s10, 3
    %p140 = pnand %p138, %p139
    %p141 = pneg %p140
    // Predicated region
    $region9: #{vae_forward.1} parent=5 // pred_check
      _
    $region10: #{vae_forward.1} parent=5 // pred_check_branch
      %143 = sbr.rel (%p140) target = $region12
    $region11: #{vae_forward.1} parent=5 // pred_region
      %s144 = ssub.s32 %s10, 1
      // Predicated region
      $region13: #{vae_forward.1} parent=11 // pred_check
        %p145 = pneg %p83
      $region14: #{vae_forward.1} parent=11 // pred_check_branch
        %147 = sbr.rel (%p145) target = $region16
      $region15: #{vae_forward.1} parent=11 // pred_region
        _
      $region16: #{vae_forward.1} parent=11 // pred_fallthru
        _
      // Predicated region
      $region17: #{vae_forward.1} parent=11 // pred_check
        %p148 = pneg %p104
      $region18: #{vae_forward.1} parent=11 // pred_check_branch
        %150 = sbr.rel (%p148) target = $region20
      $region19: #{vae_forward.1} parent=11 // pred_region
        _
      $region20: #{vae_forward.1} parent=11 // pred_fallthru
        _
    $region12: #{vae_forward.1} parent=5 // pred_fallthru
      _
    %p151 = scmp.lt.s32.totalorder %s10, 2
    // Predicated region
    $region21: #{vae_forward.1} parent=5 // pred_check
      %p152 = pneg %p151
    $region22: #{vae_forward.1} parent=5 // pred_check_branch
      %154 = sbr.rel (%p152) target = $region24
    $region23: #{vae_forward.1} parent=5 // pred_region
      // Predicated region
      $region25: #{vae_forward.1} parent=23 // pred_check
        %p155 = pneg %p30
      $region26: #{vae_forward.1} parent=23 // pred_check_branch
        %157 = sbr.rel (%p155) target = $region28
      $region27: #{vae_forward.1} parent=23 // pred_region
        %s158 = smul.u32 16, %s10
        %p159 = scmp.lt.s32.totalorder %s158, 31
        %s160 = scalar_select %p159, %s158, 31
        %s161 = smul.addr %s160, 8
        %s162 = scalar_lea.vmem %s0, %s161
        %s163 = smul.u32 16, %s10
      $region28: #{vae_forward.1} parent=23 // pred_fallthru
        _
      // Predicated region
      $region29: #{vae_forward.1} parent=23 // pred_check
        %p164 = pneg %p56
      $region30: #{vae_forward.1} parent=23 // pred_check_branch
        %166 = sbr.rel (%p164) target = $region32
      $region31: #{vae_forward.1} parent=23 // pred_region
        %s167 = smul.u32 16, %s10
        %p168 = scmp.lt.s32.totalorder %s167, 31
        %s169 = scalar_select %p168, %s167, 31
        %s170 = smul.addr %s169, 8
        %s171 = scalar_lea.vmem %s1, %s170
        %s172 = smul.u32 16, %s10
      $region32: #{vae_forward.1} parent=23 // pred_fallthru
        _
    $region24: #{vae_forward.1} parent=5 // pred_fallthru
      _
    %p173 = scmp.le.s32.totalorder 1, %s10
    %p174 = scmp.lt.s32.totalorder %s10, 3
    %p175 = pnand %p173, %p174
    %p176 = pneg %p175
    // Predicated region
    $region33: #{vae_forward.1} parent=5 // pred_check
      _
    $region34: #{vae_forward.1} parent=5 // pred_check_branch
      %178 = sbr.rel (%p175) target = $region36
    $region35: #{vae_forward.1} parent=5 // pred_region
      %s179 = ssub.s32 %s10, 1
      %s180 = smul.u32 16, %s15
      %p181 = scmp.lt.s32.totalorder %s180, 31
      %s182 = scalar_select %p181, %s180, 31
      %s183 = smul.addr %s182, 8
      %s184 = scalar_lea.vmem %s0, %s183
      %p185 = pneg %p36
      %p186 = pneg %p33
      %s187 = smul.u32 16, %s15
      %p188 = scmp.lt.s32.totalorder %s187, 31
      %s189 = scalar_select %p188, %s187, 31
      %s190 = smul.addr %s189, 8
      %s191 = scalar_lea.vmem %s1, %s190
      %p192 = pneg %p62
      %p193 = pneg %p59
      %p194 = pneg %p83
      %p195 = pneg %p80
      %p196 = pneg %p104
      %p197 = pneg %p101
      %p198 = pneg %p130
      %p199 = pneg %p127
      %s200 = smul.u32 16, %s15
      %p201 = scmp.lt.s32.totalorder %s200, 31
      %s202 = scalar_select %p201, %s200, 31
      %s203 = smul.addr %s202, 8
      %s204 = scalar_lea.vmem %s4, %s203
      %s205 = smul.u32 16, %s15
      %p206 = scmp.lt.s32.totalorder %s205, 31
      %s207 = scalar_select %p206, %s205, 31
      %s208 = smul.addr %s207, 8
      %s209 = scalar_lea.vmem %s0, %s208
      %s210 = smul.u32 16, %s15
      %s211 = smul.u32 16, %s15
      %p212 = scmp.lt.s32.totalorder %s211, 31
      %s213 = scalar_select %p212, %s211, 31
      %s214 = smul.addr %s213, 8
      %s215 = scalar_lea.vmem %s1, %s214
      %s216 = smul.u32 16, %s15
      %s217 = smul.u32 16, %s15
      %p218 = scmp.lt.s32.totalorder %s217, 31
      %s219 = scalar_select %p218, %s217, 31
      %s220 = smul.addr %s219, 8
      %s221 = scalar_lea.vmem %s4, %s220
      %s222 = smul.u32 16, %s15
      %v223 = vld [vmem:[%s209] sm:$0xff]
      %v224 = vld [vmem:[%s209 + $0x8] sm:$0xff]
      %v225 = vld [vmem:[%s209 + $0x10] sm:$0xff]
      %v226 = vld [vmem:[%s209 + $0x18] sm:$0xff]
      %v227 = vld [vmem:[%s209 + $0x20] sm:$0xff]
      %v228 = vld [vmem:[%s209 + $0x28] sm:$0xff]
      %v229 = vld [vmem:[%s209 + $0x30] sm:$0xff]
      %v230 = vld [vmem:[%s209 + $0x38] sm:$0xff]
      %v231 = vld [vmem:[%s209 + $0x40] sm:$0xff]
      %v232 = vld [vmem:[%s209 + $0x48] sm:$0xff]
      %v233 = vld [vmem:[%s209 + $0x50] sm:$0xff]
      %v234 = vld [vmem:[%s209 + $0x58] sm:$0xff]
      %v235 = vld [vmem:[%s209 + $0x60] sm:$0xff]
      %v236 = vld [vmem:[%s209 + $0x68] sm:$0xff]
      %v237 = vld [vmem:[%s209 + $0x70] sm:$0xff]
      %v238 = vld [vmem:[%s209 + $0x78] sm:$0xff]
      %v239 = vld [vmem:[%s215] sm:$0xff]
      %v240 = vld [vmem:[%s215 + $0x8] sm:$0xff]
      %v241 = vld [vmem:[%s215 + $0x10] sm:$0xff]
      %v242 = vld [vmem:[%s215 + $0x18] sm:$0xff]
      %v243 = vld [vmem:[%s215 + $0x20] sm:$0xff]
      %v244 = vld [vmem:[%s215 + $0x28] sm:$0xff]
      %v245 = vld [vmem:[%s215 + $0x30] sm:$0xff]
      %v246 = vld [vmem:[%s215 + $0x38] sm:$0xff]
      %v247 = vld [vmem:[%s215 + $0x40] sm:$0xff]
      %v248 = vld [vmem:[%s215 + $0x48] sm:$0xff]
      %v249 = vld [vmem:[%s215 + $0x50] sm:$0xff]
      %v250 = vld [vmem:[%s215 + $0x58] sm:$0xff]
      %v251 = vld [vmem:[%s215 + $0x60] sm:$0xff]
      %v252 = vld [vmem:[%s215 + $0x68] sm:$0xff]
      %v253 = vld [vmem:[%s215 + $0x70] sm:$0xff]
      %v254 = vld [vmem:[%s215 + $0x78] sm:$0xff]
      %v255 = vld [vmem:[%s2] sm:$0xff]
      %v256 = vld [vmem:[%s2 + $0x8] sm:$0xff]
      %v257 = vld [vmem:[%s2 + $0x10] sm:$0xff]
      %v258 = vld [vmem:[%s2 + $0x18] sm:$0xff]
      %v259 = vld [vmem:[%s2 + $0x20] sm:$0xff]
      %v260 = vld [vmem:[%s2 + $0x28] sm:$0xff]
      %v261 = vld [vmem:[%s2 + $0x30] sm:$0xff]
      %v262 = vld [vmem:[%s2 + $0x38] sm:$0xff]
      %v263 = vld [vmem:[%s3] sm:$0x1]
      %v264 = vperm.slane %v263, 0
      %vm265 = vcmask 523264
      %v267 = vsel %vm265, %v223, 0
      %v270 = vsel %vm265, %v224, 0
      %v273 = vsel %vm265, %v225, 0
      %v276 = vsel %vm265, %v226, 0
      %v279 = vsel %vm265, %v227, 0
      %v282 = vsel %vm265, %v228, 0
      %v285 = vsel %vm265, %v229, 0
      %v288 = vsel %vm265, %v230, 0
      %v291 = vsel %vm265, %v231, 0
      %v294 = vsel %vm265, %v232, 0
      %v297 = vsel %vm265, %v233, 0
      %v300 = vsel %vm265, %v234, 0
      %v303 = vsel %vm265, %v235, 0
      %v306 = vsel %vm265, %v236, 0
      %v309 = vsel %vm265, %v237, 0
      %v312 = vsel %vm265, %v238, 0
      %314 = vmatpush.msra.mxu0 0.0
      %315 = vmatpush.msra.mxu0 0.0
      %316 = vmatpush.msra.mxu0 0.0
      %317 = vmatpush.msra.mxu0 0.0
      %318 = vmatpush.msra.mxu0 0.0
      %319 = vmatpush.msra.mxu0 0.0
      %320 = vmatpush.msra.mxu0 0.0
      %321 = vmatpush.msra.mxu0 0.0
      %322 = vmatpush.msra.mxu0 %v262
      %323 = vmatpush.msra.mxu0 %v261
      %324 = vmatpush.msra.mxu0 %v260
      %325 = vmatpush.msra.mxu0 %v259
      %326 = vmatpush.msra.mxu0 %v258
      %327 = vmatpush.msra.mxu0 %v257
      %328 = vmatpush.msra.mxu0 %v256
      %329 = vmatpush.msra.mxu0 %v255
      %330 = vmatmul.f32.gmra.mxu0 %v267
      %v331 = vpop.f32.mrf.mxu0
      %v332 = vadd.f32 %v264, %v331
      %333 = vmatmul.f32.gmra.mxu0 %v270
      %v334 = vpop.f32.mrf.mxu0
      %v335 = vadd.f32 %v264, %v334
      %336 = vmatmul.f32.gmra.mxu0 %v273
      %v337 = vpop.f32.mrf.mxu0
      %v338 = vadd.f32 %v264, %v337
      %339 = vmatmul.f32.gmra.mxu0 %v276
      %v340 = vpop.f32.mrf.mxu0
      %v341 = vadd.f32 %v264, %v340
      %342 = vmatmul.f32.gmra.mxu0 %v279
      %v343 = vpop.f32.mrf.mxu0
      %v344 = vadd.f32 %v264, %v343
      %345 = vmatmul.f32.gmra.mxu0 %v282
      %v346 = vpop.f32.mrf.mxu0
      %v347 = vadd.f32 %v264, %v346
      %348 = vmatmul.f32.gmra.mxu0 %v285
      %v349 = vpop.f32.mrf.mxu0
      %v350 = vadd.f32 %v264, %v349
      %351 = vmatmul.f32.gmra.mxu0 %v288
      %v352 = vpop.f32.mrf.mxu0
      %v353 = vadd.f32 %v264, %v352
      %354 = vmatmul.f32.gmra.mxu0 %v291
      %v355 = vpop.f32.mrf.mxu0
      %v356 = vadd.f32 %v264, %v355
      %357 = vmatmul.f32.gmra.mxu0 %v294
      %v358 = vpop.f32.mrf.mxu0
      %v359 = vadd.f32 %v264, %v358
      %360 = vmatmul.f32.gmra.mxu0 %v297
      %v361 = vpop.f32.mrf.mxu0
      %v362 = vadd.f32 %v264, %v361
      %363 = vmatmul.f32.gmra.mxu0 %v300
      %v364 = vpop.f32.mrf.mxu0
      %v365 = vadd.f32 %v264, %v364
      %366 = vmatmul.f32.gmra.mxu0 %v303
      %v367 = vpop.f32.mrf.mxu0
      %v368 = vadd.f32 %v264, %v367
      %369 = vmatmul.f32.gmra.mxu0 %v306
      %v370 = vpop.f32.mrf.mxu0
      %v371 = vadd.f32 %v264, %v370
      %372 = vmatmul.f32.gmra.mxu0 %v309
      %v373 = vpop.f32.mrf.mxu0
      %v374 = vadd.f32 %v264, %v373
      %375 = vmatmul.f32.gmra.mxu0 %v312
      %v376 = vpop.f32.mrf.mxu0
      %v377 = vadd.f32 %v264, %v376
      %378 = vdwg.mxu0
      %v379 = vld [vmem:[%s3 + $0x1] sm:$0x1]
      %v380 = vld [vmem:[%s3 + $0x2] sm:$0x1]
      %v381 = vsel %vm265, %v332, 0.0
      %382 = vadd.xlane.f32.xlu0 %v381
      %v383 = vpop.xlane.xlu0 %382
      %v384 = vsel %vm265, %v335, 0.0
      %385 = vadd.xlane.f32.xlu0 %v384
      %v386 = vpop.xlane.xlu0 %385
      %v387 = vsel %vm265, %v338, 0.0
      %388 = vadd.xlane.f32.xlu0 %v387
      %v389 = vpop.xlane.xlu0 %388
      %v390 = vsel %vm265, %v341, 0.0
      %391 = vadd.xlane.f32.xlu0 %v390
      %v392 = vpop.xlane.xlu0 %391
      %v393 = vsel %vm265, %v344, 0.0
      %394 = vadd.xlane.f32.xlu0 %v393
      %v395 = vpop.xlane.xlu0 %394
      %v396 = vsel %vm265, %v347, 0.0
      %397 = vadd.xlane.f32.xlu0 %v396
      %v398 = vpop.xlane.xlu0 %397
      %v399 = vsel %vm265, %v350, 0.0
      %400 = vadd.xlane.f32.xlu0 %v399
      %v401 = vpop.xlane.xlu0 %400
      %v402 = vsel %vm265, %v353, 0.0
      %403 = vadd.xlane.f32.xlu0 %v402
      %v404 = vpop.xlane.xlu0 %403
      %v405 = vsel %vm265, %v356, 0.0
      %406 = vadd.xlane.f32.xlu0 %v405
      %v407 = vpop.xlane.xlu0 %406
      %v408 = vsel %vm265, %v359, 0.0
      %409 = vadd.xlane.f32.xlu0 %v408
      %v410 = vpop.xlane.xlu0 %409
      %v411 = vsel %vm265, %v362, 0.0
      %412 = vadd.xlane.f32.xlu0 %v411
      %v413 = vpop.xlane.xlu0 %412
      %v414 = vsel %vm265, %v365, 0.0
      %415 = vadd.xlane.f32.xlu0 %v414
      %v416 = vpop.xlane.xlu0 %415
      %v417 = vsel %vm265, %v368, 0.0
      %418 = vadd.xlane.f32.xlu0 %v417
      %v419 = vpop.xlane.xlu0 %418
      %v420 = vsel %vm265, %v371, 0.0
      %421 = vadd.xlane.f32.xlu0 %v420
      %v422 = vpop.xlane.xlu0 %421
      %v423 = vsel %vm265, %v374, 0.0
      %424 = vadd.xlane.f32.xlu0 %v423
      %v425 = vpop.xlane.xlu0 %424
      %v426 = vsel %vm265, %v377, 0.0
      %427 = vadd.xlane.f32.xlu0 %v426
      %v428 = vpop.xlane.xlu0 %427
      %v429 = vmul.f32 %v332, %v332
      %v430 = vmul.f32 %v335, %v335
      %v431 = vmul.f32 %v338, %v338
      %v432 = vmul.f32 %v341, %v341
      %v433 = vmul.f32 %v344, %v344
      %v434 = vmul.f32 %v347, %v347
      %v435 = vmul.f32 %v350, %v350
      %v436 = vmul.f32 %v353, %v353
      %v437 = vmul.f32 %v356, %v356
      %v438 = vmul.f32 %v359, %v359
      %v439 = vmul.f32 %v362, %v362
      %v440 = vmul.f32 %v365, %v365
      %v441 = vmul.f32 %v368, %v368
      %v442 = vmul.f32 %v371, %v371
      %v443 = vmul.f32 %v374, %v374
      %v444 = vmul.f32 %v377, %v377
      %v445 = vsel %vm265, %v429, 0.0
      %446 = vadd.xlane.f32.xlu0 %v445
      %v447 = vpop.xlane.xlu0 %446
      %v448 = vsel %vm265, %v430, 0.0
      %449 = vadd.xlane.f32.xlu0 %v448
      %v450 = vpop.xlane.xlu0 %449
      %v451 = vsel %vm265, %v431, 0.0
      %452 = vadd.xlane.f32.xlu0 %v451
      %v453 = vpop.xlane.xlu0 %452
      %v454 = vsel %vm265, %v432, 0.0
      %455 = vadd.xlane.f32.xlu0 %v454
      %v456 = vpop.xlane.xlu0 %455
      %v457 = vsel %vm265, %v433, 0.0
      %458 = vadd.xlane.f32.xlu0 %v457
      %v459 = vpop.xlane.xlu0 %458
      %v460 = vsel %vm265, %v434, 0.0
      %461 = vadd.xlane.f32.xlu0 %v460
      %v462 = vpop.xlane.xlu0 %461
      %v463 = vsel %vm265, %v435, 0.0
      %464 = vadd.xlane.f32.xlu0 %v463
      %v465 = vpop.xlane.xlu0 %464
      %v466 = vsel %vm265, %v436, 0.0
      %467 = vadd.xlane.f32.xlu0 %v466
      %v468 = vpop.xlane.xlu0 %467
      %v469 = vsel %vm265, %v437, 0.0
      %470 = vadd.xlane.f32.xlu0 %v469
      %v471 = vpop.xlane.xlu0 %470
      %v472 = vsel %vm265, %v438, 0.0
      %473 = vadd.xlane.f32.xlu0 %v472
      %v474 = vpop.xlane.xlu0 %473
      %v475 = vsel %vm265, %v439, 0.0
      %476 = vadd.xlane.f32.xlu0 %v475
      %v477 = vpop.xlane.xlu0 %476
      %v478 = vsel %vm265, %v440, 0.0
      %479 = vadd.xlane.f32.xlu0 %v478
      %v480 = vpop.xlane.xlu0 %479
      %v481 = vsel %vm265, %v441, 0.0
      %482 = vadd.xlane.f32.xlu0 %v481
      %v483 = vpop.xlane.xlu0 %482
      %v484 = vsel %vm265, %v442, 0.0
      %485 = vadd.xlane.f32.xlu0 %v484
      %v486 = vpop.xlane.xlu0 %485
      %v487 = vsel %vm265, %v443, 0.0
      %488 = vadd.xlane.f32.xlu0 %v487
      %v489 = vpop.xlane.xlu0 %488
      %v490 = vsel %vm265, %v444, 0.0
      %491 = vadd.xlane.f32.xlu0 %v490
      %v492 = vpop.xlane.xlu0 %491
      %v493 = vmul.f32 %v383, 0.015625
      %v494 = vmul.f32 %v386, 0.015625
      %v495 = vmul.f32 %v389, 0.015625
      %v496 = vmul.f32 %v392, 0.015625
      %v497 = vmul.f32 %v395, 0.015625
      %v498 = vmul.f32 %v398, 0.015625
      %v499 = vmul.f32 %v401, 0.015625
      %v500 = vmul.f32 %v404, 0.015625
      %v501 = vmul.f32 %v407, 0.015625
      %v502 = vmul.f32 %v410, 0.015625
      %v503 = vmul.f32 %v413, 0.015625
      %v504 = vmul.f32 %v416, 0.015625
      %v505 = vmul.f32 %v419, 0.015625
      %v506 = vmul.f32 %v422, 0.015625
      %v507 = vmul.f32 %v425, 0.015625
      %v508 = vmul.f32 %v428, 0.015625
      %v509 = vmul.f32 %v447, 0.015625
      %v510 = vmul.f32 %v450, 0.015625
      %v511 = vmul.f32 %v453, 0.015625
      %v512 = vmul.f32 %v456, 0.015625
      %v513 = vmul.f32 %v459, 0.015625
      %v514 = vmul.f32 %v462, 0.015625
      %v515 = vmul.f32 %v465, 0.015625
      %v516 = vmul.f32 %v468, 0.015625
      %v517 = vmul.f32 %v471, 0.015625
      %v518 = vmul.f32 %v474, 0.015625
      %v519 = vmul.f32 %v477, 0.015625
      %v520 = vmul.f32 %v480, 0.015625
      %v521 = vmul.f32 %v483, 0.015625
      %v522 = vmul.f32 %v486, 0.015625
      %v523 = vmul.f32 %v489, 0.015625
      %v524 = vmul.f32 %v492, 0.015625
      %v525 = vmul.f32 %v493, %v493
      %v526 = vmul.f32 %v494, %v494
      %v527 = vmul.f32 %v495, %v495
      %v528 = vmul.f32 %v496, %v496
      %v529 = vmul.f32 %v497, %v497
      %v530 = vmul.f32 %v498, %v498
      %v531 = vmul.f32 %v499, %v499
      %v532 = vmul.f32 %v500, %v500
      %v533 = vmul.f32 %v501, %v501
      %v534 = vmul.f32 %v502, %v502
      %v535 = vmul.f32 %v503, %v503
      %v536 = vmul.f32 %v504, %v504
      %v537 = vmul.f32 %v505, %v505
      %v538 = vmul.f32 %v506, %v506
      %v539 = vmul.f32 %v507, %v507
      %v540 = vmul.f32 %v508, %v508
      %v541 = vsub.f32 %v509, %v525
      %v542 = vsub.f32 %v510, %v526
      %v543 = vsub.f32 %v511, %v527
      %v544 = vsub.f32 %v512, %v528
      %v545 = vsub.f32 %v513, %v529
      %v546 = vsub.f32 %v514, %v530
      %v547 = vsub.f32 %v515, %v531
      %v548 = vsub.f32 %v516, %v532
      %v549 = vsub.f32 %v517, %v533
      %v550 = vsub.f32 %v518, %v534
      %v551 = vsub.f32 %v519, %v535
      %v552 = vsub.f32 %v520, %v536
      %v553 = vsub.f32 %v521, %v537
      %v554 = vsub.f32 %v522, %v538
      %v555 = vsub.f32 %v523, %v539
      %v556 = vsub.f32 %v524, %v540
      %v557 = vsub.f32 %v332, %v493
      %v558 = vsub.f32 %v335, %v494
      %v559 = vsub.f32 %v338, %v495
      %v560 = vsub.f32 %v341, %v496
      %v561 = vsub.f32 %v344, %v497
      %v562 = vsub.f32 %v347, %v498
      %v563 = vsub.f32 %v350, %v499
      %v564 = vsub.f32 %v353, %v500
      %v565 = vsub.f32 %v356, %v501
      %v566 = vsub.f32 %v359, %v502
      %v567 = vsub.f32 %v362, %v503
      %v568 = vsub.f32 %v365, %v504
      %v569 = vsub.f32 %v368, %v505
      %v570 = vsub.f32 %v371, %v506
      %v571 = vsub.f32 %v374, %v507
      %v572 = vsub.f32 %v377, %v508
      %v573 = vadd.f32 %v541, 1e-05
      %v574 = vadd.f32 %v542, 1e-05
      %v575 = vadd.f32 %v543, 1e-05
      %v576 = vadd.f32 %v544, 1e-05
      %v577 = vadd.f32 %v545, 1e-05
      %v578 = vadd.f32 %v546, 1e-05
      %v579 = vadd.f32 %v547, 1e-05
      %v580 = vadd.f32 %v548, 1e-05
      %v581 = vadd.f32 %v549, 1e-05
      %v582 = vadd.f32 %v550, 1e-05
      %v583 = vadd.f32 %v551, 1e-05
      %v584 = vadd.f32 %v552, 1e-05
      %v585 = vadd.f32 %v553, 1e-05
      %v586 = vadd.f32 %v554, 1e-05
      %v587 = vadd.f32 %v555, 1e-05
      %v588 = vadd.f32 %v556, 1e-05
      %v589 = vrsqrt.pop %v573
      %v590 = vmul.f32 %v589, %v573
      %v591 = vmul.f32 %v590, %v589
      %v592 = vmul.f32 0.5, %v591
      %v593 = vsub.f32 1.5, %v592
      %v594 = vmul.f32 %v589, %v593
      %vm595 = vweird.f32 %v573
      %vm596 = vweird.f32 %v589
      %vm597 = vmor %vm595, %vm596
      %v598 = vsel %vm597, %v589, %v594
      %v599 = vrsqrt.pop %v574
      %v600 = vmul.f32 %v599, %v574
      %v601 = vmul.f32 %v600, %v599
      %v602 = vmul.f32 0.5, %v601
      %v603 = vsub.f32 1.5, %v602
      %v604 = vmul.f32 %v599, %v603
      %vm605 = vweird.f32 %v574
      %vm606 = vweird.f32 %v599
      %vm607 = vmor %vm605, %vm606
      %v608 = vsel %vm607, %v599, %v604
      %v609 = vrsqrt.pop %v575
      %v610 = vmul.f32 %v609, %v575
      %v611 = vmul.f32 %v610, %v609
      %v612 = vmul.f32 0.5, %v611
      %v613 = vsub.f32 1.5, %v612
      %v614 = vmul.f32 %v609, %v613
      %vm615 = vweird.f32 %v575
      %vm616 = vweird.f32 %v609
      %vm617 = vmor %vm615, %vm616
      %v618 = vsel %vm617, %v609, %v614
      %v619 = vrsqrt.pop %v576
      %v620 = vmul.f32 %v619, %v576
      %v621 = vmul.f32 %v620, %v619
      %v622 = vmul.f32 0.5, %v621
      %v623 = vsub.f32 1.5, %v622
      %v624 = vmul.f32 %v619, %v623
      %vm625 = vweird.f32 %v576
      %vm626 = vweird.f32 %v619
      %vm627 = vmor %vm625, %vm626
      %v628 = vsel %vm627, %v619, %v624
      %v629 = vrsqrt.pop %v577
      %v630 = vmul.f32 %v629, %v577
      %v631 = vmul.f32 %v630, %v629
      %v632 = vmul.f32 0.5, %v631
      %v633 = vsub.f32 1.5, %v632
      %v634 = vmul.f32 %v629, %v633
      %vm635 = vweird.f32 %v577
      %vm636 = vweird.f32 %v629
      %vm637 = vmor %vm635, %vm636
      %v638 = vsel %vm637, %v629, %v634
      %v639 = vrsqrt.pop %v578
      %v640 = vmul.f32 %v639, %v578
      %v641 = vmul.f32 %v640, %v639
      %v642 = vmul.f32 0.5, %v641
      %v643 = vsub.f32 1.5, %v642
      %v644 = vmul.f32 %v639, %v643
      %vm645 = vweird.f32 %v578
      %vm646 = vweird.f32 %v639
      %vm647 = vmor %vm645, %vm646
      %v648 = vsel %vm647, %v639, %v644
      %v649 = vrsqrt.pop %v579
      %v650 = vmul.f32 %v649, %v579
      %v651 = vmul.f32 %v650, %v649
      %v652 = vmul.f32 0.5, %v651
      %v653 = vsub.f32 1.5, %v652
      %v654 = vmul.f32 %v649, %v653
      %vm655 = vweird.f32 %v579
      %vm656 = vweird.f32 %v649
      %vm657 = vmor %vm655, %vm656
      %v658 = vsel %vm657, %v649, %v654
      %v659 = vrsqrt.pop %v580
      %v660 = vmul.f32 %v659, %v580
      %v661 = vmul.f32 %v660, %v659
      %v662 = vmul.f32 0.5, %v661
      %v663 = vsub.f32 1.5, %v662
      %v664 = vmul.f32 %v659, %v663
      %vm665 = vweird.f32 %v580
      %vm666 = vweird.f32 %v659
      %vm667 = vmor %vm665, %vm666
      %v668 = vsel %vm667, %v659, %v664
      %v669 = vrsqrt.pop %v581
      %v670 = vmul.f32 %v669, %v581
      %v671 = vmul.f32 %v670, %v669
      %v672 = vmul.f32 0.5, %v671
      %v673 = vsub.f32 1.5, %v672
      %v674 = vmul.f32 %v669, %v673
      %vm675 = vweird.f32 %v581
      %vm676 = vweird.f32 %v669
      %vm677 = vmor %vm675, %vm676
      %v678 = vsel %vm677, %v669, %v674
      %v679 = vrsqrt.pop %v582
      %v680 = vmul.f32 %v679, %v582
      %v681 = vmul.f32 %v680, %v679
      %v682 = vmul.f32 0.5, %v681
      %v683 = vsub.f32 1.5, %v682
      %v684 = vmul.f32 %v679, %v683
      %vm685 = vweird.f32 %v582
      %vm686 = vweird.f32 %v679
      %vm687 = vmor %vm685, %vm686
      %v688 = vsel %vm687, %v679, %v684
      %v689 = vrsqrt.pop %v583
      %v690 = vmul.f32 %v689, %v583
      %v691 = vmul.f32 %v690, %v689
      %v692 = vmul.f32 0.5, %v691
      %v693 = vsub.f32 1.5, %v692
      %v694 = vmul.f32 %v689, %v693
      %vm695 = vweird.f32 %v583
      %vm696 = vweird.f32 %v689
      %vm697 = vmor %vm695, %vm696
      %v698 = vsel %vm697, %v689, %v694
      %v699 = vrsqrt.pop %v584
      %v700 = vmul.f32 %v699, %v584
      %v701 = vmul.f32 %v700, %v699
      %v702 = vmul.f32 0.5, %v701
      %v703 = vsub.f32 1.5, %v702
      %v704 = vmul.f32 %v699, %v703
      %vm705 = vweird.f32 %v584
      %vm706 = vweird.f32 %v699
      %vm707 = vmor %vm705, %vm706
      %v708 = vsel %vm707, %v699, %v704
      %v709 = vrsqrt.pop %v585
      %v710 = vmul.f32 %v709, %v585
      %v711 = vmul.f32 %v710, %v709
      %v712 = vmul.f32 0.5, %v711
      %v713 = vsub.f32 1.5, %v712
      %v714 = vmul.f32 %v709, %v713
      %vm715 = vweird.f32 %v585
      %vm716 = vweird.f32 %v709
      %vm717 = vmor %vm715, %vm716
      %v718 = vsel %vm717, %v709, %v714
      %v719 = vrsqrt.pop %v586
      %v720 = vmul.f32 %v719, %v586
      %v721 = vmul.f32 %v720, %v719
      %v722 = vmul.f32 0.5, %v721
      %v723 = vsub.f32 1.5, %v722
      %v724 = vmul.f32 %v719, %v723
      %vm725 = vweird.f32 %v586
      %vm726 = vweird.f32 %v719
      %vm727 = vmor %vm725, %vm726
      %v728 = vsel %vm727, %v719, %v724
      %v729 = vrsqrt.pop %v587
      %v730 = vmul.f32 %v729, %v587
      %v731 = vmul.f32 %v730, %v729
      %v732 = vmul.f32 0.5, %v731
      %v733 = vsub.f32 1.5, %v732
      %v734 = vmul.f32 %v729, %v733
      %vm735 = vweird.f32 %v587
      %vm736 = vweird.f32 %v729
      %vm737 = vmor %vm735, %vm736
      %v738 = vsel %vm737, %v729, %v734
      %v739 = vrsqrt.pop %v588
      %v740 = vmul.f32 %v739, %v588
      %v741 = vmul.f32 %v740, %v739
      %v742 = vmul.f32 0.5, %v741
      %v743 = vsub.f32 1.5, %v742
      %v744 = vmul.f32 %v739, %v743
      %vm745 = vweird.f32 %v588
      %vm746 = vweird.f32 %v739
      %vm747 = vmor %vm745, %vm746
      %v748 = vsel %vm747, %v739, %v744
      %v749 = vmul.f32 %v557, %v598
      %v750 = vmul.f32 %v558, %v608
      %v751 = vmul.f32 %v559, %v618
      %v752 = vmul.f32 %v560, %v628
      %v753 = vmul.f32 %v561, %v638
      %v754 = vmul.f32 %v562, %v648
      %v755 = vmul.f32 %v563, %v658
      %v756 = vmul.f32 %v564, %v668
      %v757 = vmul.f32 %v565, %v678
      %v758 = vmul.f32 %v566, %v688
      %v759 = vmul.f32 %v567, %v698
      %v760 = vmul.f32 %v568, %v708
      %v761 = vmul.f32 %v569, %v718
      %v762 = vmul.f32 %v570, %v728
      %v763 = vmul.f32 %v571, %v738
      %v764 = vmul.f32 %v572, %v748
      %v765 = vperm.slane %v379, 0
      %v766 = vmul.f32 %v749, %v765
      %v767 = vmul.f32 %v750, %v765
      %v768 = vmul.f32 %v751, %v765
      %v769 = vmul.f32 %v752, %v765
      %v770 = vmul.f32 %v753, %v765
      %v771 = vmul.f32 %v754, %v765
      %v772 = vmul.f32 %v755, %v765
      %v773 = vmul.f32 %v756, %v765
      %v774 = vmul.f32 %v757, %v765
      %v775 = vmul.f32 %v758, %v765
      %v776 = vmul.f32 %v759, %v765
      %v777 = vmul.f32 %v760, %v765
      %v778 = vmul.f32 %v761, %v765
      %v779 = vmul.f32 %v762, %v765
      %v780 = vmul.f32 %v763, %v765
      %v781 = vmul.f32 %v764, %v765
      %v782 = vperm.slane %v380, 0
      %v783 = vadd.f32 %v766, %v782
      %v784 = vadd.f32 %v767, %v782
      %v785 = vadd.f32 %v768, %v782
      %v786 = vadd.f32 %v769, %v782
      %v787 = vadd.f32 %v770, %v782
      %v788 = vadd.f32 %v771, %v782
      %v789 = vadd.f32 %v772, %v782
      %v790 = vadd.f32 %v773, %v782
      %v791 = vadd.f32 %v774, %v782
      %v792 = vadd.f32 %v775, %v782
      %v793 = vadd.f32 %v776, %v782
      %v794 = vadd.f32 %v777, %v782
      %v795 = vadd.f32 %v778, %v782
      %v796 = vadd.f32 %v779, %v782
      %v797 = vadd.f32 %v780, %v782
      %v798 = vadd.f32 %v781, %v782
      %vm799 = vcmp.ge.f32.partialorder %v783, 0.0
      %vm800 = vcmp.ge.f32.partialorder %v784, 0.0
      %vm801 = vcmp.ge.f32.partialorder %v785, 0.0
      %vm802 = vcmp.ge.f32.partialorder %v786, 0.0
      %vm803 = vcmp.ge.f32.partialorder %v787, 0.0
      %vm804 = vcmp.ge.f32.partialorder %v788, 0.0
      %vm805 = vcmp.ge.f32.partialorder %v789, 0.0
      %vm806 = vcmp.ge.f32.partialorder %v790, 0.0
      %vm807 = vcmp.ge.f32.partialorder %v791, 0.0
      %vm808 = vcmp.ge.f32.partialorder %v792, 0.0
      %vm809 = vcmp.ge.f32.partialorder %v793, 0.0
      %vm810 = vcmp.ge.f32.partialorder %v794, 0.0
      %vm811 = vcmp.ge.f32.partialorder %v795, 0.0
      %vm812 = vcmp.ge.f32.partialorder %v796, 0.0
      %vm813 = vcmp.ge.f32.partialorder %v797, 0.0
      %vm814 = vcmp.ge.f32.partialorder %v798, 0.0
      %v815 = vmul.f32 %v783, 0.2
      %v816 = vmul.f32 %v784, 0.2
      %v817 = vmul.f32 %v785, 0.2
      %v818 = vmul.f32 %v786, 0.2
      %v819 = vmul.f32 %v787, 0.2
      %v820 = vmul.f32 %v788, 0.2
      %v821 = vmul.f32 %v789, 0.2
      %v822 = vmul.f32 %v790, 0.2
      %v823 = vmul.f32 %v791, 0.2
      %v824 = vmul.f32 %v792, 0.2
      %v825 = vmul.f32 %v793, 0.2
      %v826 = vmul.f32 %v794, 0.2
      %v827 = vmul.f32 %v795, 0.2
      %v828 = vmul.f32 %v796, 0.2
      %v829 = vmul.f32 %v797, 0.2
      %v830 = vmul.f32 %v798, 0.2
      %v831 = vsel %vm799, %v783, %v815
      %v832 = vsel %vm800, %v784, %v816
      %v833 = vsel %vm801, %v785, %v817
      %v834 = vsel %vm802, %v786, %v818
      %v835 = vsel %vm803, %v787, %v819
      %v836 = vsel %vm804, %v788, %v820
      %v837 = vsel %vm805, %v789, %v821
      %v838 = vsel %vm806, %v790, %v822
      %v839 = vsel %vm807, %v791, %v823
      %v840 = vsel %vm808, %v792, %v824
      %v841 = vsel %vm809, %v793, %v825
      %v842 = vsel %vm810, %v794, %v826
      %v843 = vsel %vm811, %v795, %v827
      %v844 = vsel %vm812, %v796, %v828
      %v845 = vsel %vm813, %v797, %v829
      %v846 = vsel %vm814, %v798, %v830
      %v847 = vld [vmem:[%s2 + $0x40] sm:$0xff]
      %v848 = vld [vmem:[%s2 + $0x48] sm:$0xff]
      %v849 = vld [vmem:[%s2 + $0x50] sm:$0xff]
      %v850 = vld [vmem:[%s2 + $0x58] sm:$0xff]
      %v851 = vld [vmem:[%s2 + $0x60] sm:$0xff]
      %v852 = vld [vmem:[%s2 + $0x68] sm:$0xff]
      %v853 = vld [vmem:[%s2 + $0x70] sm:$0xff]
      %v854 = vld [vmem:[%s2 + $0x78] sm:$0xff]
      %v855 = vld [vmem:[%s3 + $0x3] sm:$0x1]
      %v856 = vperm.slane %v855, 0
      %v858 = vsel %vm265, %v831, 0
      %v861 = vsel %vm265, %v832, 0
      %v864 = vsel %vm265, %v833, 0
      %v867 = vsel %vm265, %v834, 0
      %v870 = vsel %vm265, %v835, 0
      %v873 = vsel %vm265, %v836, 0
      %v876 = vsel %vm265, %v837, 0
      %v879 = vsel %vm265, %v838, 0
      %v882 = vsel %vm265, %v839, 0
      %v885 = vsel %vm265, %v840, 0
      %v888 = vsel %vm265, %v841, 0
      %v891 = vsel %vm265, %v842, 0
      %v894 = vsel %vm265, %v843, 0
      %v897 = vsel %vm265, %v844, 0
      %v900 = vsel %vm265, %v845, 0
      %v903 = vsel %vm265, %v846, 0
      %905 = vmatpush.msra.mxu0 0.0
      %906 = vmatpush.msra.mxu0 0.0
      %907 = vmatpush.msra.mxu0 0.0
      %908 = vmatpush.msra.mxu0 0.0
      %909 = vmatpush.msra.mxu0 0.0
      %910 = vmatpush.msra.mxu0 0.0
      %911 = vmatpush.msra.mxu0 0.0
      %912 = vmatpush.msra.mxu0 0.0
      %913 = vmatpush.msra.mxu0 %v854
      %914 = vmatpush.msra.mxu0 %v853
      %915 = vmatpush.msra.mxu0 %v852
      %916 = vmatpush.msra.mxu0 %v851
      %917 = vmatpush.msra.mxu0 %v850
      %918 = vmatpush.msra.mxu0 %v849
      %919 = vmatpush.msra.mxu0 %v848
      %920 = vmatpush.msra.mxu0 %v847
      %921 = vmatmul.f32.gmra.mxu0 %v858
      %v922 = vpop.f32.mrf.mxu0
      %v923 = vadd.f32 %v856, %v922
      %924 = vmatmul.f32.gmra.mxu0 %v861
      %v925 = vpop.f32.mrf.mxu0
      %v926 = vadd.f32 %v856, %v925
      %927 = vmatmul.f32.gmra.mxu0 %v864
      %v928 = vpop.f32.mrf.mxu0
      %v929 = vadd.f32 %v856, %v928
      %930 = vmatmul.f32.gmra.mxu0 %v867
      %v931 = vpop.f32.mrf.mxu0
      %v932 = vadd.f32 %v856, %v931
      %933 = vmatmul.f32.gmra.mxu0 %v870
      %v934 = vpop.f32.mrf.mxu0
      %v935 = vadd.f32 %v856, %v934
      %936 = vmatmul.f32.gmra.mxu0 %v873
      %v937 = vpop.f32.mrf.mxu0
      %v938 = vadd.f32 %v856, %v937
      %939 = vmatmul.f32.gmra.mxu0 %v876
      %v940 = vpop.f32.mrf.mxu0
      %v941 = vadd.f32 %v856, %v940
      %942 = vmatmul.f32.gmra.mxu0 %v879
      %v943 = vpop.f32.mrf.mxu0
      %v944 = vadd.f32 %v856, %v943
      %945 = vmatmul.f32.gmra.mxu0 %v882
      %v946 = vpop.f32.mrf.mxu0
      %v947 = vadd.f32 %v856, %v946
      %948 = vmatmul.f32.gmra.mxu0 %v885
      %v949 = vpop.f32.mrf.mxu0
      %v950 = vadd.f32 %v856, %v949
      %951 = vmatmul.f32.gmra.mxu0 %v888
      %v952 = vpop.f32.mrf.mxu0
      %v953 = vadd.f32 %v856, %v952
      %954 = vmatmul.f32.gmra.mxu0 %v891
      %v955 = vpop.f32.mrf.mxu0
      %v956 = vadd.f32 %v856, %v955
      %957 = vmatmul.f32.gmra.mxu0 %v894
      %v958 = vpop.f32.mrf.mxu0
      %v959 = vadd.f32 %v856, %v958
      %960 = vmatmul.f32.gmra.mxu0 %v897
      %v961 = vpop.f32.mrf.mxu0
      %v962 = vadd.f32 %v856, %v961
      %963 = vmatmul.f32.gmra.mxu0 %v900
      %v964 = vpop.f32.mrf.mxu0
      %v965 = vadd.f32 %v856, %v964
      %966 = vmatmul.f32.gmra.mxu0 %v903
      %v967 = vpop.f32.mrf.mxu0
      %v968 = vadd.f32 %v856, %v967
      %969 = vdwg.mxu0
      %v970 = vld [vmem:[%s3 + $0x4] sm:$0x1]
      %v971 = vld [vmem:[%s3 + $0x5] sm:$0x1]
      %v972 = vsel %vm265, %v923, 0.0
      %973 = vadd.xlane.f32.xlu0 %v972
      %v974 = vpop.xlane.xlu0 %973
      %v975 = vsel %vm265, %v926, 0.0
      %976 = vadd.xlane.f32.xlu0 %v975
      %v977 = vpop.xlane.xlu0 %976
      %v978 = vsel %vm265, %v929, 0.0
      %979 = vadd.xlane.f32.xlu0 %v978
      %v980 = vpop.xlane.xlu0 %979
      %v981 = vsel %vm265, %v932, 0.0
      %982 = vadd.xlane.f32.xlu0 %v981
      %v983 = vpop.xlane.xlu0 %982
      %v984 = vsel %vm265, %v935, 0.0
      %985 = vadd.xlane.f32.xlu0 %v984
      %v986 = vpop.xlane.xlu0 %985
      %v987 = vsel %vm265, %v938, 0.0
      %988 = vadd.xlane.f32.xlu0 %v987
      %v989 = vpop.xlane.xlu0 %988
      %v990 = vsel %vm265, %v941, 0.0
      %991 = vadd.xlane.f32.xlu0 %v990
      %v992 = vpop.xlane.xlu0 %991
      %v993 = vsel %vm265, %v944, 0.0
      %994 = vadd.xlane.f32.xlu0 %v993
      %v995 = vpop.xlane.xlu0 %994
      %v996 = vsel %vm265, %v947, 0.0
      %997 = vadd.xlane.f32.xlu0 %v996
      %v998 = vpop.xlane.xlu0 %997
      %v999 = vsel %vm265, %v950, 0.0
      %1000 = vadd.xlane.f32.xlu0 %v999
      %v1001 = vpop.xlane.xlu0 %1000
      %v1002 = vsel %vm265, %v953, 0.0
      %1003 = vadd.xlane.f32.xlu0 %v1002
      %v1004 = vpop.xlane.xlu0 %1003
      %v1005 = vsel %vm265, %v956, 0.0
      %1006 = vadd.xlane.f32.xlu0 %v1005
      %v1007 = vpop.xlane.xlu0 %1006
      %v1008 = vsel %vm265, %v959, 0.0
      %1009 = vadd.xlane.f32.xlu0 %v1008
      %v1010 = vpop.xlane.xlu0 %1009
      %v1011 = vsel %vm265, %v962, 0.0
      %1012 = vadd.xlane.f32.xlu0 %v1011
      %v1013 = vpop.xlane.xlu0 %1012
      %v1014 = vsel %vm265, %v965, 0.0
      %1015 = vadd.xlane.f32.xlu0 %v1014
      %v1016 = vpop.xlane.xlu0 %1015
      %v1017 = vsel %vm265, %v968, 0.0
      %1018 = vadd.xlane.f32.xlu0 %v1017
      %v1019 = vpop.xlane.xlu0 %1018
      %v1020 = vmul.f32 %v923, %v923
      %v1021 = vmul.f32 %v926, %v926
      %v1022 = vmul.f32 %v929, %v929
      %v1023 = vmul.f32 %v932, %v932
      %v1024 = vmul.f32 %v935, %v935
      %v1025 = vmul.f32 %v938, %v938
      %v1026 = vmul.f32 %v941, %v941
      %v1027 = vmul.f32 %v944, %v944
      %v1028 = vmul.f32 %v947, %v947
      %v1029 = vmul.f32 %v950, %v950
      %v1030 = vmul.f32 %v953, %v953
      %v1031 = vmul.f32 %v956, %v956
      %v1032 = vmul.f32 %v959, %v959
      %v1033 = vmul.f32 %v962, %v962
      %v1034 = vmul.f32 %v965, %v965
      %v1035 = vmul.f32 %v968, %v968
      %v1036 = vsel %vm265, %v1020, 0.0
      %1037 = vadd.xlane.f32.xlu0 %v1036
      %v1038 = vpop.xlane.xlu0 %1037
      %v1039 = vsel %vm265, %v1021, 0.0
      %1040 = vadd.xlane.f32.xlu0 %v1039
      %v1041 = vpop.xlane.xlu0 %1040
      %v1042 = vsel %vm265, %v1022, 0.0
      %1043 = vadd.xlane.f32.xlu0 %v1042
      %v1044 = vpop.xlane.xlu0 %1043
      %v1045 = vsel %vm265, %v1023, 0.0
      %1046 = vadd.xlane.f32.xlu0 %v1045
      %v1047 = vpop.xlane.xlu0 %1046
      %v1048 = vsel %vm265, %v1024, 0.0
      %1049 = vadd.xlane.f32.xlu0 %v1048
      %v1050 = vpop.xlane.xlu0 %1049
      %v1051 = vsel %vm265, %v1025, 0.0
      %1052 = vadd.xlane.f32.xlu0 %v1051
      %v1053 = vpop.xlane.xlu0 %1052
      %v1054 = vsel %vm265, %v1026, 0.0
      %1055 = vadd.xlane.f32.xlu0 %v1054
      %v1056 = vpop.xlane.xlu0 %1055
      %v1057 = vsel %vm265, %v1027, 0.0
      %1058 = vadd.xlane.f32.xlu0 %v1057
      %v1059 = vpop.xlane.xlu0 %1058
      %v1060 = vsel %vm265, %v1028, 0.0
      %1061 = vadd.xlane.f32.xlu0 %v1060
      %v1062 = vpop.xlane.xlu0 %1061
      %v1063 = vsel %vm265, %v1029, 0.0
      %1064 = vadd.xlane.f32.xlu0 %v1063
      %v1065 = vpop.xlane.xlu0 %1064
      %v1066 = vsel %vm265, %v1030, 0.0
      %1067 = vadd.xlane.f32.xlu0 %v1066
      %v1068 = vpop.xlane.xlu0 %1067
      %v1069 = vsel %vm265, %v1031, 0.0
      %1070 = vadd.xlane.f32.xlu0 %v1069
      %v1071 = vpop.xlane.xlu0 %1070
      %v1072 = vsel %vm265, %v1032, 0.0
      %1073 = vadd.xlane.f32.xlu0 %v1072
      %v1074 = vpop.xlane.xlu0 %1073
      %v1075 = vsel %vm265, %v1033, 0.0
      %1076 = vadd.xlane.f32.xlu0 %v1075
      %v1077 = vpop.xlane.xlu0 %1076
      %v1078 = vsel %vm265, %v1034, 0.0
      %1079 = vadd.xlane.f32.xlu0 %v1078
      %v1080 = vpop.xlane.xlu0 %1079
      %v1081 = vsel %vm265, %v1035, 0.0
      %1082 = vadd.xlane.f32.xlu0 %v1081
      %v1083 = vpop.xlane.xlu0 %1082
      %v1084 = vmul.f32 %v974, 0.015625
      %v1085 = vmul.f32 %v977, 0.015625
      %v1086 = vmul.f32 %v980, 0.015625
      %v1087 = vmul.f32 %v983, 0.015625
      %v1088 = vmul.f32 %v986, 0.015625
      %v1089 = vmul.f32 %v989, 0.015625
      %v1090 = vmul.f32 %v992, 0.015625
      %v1091 = vmul.f32 %v995, 0.015625
      %v1092 = vmul.f32 %v998, 0.015625
      %v1093 = vmul.f32 %v1001, 0.015625
      %v1094 = vmul.f32 %v1004, 0.015625
      %v1095 = vmul.f32 %v1007, 0.015625
      %v1096 = vmul.f32 %v1010, 0.015625
      %v1097 = vmul.f32 %v1013, 0.015625
      %v1098 = vmul.f32 %v1016, 0.015625
      %v1099 = vmul.f32 %v1019, 0.015625
      %v1100 = vmul.f32 %v1038, 0.015625
      %v1101 = vmul.f32 %v1041, 0.015625
      %v1102 = vmul.f32 %v1044, 0.015625
      %v1103 = vmul.f32 %v1047, 0.015625
      %v1104 = vmul.f32 %v1050, 0.015625
      %v1105 = vmul.f32 %v1053, 0.015625
      %v1106 = vmul.f32 %v1056, 0.015625
      %v1107 = vmul.f32 %v1059, 0.015625
      %v1108 = vmul.f32 %v1062, 0.015625
      %v1109 = vmul.f32 %v1065, 0.015625
      %v1110 = vmul.f32 %v1068, 0.015625
      %v1111 = vmul.f32 %v1071, 0.015625
      %v1112 = vmul.f32 %v1074, 0.015625
      %v1113 = vmul.f32 %v1077, 0.015625
      %v1114 = vmul.f32 %v1080, 0.015625
      %v1115 = vmul.f32 %v1083, 0.015625
      %v1116 = vmul.f32 %v1084, %v1084
      %v1117 = vmul.f32 %v1085, %v1085
      %v1118 = vmul.f32 %v1086, %v1086
      %v1119 = vmul.f32 %v1087, %v1087
      %v1120 = vmul.f32 %v1088, %v1088
      %v1121 = vmul.f32 %v1089, %v1089
      %v1122 = vmul.f32 %v1090, %v1090
      %v1123 = vmul.f32 %v1091, %v1091
      %v1124 = vmul.f32 %v1092, %v1092
      %v1125 = vmul.f32 %v1093, %v1093
      %v1126 = vmul.f32 %v1094, %v1094
      %v1127 = vmul.f32 %v1095, %v1095
      %v1128 = vmul.f32 %v1096, %v1096
      %v1129 = vmul.f32 %v1097, %v1097
      %v1130 = vmul.f32 %v1098, %v1098
      %v1131 = vmul.f32 %v1099, %v1099
      %v1132 = vsub.f32 %v1100, %v1116
      %v1133 = vsub.f32 %v1101, %v1117
      %v1134 = vsub.f32 %v1102, %v1118
      %v1135 = vsub.f32 %v1103, %v1119
      %v1136 = vsub.f32 %v1104, %v1120
      %v1137 = vsub.f32 %v1105, %v1121
      %v1138 = vsub.f32 %v1106, %v1122
      %v1139 = vsub.f32 %v1107, %v1123
      %v1140 = vsub.f32 %v1108, %v1124
      %v1141 = vsub.f32 %v1109, %v1125
      %v1142 = vsub.f32 %v1110, %v1126
      %v1143 = vsub.f32 %v1111, %v1127
      %v1144 = vsub.f32 %v1112, %v1128
      %v1145 = vsub.f32 %v1113, %v1129
      %v1146 = vsub.f32 %v1114, %v1130
      %v1147 = vsub.f32 %v1115, %v1131
      %v1148 = vsub.f32 %v923, %v1084
      %v1149 = vsub.f32 %v926, %v1085
      %v1150 = vsub.f32 %v929, %v1086
      %v1151 = vsub.f32 %v932, %v1087
      %v1152 = vsub.f32 %v935, %v1088
      %v1153 = vsub.f32 %v938, %v1089
      %v1154 = vsub.f32 %v941, %v1090
      %v1155 = vsub.f32 %v944, %v1091
      %v1156 = vsub.f32 %v947, %v1092
      %v1157 = vsub.f32 %v950, %v1093
      %v1158 = vsub.f32 %v953, %v1094
      %v1159 = vsub.f32 %v956, %v1095
      %v1160 = vsub.f32 %v959, %v1096
      %v1161 = vsub.f32 %v962, %v1097
      %v1162 = vsub.f32 %v965, %v1098
      %v1163 = vsub.f32 %v968, %v1099
      %v1164 = vadd.f32 %v1132, 1e-05
      %v1165 = vadd.f32 %v1133, 1e-05
      %v1166 = vadd.f32 %v1134, 1e-05
      %v1167 = vadd.f32 %v1135, 1e-05
      %v1168 = vadd.f32 %v1136, 1e-05
      %v1169 = vadd.f32 %v1137, 1e-05
      %v1170 = vadd.f32 %v1138, 1e-05
      %v1171 = vadd.f32 %v1139, 1e-05
      %v1172 = vadd.f32 %v1140, 1e-05
      %v1173 = vadd.f32 %v1141, 1e-05
      %v1174 = vadd.f32 %v1142, 1e-05
      %v1175 = vadd.f32 %v1143, 1e-05
      %v1176 = vadd.f32 %v1144, 1e-05
      %v1177 = vadd.f32 %v1145, 1e-05
      %v1178 = vadd.f32 %v1146, 1e-05
      %v1179 = vadd.f32 %v1147, 1e-05
      %v1180 = vrsqrt.pop %v1164
      %v1181 = vmul.f32 %v1180, %v1164
      %v1182 = vmul.f32 %v1181, %v1180
      %v1183 = vmul.f32 0.5, %v1182
      %v1184 = vsub.f32 1.5, %v1183
      %v1185 = vmul.f32 %v1180, %v1184
      %vm1186 = vweird.f32 %v1164
      %vm1187 = vweird.f32 %v1180
      %vm1188 = vmor %vm1186, %vm1187
      %v1189 = vsel %vm1188, %v1180, %v1185
      %v1190 = vrsqrt.pop %v1165
      %v1191 = vmul.f32 %v1190, %v1165
      %v1192 = vmul.f32 %v1191, %v1190
      %v1193 = vmul.f32 0.5, %v1192
      %v1194 = vsub.f32 1.5, %v1193
      %v1195 = vmul.f32 %v1190, %v1194
      %vm1196 = vweird.f32 %v1165
      %vm1197 = vweird.f32 %v1190
      %vm1198 = vmor %vm1196, %vm1197
      %v1199 = vsel %vm1198, %v1190, %v1195
      %v1200 = vrsqrt.pop %v1166
      %v1201 = vmul.f32 %v1200, %v1166
      %v1202 = vmul.f32 %v1201, %v1200
      %v1203 = vmul.f32 0.5, %v1202
      %v1204 = vsub.f32 1.5, %v1203
      %v1205 = vmul.f32 %v1200, %v1204
      %vm1206 = vweird.f32 %v1166
      %vm1207 = vweird.f32 %v1200
      %vm1208 = vmor %vm1206, %vm1207
      %v1209 = vsel %vm1208, %v1200, %v1205
      %v1210 = vrsqrt.pop %v1167
      %v1211 = vmul.f32 %v1210, %v1167
      %v1212 = vmul.f32 %v1211, %v1210
      %v1213 = vmul.f32 0.5, %v1212
      %v1214 = vsub.f32 1.5, %v1213
      %v1215 = vmul.f32 %v1210, %v1214
      %vm1216 = vweird.f32 %v1167
      %vm1217 = vweird.f32 %v1210
      %vm1218 = vmor %vm1216, %vm1217
      %v1219 = vsel %vm1218, %v1210, %v1215
      %v1220 = vrsqrt.pop %v1168
      %v1221 = vmul.f32 %v1220, %v1168
      %v1222 = vmul.f32 %v1221, %v1220
      %v1223 = vmul.f32 0.5, %v1222
      %v1224 = vsub.f32 1.5, %v1223
      %v1225 = vmul.f32 %v1220, %v1224
      %vm1226 = vweird.f32 %v1168
      %vm1227 = vweird.f32 %v1220
      %vm1228 = vmor %vm1226, %vm1227
      %v1229 = vsel %vm1228, %v1220, %v1225
      %v1230 = vrsqrt.pop %v1169
      %v1231 = vmul.f32 %v1230, %v1169
      %v1232 = vmul.f32 %v1231, %v1230
      %v1233 = vmul.f32 0.5, %v1232
      %v1234 = vsub.f32 1.5, %v1233
      %v1235 = vmul.f32 %v1230, %v1234
      %vm1236 = vweird.f32 %v1169
      %vm1237 = vweird.f32 %v1230
      %vm1238 = vmor %vm1236, %vm1237
      %v1239 = vsel %vm1238, %v1230, %v1235
      %v1240 = vrsqrt.pop %v1170
      %v1241 = vmul.f32 %v1240, %v1170
      %v1242 = vmul.f32 %v1241, %v1240
      %v1243 = vmul.f32 0.5, %v1242
      %v1244 = vsub.f32 1.5, %v1243
      %v1245 = vmul.f32 %v1240, %v1244
      %vm1246 = vweird.f32 %v1170
      %vm1247 = vweird.f32 %v1240
      %vm1248 = vmor %vm1246, %vm1247
      %v1249 = vsel %vm1248, %v1240, %v1245
      %v1250 = vrsqrt.pop %v1171
      %v1251 = vmul.f32 %v1250, %v1171
      %v1252 = vmul.f32 %v1251, %v1250
      %v1253 = vmul.f32 0.5, %v1252
      %v1254 = vsub.f32 1.5, %v1253
      %v1255 = vmul.f32 %v1250, %v1254
      %vm1256 = vweird.f32 %v1171
      %vm1257 = vweird.f32 %v1250
      %vm1258 = vmor %vm1256, %vm1257
      %v1259 = vsel %vm1258, %v1250, %v1255
      %v1260 = vrsqrt.pop %v1172
      %v1261 = vmul.f32 %v1260, %v1172
      %v1262 = vmul.f32 %v1261, %v1260
      %v1263 = vmul.f32 0.5, %v1262
      %v1264 = vsub.f32 1.5, %v1263
      %v1265 = vmul.f32 %v1260, %v1264
      %vm1266 = vweird.f32 %v1172
      %vm1267 = vweird.f32 %v1260
      %vm1268 = vmor %vm1266, %vm1267
      %v1269 = vsel %vm1268, %v1260, %v1265
      %v1270 = vrsqrt.pop %v1173
      %v1271 = vmul.f32 %v1270, %v1173
      %v1272 = vmul.f32 %v1271, %v1270
      %v1273 = vmul.f32 0.5, %v1272
      %v1274 = vsub.f32 1.5, %v1273
      %v1275 = vmul.f32 %v1270, %v1274
      %vm1276 = vweird.f32 %v1173
      %vm1277 = vweird.f32 %v1270
      %vm1278 = vmor %vm1276, %vm1277
      %v1279 = vsel %vm1278, %v1270, %v1275
      %v1280 = vrsqrt.pop %v1174
      %v1281 = vmul.f32 %v1280, %v1174
      %v1282 = vmul.f32 %v1281, %v1280
      %v1283 = vmul.f32 0.5, %v1282
      %v1284 = vsub.f32 1.5, %v1283
      %v1285 = vmul.f32 %v1280, %v1284
      %vm1286 = vweird.f32 %v1174
      %vm1287 = vweird.f32 %v1280
      %vm1288 = vmor %vm1286, %vm1287
      %v1289 = vsel %vm1288, %v1280, %v1285
      %v1290 = vrsqrt.pop %v1175
      %v1291 = vmul.f32 %v1290, %v1175
      %v1292 = vmul.f32 %v1291, %v1290
      %v1293 = vmul.f32 0.5, %v1292
      %v1294 = vsub.f32 1.5, %v1293
      %v1295 = vmul.f32 %v1290, %v1294
      %vm1296 = vweird.f32 %v1175
      %vm1297 = vweird.f32 %v1290
      %vm1298 = vmor %vm1296, %vm1297
      %v1299 = vsel %vm1298, %v1290, %v1295
      %v1300 = vrsqrt.pop %v1176
      %v1301 = vmul.f32 %v1300, %v1176
      %v1302 = vmul.f32 %v1301, %v1300
      %v1303 = vmul.f32 0.5, %v1302
      %v1304 = vsub.f32 1.5, %v1303
      %v1305 = vmul.f32 %v1300, %v1304
      %vm1306 = vweird.f32 %v1176
      %vm1307 = vweird.f32 %v1300
      %vm1308 = vmor %vm1306, %vm1307
      %v1309 = vsel %vm1308, %v1300, %v1305
      %v1310 = vrsqrt.pop %v1177
      %v1311 = vmul.f32 %v1310, %v1177
      %v1312 = vmul.f32 %v1311, %v1310
      %v1313 = vmul.f32 0.5, %v1312
      %v1314 = vsub.f32 1.5, %v1313
      %v1315 = vmul.f32 %v1310, %v1314
      %vm1316 = vweird.f32 %v1177
      %vm1317 = vweird.f32 %v1310
      %vm1318 = vmor %vm1316, %vm1317
      %v1319 = vsel %vm1318, %v1310, %v1315
      %v1320 = vrsqrt.pop %v1178
      %v1321 = vmul.f32 %v1320, %v1178
      %v1322 = vmul.f32 %v1321, %v1320
      %v1323 = vmul.f32 0.5, %v1322
      %v1324 = vsub.f32 1.5, %v1323
      %v1325 = vmul.f32 %v1320, %v1324
      %vm1326 = vweird.f32 %v1178
      %vm1327 = vweird.f32 %v1320
      %vm1328 = vmor %vm1326, %vm1327
      %v1329 = vsel %vm1328, %v1320, %v1325
      %v1330 = vrsqrt.pop %v1179
      %v1331 = vmul.f32 %v1330, %v1179
      %v1332 = vmul.f32 %v1331, %v1330
      %v1333 = vmul.f32 0.5, %v1332
      %v1334 = vsub.f32 1.5, %v1333
      %v1335 = vmul.f32 %v1330, %v1334
      %vm1336 = vweird.f32 %v1179
      %vm1337 = vweird.f32 %v1330
      %vm1338 = vmor %vm1336, %vm1337
      %v1339 = vsel %vm1338, %v1330, %v1335
      %v1340 = vmul.f32 %v1148, %v1189
      %v1341 = vmul.f32 %v1149, %v1199
      %v1342 = vmul.f32 %v1150, %v1209
      %v1343 = vmul.f32 %v1151, %v1219
      %v1344 = vmul.f32 %v1152, %v1229
      %v1345 = vmul.f32 %v1153, %v1239
      %v1346 = vmul.f32 %v1154, %v1249
      %v1347 = vmul.f32 %v1155, %v1259
      %v1348 = vmul.f32 %v1156, %v1269
      %v1349 = vmul.f32 %v1157, %v1279
      %v1350 = vmul.f32 %v1158, %v1289
      %v1351 = vmul.f32 %v1159, %v1299
      %v1352 = vmul.f32 %v1160, %v1309
      %v1353 = vmul.f32 %v1161, %v1319
      %v1354 = vmul.f32 %v1162, %v1329
      %v1355 = vmul.f32 %v1163, %v1339
      %v1356 = vperm.slane %v970, 0
      %v1357 = vmul.f32 %v1340, %v1356
      %v1358 = vmul.f32 %v1341, %v1356
      %v1359 = vmul.f32 %v1342, %v1356
      %v1360 = vmul.f32 %v1343, %v1356
      %v1361 = vmul.f32 %v1344, %v1356
      %v1362 = vmul.f32 %v1345, %v1356
      %v1363 = vmul.f32 %v1346, %v1356
      %v1364 = vmul.f32 %v1347, %v1356
      %v1365 = vmul.f32 %v1348, %v1356
      %v1366 = vmul.f32 %v1349, %v1356
      %v1367 = vmul.f32 %v1350, %v1356
      %v1368 = vmul.f32 %v1351, %v1356
      %v1369 = vmul.f32 %v1352, %v1356
      %v1370 = vmul.f32 %v1353, %v1356
      %v1371 = vmul.f32 %v1354, %v1356
      %v1372 = vmul.f32 %v1355, %v1356
      %v1373 = vperm.slane %v971, 0
      %v1374 = vadd.f32 %v1357, %v1373
      %v1375 = vadd.f32 %v1358, %v1373
      %v1376 = vadd.f32 %v1359, %v1373
      %v1377 = vadd.f32 %v1360, %v1373
      %v1378 = vadd.f32 %v1361, %v1373
      %v1379 = vadd.f32 %v1362, %v1373
      %v1380 = vadd.f32 %v1363, %v1373
      %v1381 = vadd.f32 %v1364, %v1373
      %v1382 = vadd.f32 %v1365, %v1373
      %v1383 = vadd.f32 %v1366, %v1373
      %v1384 = vadd.f32 %v1367, %v1373
      %v1385 = vadd.f32 %v1368, %v1373
      %v1386 = vadd.f32 %v1369, %v1373
      %v1387 = vadd.f32 %v1370, %v1373
      %v1388 = vadd.f32 %v1371, %v1373
      %v1389 = vadd.f32 %v1372, %v1373
      %v1390 = vadd.f32 %v223, %v1374
      %v1391 = vadd.f32 %v224, %v1375
      %v1392 = vadd.f32 %v225, %v1376
      %v1393 = vadd.f32 %v226, %v1377
      %v1394 = vadd.f32 %v227, %v1378
      %v1395 = vadd.f32 %v228, %v1379
      %v1396 = vadd.f32 %v229, %v1380
      %v1397 = vadd.f32 %v230, %v1381
      %v1398 = vadd.f32 %v231, %v1382
      %v1399 = vadd.f32 %v232, %v1383
      %v1400 = vadd.f32 %v233, %v1384
      %v1401 = vadd.f32 %v234, %v1385
      %v1402 = vadd.f32 %v235, %v1386
      %v1403 = vadd.f32 %v236, %v1387
      %v1404 = vadd.f32 %v237, %v1388
      %v1405 = vadd.f32 %v238, %v1389
      %v1406 = vld [vmem:[%s2 + $0x80] sm:$0xff]
      %v1407 = vld [vmem:[%s2 + $0x88] sm:$0xff]
      %v1408 = vld [vmem:[%s2 + $0x90] sm:$0xff]
      %v1409 = vld [vmem:[%s2 + $0x98] sm:$0xff]
      %v1410 = vld [vmem:[%s2 + $0xa0] sm:$0xff]
      %v1411 = vld [vmem:[%s2 + $0xa8] sm:$0xff]
      %v1412 = vld [vmem:[%s2 + $0xb0] sm:$0xff]
      %v1413 = vld [vmem:[%s2 + $0xb8] sm:$0xff]
      %v1414 = vld [vmem:[%s3 + $0x6] sm:$0x1]
      %v1415 = vperm.slane %v1414, 0
      %v1417 = vsel %vm265, %v1390, 0
      %v1420 = vsel %vm265, %v1391, 0
      %v1423 = vsel %vm265, %v1392, 0
      %v1426 = vsel %vm265, %v1393, 0
      %v1429 = vsel %vm265, %v1394, 0
      %v1432 = vsel %vm265, %v1395, 0
      %v1435 = vsel %vm265, %v1396, 0
      %v1438 = vsel %vm265, %v1397, 0
      %v1441 = vsel %vm265, %v1398, 0
      %v1444 = vsel %vm265, %v1399, 0
      %v1447 = vsel %vm265, %v1400, 0
      %v1450 = vsel %vm265, %v1401, 0
      %v1453 = vsel %vm265, %v1402, 0
      %v1456 = vsel %vm265, %v1403, 0
      %v1459 = vsel %vm265, %v1404, 0
      %v1462 = vsel %vm265, %v1405, 0
      %1464 = vmatpush.msra.mxu0 0.0
      %1465 = vmatpush.msra.mxu0 0.0
      %1466 = vmatpush.msra.mxu0 0.0
      %1467 = vmatpush.msra.mxu0 0.0
      %1468 = vmatpush.msra.mxu0 0.0
      %1469 = vmatpush.msra.mxu0 0.0
      %1470 = vmatpush.msra.mxu0 0.0
      %1471 = vmatpush.msra.mxu0 0.0
      %1472 = vmatpush.msra.mxu0 %v1413
      %1473 = vmatpush.msra.mxu0 %v1412
      %1474 = vmatpush.msra.mxu0 %v1411
      %1475 = vmatpush.msra.mxu0 %v1410
      %1476 = vmatpush.msra.mxu0 %v1409
      %1477 = vmatpush.msra.mxu0 %v1408
      %1478 = vmatpush.msra.mxu0 %v1407
      %1479 = vmatpush.msra.mxu0 %v1406
      %1480 = vmatmul.f32.gmra.mxu0 %v1417
      %v1481 = vpop.f32.mrf.mxu0
      %v1482 = vadd.f32 %v1415, %v1481
      %1483 = vmatmul.f32.gmra.mxu0 %v1420
      %v1484 = vpop.f32.mrf.mxu0
      %v1485 = vadd.f32 %v1415, %v1484
      %1486 = vmatmul.f32.gmra.mxu0 %v1423
      %v1487 = vpop.f32.mrf.mxu0
      %v1488 = vadd.f32 %v1415, %v1487
      %1489 = vmatmul.f32.gmra.mxu0 %v1426
      %v1490 = vpop.f32.mrf.mxu0
      %v1491 = vadd.f32 %v1415, %v1490
      %1492 = vmatmul.f32.gmra.mxu0 %v1429
      %v1493 = vpop.f32.mrf.mxu0
      %v1494 = vadd.f32 %v1415, %v1493
      %1495 = vmatmul.f32.gmra.mxu0 %v1432
      %v1496 = vpop.f32.mrf.mxu0
      %v1497 = vadd.f32 %v1415, %v1496
      %1498 = vmatmul.f32.gmra.mxu0 %v1435
      %v1499 = vpop.f32.mrf.mxu0
      %v1500 = vadd.f32 %v1415, %v1499
      %1501 = vmatmul.f32.gmra.mxu0 %v1438
      %v1502 = vpop.f32.mrf.mxu0
      %v1503 = vadd.f32 %v1415, %v1502
      %1504 = vmatmul.f32.gmra.mxu0 %v1441
      %v1505 = vpop.f32.mrf.mxu0
      %v1506 = vadd.f32 %v1415, %v1505
      %1507 = vmatmul.f32.gmra.mxu0 %v1444
      %v1508 = vpop.f32.mrf.mxu0
      %v1509 = vadd.f32 %v1415, %v1508
      %1510 = vmatmul.f32.gmra.mxu0 %v1447
      %v1511 = vpop.f32.mrf.mxu0
      %v1512 = vadd.f32 %v1415, %v1511
      %1513 = vmatmul.f32.gmra.mxu0 %v1450
      %v1514 = vpop.f32.mrf.mxu0
      %v1515 = vadd.f32 %v1415, %v1514
      %1516 = vmatmul.f32.gmra.mxu0 %v1453
      %v1517 = vpop.f32.mrf.mxu0
      %v1518 = vadd.f32 %v1415, %v1517
      %1519 = vmatmul.f32.gmra.mxu0 %v1456
      %v1520 = vpop.f32.mrf.mxu0
      %v1521 = vadd.f32 %v1415, %v1520
      %1522 = vmatmul.f32.gmra.mxu0 %v1459
      %v1523 = vpop.f32.mrf.mxu0
      %v1524 = vadd.f32 %v1415, %v1523
      %1525 = vmatmul.f32.gmra.mxu0 %v1462
      %v1526 = vpop.f32.mrf.mxu0
      %v1527 = vadd.f32 %v1415, %v1526
      %1528 = vdwg.mxu0
      %vm1529 = vcmp.ge.f32.partialorder %v1482, 0.0
      %vm1530 = vcmp.ge.f32.partialorder %v1485, 0.0
      %vm1531 = vcmp.ge.f32.partialorder %v1488, 0.0
      %vm1532 = vcmp.ge.f32.partialorder %v1491, 0.0
      %vm1533 = vcmp.ge.f32.partialorder %v1494, 0.0
      %vm1534 = vcmp.ge.f32.partialorder %v1497, 0.0
      %vm1535 = vcmp.ge.f32.partialorder %v1500, 0.0
      %vm1536 = vcmp.ge.f32.partialorder %v1503, 0.0
      %vm1537 = vcmp.ge.f32.partialorder %v1506, 0.0
      %vm1538 = vcmp.ge.f32.partialorder %v1509, 0.0
      %vm1539 = vcmp.ge.f32.partialorder %v1512, 0.0
      %vm1540 = vcmp.ge.f32.partialorder %v1515, 0.0
      %vm1541 = vcmp.ge.f32.partialorder %v1518, 0.0
      %vm1542 = vcmp.ge.f32.partialorder %v1521, 0.0
      %vm1543 = vcmp.ge.f32.partialorder %v1524, 0.0
      %vm1544 = vcmp.ge.f32.partialorder %v1527, 0.0
      %v1545 = vmul.f32 %v1482, 0.2
      %v1546 = vmul.f32 %v1485, 0.2
      %v1547 = vmul.f32 %v1488, 0.2
      %v1548 = vmul.f32 %v1491, 0.2
      %v1549 = vmul.f32 %v1494, 0.2
      %v1550 = vmul.f32 %v1497, 0.2
      %v1551 = vmul.f32 %v1500, 0.2
      %v1552 = vmul.f32 %v1503, 0.2
      %v1553 = vmul.f32 %v1506, 0.2
      %v1554 = vmul.f32 %v1509, 0.2
      %v1555 = vmul.f32 %v1512, 0.2
      %v1556 = vmul.f32 %v1515, 0.2
      %v1557 = vmul.f32 %v1518, 0.2
      %v1558 = vmul.f32 %v1521, 0.2
      %v1559 = vmul.f32 %v1524, 0.2
      %v1560 = vmul.f32 %v1527, 0.2
      %v1561 = vsel %vm1529, %v1482, %v1545
      %v1562 = vsel %vm1530, %v1485, %v1546
      %v1563 = vsel %vm1531, %v1488, %v1547
      %v1564 = vsel %vm1532, %v1491, %v1548
      %v1565 = vsel %vm1533, %v1494, %v1549
      %v1566 = vsel %vm1534, %v1497, %v1550
      %v1567 = vsel %vm1535, %v1500, %v1551
      %v1568 = vsel %vm1536, %v1503, %v1552
      %v1569 = vsel %vm1537, %v1506, %v1553
      %v1570 = vsel %vm1538, %v1509, %v1554
      %v1571 = vsel %vm1539, %v1512, %v1555
      %v1572 = vsel %vm1540, %v1515, %v1556
      %v1573 = vsel %vm1541, %v1518, %v1557
      %v1574 = vsel %vm1542, %v1521, %v1558
      %v1575 = vsel %vm1543, %v1524, %v1559
      %v1576 = vsel %vm1544, %v1527, %v1560
      %v1577 = vld [vmem:[%s2 + $0xc0] sm:$0xff]
      %v1578 = vld [vmem:[%s3 + $0x7] sm:$0x1]
      %v1579 = vperm.slane %v1578, 0
      %vm1580 = vcmask 64512
      %v1582 = vsel %vm1580, %v1561, 0
      %v1585 = vsel %vm1580, %v1562, 0
      %v1588 = vsel %vm1580, %v1563, 0
      %v1591 = vsel %vm1580, %v1564, 0
      %v1594 = vsel %vm1580, %v1565, 0
      %v1597 = vsel %vm1580, %v1566, 0
      %v1600 = vsel %vm1580, %v1567, 0
      %v1603 = vsel %vm1580, %v1568, 0
      %v1606 = vsel %vm1580, %v1569, 0
      %v1609 = vsel %vm1580, %v1570, 0
      %v1612 = vsel %vm1580, %v1571, 0
      %v1615 = vsel %vm1580, %v1572, 0
      %v1618 = vsel %vm1580, %v1573, 0
      %v1621 = vsel %vm1580, %v1574, 0
      %v1624 = vsel %vm1580, %v1575, 0
      %v1627 = vsel %vm1580, %v1576, 0
      %1629 = vmatpush.msra.mxu0 0.0
      %1630 = vmatpush.msra.mxu0 0.0
      %1631 = vmatpush.msra.mxu0 0.0
      %1632 = vmatpush.msra.mxu0 0.0
      %1633 = vmatpush.msra.mxu0 0.0
      %1634 = vmatpush.msra.mxu0 0.0
      %1635 = vmatpush.msra.mxu0 0.0
      %1636 = vmatpush.msra.mxu0 0.0
      %1637 = vmatpush.msra.mxu0 0.0
      %1638 = vmatpush.msra.mxu0 0.0
      %1639 = vmatpush.msra.mxu0 0.0
      %1640 = vmatpush.msra.mxu0 0.0
      %1641 = vmatpush.msra.mxu0 0.0
      %1642 = vmatpush.msra.mxu0 0.0
      %1643 = vmatpush.msra.mxu0 0.0
      %1644 = vmatpush.msra.mxu0 %v1577
      %1645 = vmatmul.f32.gmra.mxu0 %v1582
      %v1646 = vpop.f32.mrf.mxu0
      %v1647 = vadd.f32 %v1579, %v1646
      %1648 = vmatmul.f32.gmra.mxu0 %v1585
      %v1649 = vpop.f32.mrf.mxu0
      %v1650 = vadd.f32 %v1579, %v1649
      %1651 = vmatmul.f32.gmra.mxu0 %v1588
      %v1652 = vpop.f32.mrf.mxu0
      %v1653 = vadd.f32 %v1579, %v1652
      %1654 = vmatmul.f32.gmra.mxu0 %v1591
      %v1655 = vpop.f32.mrf.mxu0
      %v1656 = vadd.f32 %v1579, %v1655
      %1657 = vmatmul.f32.gmra.mxu0 %v1594
      %v1658 = vpop.f32.mrf.mxu0
      %v1659 = vadd.f32 %v1579, %v1658
      %1660 = vmatmul.f32.gmra.mxu0 %v1597
      %v1661 = vpop.f32.mrf.mxu0
      %v1662 = vadd.f32 %v1579, %v1661
      %1663 = vmatmul.f32.gmra.mxu0 %v1600
      %v1664 = vpop.f32.mrf.mxu0
      %v1665 = vadd.f32 %v1579, %v1664
      %1666 = vmatmul.f32.gmra.mxu0 %v1603
      %v1667 = vpop.f32.mrf.mxu0
      %v1668 = vadd.f32 %v1579, %v1667
      %1669 = vmatmul.f32.gmra.mxu0 %v1606
      %v1670 = vpop.f32.mrf.mxu0
      %v1671 = vadd.f32 %v1579, %v1670
      %1672 = vmatmul.f32.gmra.mxu0 %v1609
      %v1673 = vpop.f32.mrf.mxu0
      %v1674 = vadd.f32 %v1579, %v1673
      %1675 = vmatmul.f32.gmra.mxu0 %v1612
      %v1676 = vpop.f32.mrf.mxu0
      %v1677 = vadd.f32 %v1579, %v1676
      %1678 = vmatmul.f32.gmra.mxu0 %v1615
      %v1679 = vpop.f32.mrf.mxu0
      %v1680 = vadd.f32 %v1579, %v1679
      %1681 = vmatmul.f32.gmra.mxu0 %v1618
      %v1682 = vpop.f32.mrf.mxu0
      %v1683 = vadd.f32 %v1579, %v1682
      %1684 = vmatmul.f32.gmra.mxu0 %v1621
      %v1685 = vpop.f32.mrf.mxu0
      %v1686 = vadd.f32 %v1579, %v1685
      %1687 = vmatmul.f32.gmra.mxu0 %v1624
      %v1688 = vpop.f32.mrf.mxu0
      %v1689 = vadd.f32 %v1579, %v1688
      %1690 = vmatmul.f32.gmra.mxu0 %v1627
      %v1691 = vpop.f32.mrf.mxu0
      %v1692 = vadd.f32 %v1579, %v1691
      %1693 = vdwg.mxu0
      %v1694 = vsub.f32 0.0, %v1647
      %v1695 = vsub.f32 0.0, %v1650
      %v1696 = vsub.f32 0.0, %v1653
      %v1697 = vsub.f32 0.0, %v1656
      %v1698 = vsub.f32 0.0, %v1659
      %v1699 = vsub.f32 0.0, %v1662
      %v1700 = vsub.f32 0.0, %v1665
      %v1701 = vsub.f32 0.0, %v1668
      %v1702 = vsub.f32 0.0, %v1671
      %v1703 = vsub.f32 0.0, %v1674
      %v1704 = vsub.f32 0.0, %v1677
      %v1705 = vsub.f32 0.0, %v1680
      %v1706 = vsub.f32 0.0, %v1683
      %v1707 = vsub.f32 0.0, %v1686
      %v1708 = vsub.f32 0.0, %v1689
      %v1709 = vsub.f32 0.0, %v1692
      %v1710 = vmul.f32 %v1694, 1.442695
      %v1711 = vpow.pop %v1710
      %v1712 = vmul.f32 %v1695, 1.442695
      %v1713 = vpow.pop %v1712
      %v1714 = vmul.f32 %v1696, 1.442695
      %v1715 = vpow.pop %v1714
      %v1716 = vmul.f32 %v1697, 1.442695
      %v1717 = vpow.pop %v1716
      %v1718 = vmul.f32 %v1698, 1.442695
      %v1719 = vpow.pop %v1718
      %v1720 = vmul.f32 %v1699, 1.442695
      %v1721 = vpow.pop %v1720
      %v1722 = vmul.f32 %v1700, 1.442695
      %v1723 = vpow.pop %v1722
      %v1724 = vmul.f32 %v1701, 1.442695
      %v1725 = vpow.pop %v1724
      %v1726 = vmul.f32 %v1702, 1.442695
      %v1727 = vpow.pop %v1726
      %v1728 = vmul.f32 %v1703, 1.442695
      %v1729 = vpow.pop %v1728
      %v1730 = vmul.f32 %v1704, 1.442695
      %v1731 = vpow.pop %v1730
      %v1732 = vmul.f32 %v1705, 1.442695
      %v1733 = vpow.pop %v1732
      %v1734 = vmul.f32 %v1706, 1.442695
      %v1735 = vpow.pop %v1734
      %v1736 = vmul.f32 %v1707, 1.442695
      %v1737 = vpow.pop %v1736
      %v1738 = vmul.f32 %v1708, 1.442695
      %v1739 = vpow.pop %v1738
      %v1740 = vmul.f32 %v1709, 1.442695
      %v1741 = vpow.pop %v1740
      %v1742 = vadd.f32 %v1711, 1.0
      %v1743 = vadd.f32 %v1713, 1.0
      %v1744 = vadd.f32 %v1715, 1.0
      %v1745 = vadd.f32 %v1717, 1.0
      %v1746 = vadd.f32 %v1719, 1.0
      %v1747 = vadd.f32 %v1721, 1.0
      %v1748 = vadd.f32 %v1723, 1.0
      %v1749 = vadd.f32 %v1725, 1.0
      %v1750 = vadd.f32 %v1727, 1.0
      %v1751 = vadd.f32 %v1729, 1.0
      %v1752 = vadd.f32 %v1731, 1.0
      %v1753 = vadd.f32 %v1733, 1.0
      %v1754 = vadd.f32 %v1735, 1.0
      %v1755 = vadd.f32 %v1737, 1.0
      %v1756 = vadd.f32 %v1739, 1.0
      %v1757 = vadd.f32 %v1741, 1.0
      %v1758 = vrcp.pop %v1742
      %v1759 = vrcp.pop %v1743
      %v1760 = vrcp.pop %v1744
      %v1761 = vrcp.pop %v1745
      %v1762 = vrcp.pop %v1746
      %v1763 = vrcp.pop %v1747
      %v1764 = vrcp.pop %v1748
      %v1765 = vrcp.pop %v1749
      %v1766 = vrcp.pop %v1750
      %v1767 = vrcp.pop %v1751
      %v1768 = vrcp.pop %v1752
      %v1769 = vrcp.pop %v1753
      %v1770 = vrcp.pop %v1754
      %v1771 = vrcp.pop %v1755
      %v1772 = vrcp.pop %v1756
      %v1773 = vrcp.pop %v1757
      %v1774 = vmul.f32 %v1390, %v1758
      %v1775 = vmul.f32 %v1391, %v1759
      %v1776 = vmul.f32 %v1392, %v1760
      %v1777 = vmul.f32 %v1393, %v1761
      %v1778 = vmul.f32 %v1394, %v1762
      %v1779 = vmul.f32 %v1395, %v1763
      %v1780 = vmul.f32 %v1396, %v1764
      %v1781 = vmul.f32 %v1397, %v1765
      %v1782 = vmul.f32 %v1398, %v1766
      %v1783 = vmul.f32 %v1399, %v1767
      %v1784 = vmul.f32 %v1400, %v1768
      %v1785 = vmul.f32 %v1401, %v1769
      %v1786 = vmul.f32 %v1402, %v1770
      %v1787 = vmul.f32 %v1403, %v1771
      %v1788 = vmul.f32 %v1404, %v1772
      %v1789 = vmul.f32 %v1405, %v1773
      %v1790 = vld [vmem:[%s2 + $0xc8] sm:$0xff]
      %v1791 = vld [vmem:[%s2 + $0xd0] sm:$0xff]
      %v1792 = vld [vmem:[%s2 + $0xd8] sm:$0xff]
      %v1793 = vld [vmem:[%s2 + $0xe0] sm:$0xff]
      %v1794 = vld [vmem:[%s2 + $0xe8] sm:$0xff]
      %v1795 = vld [vmem:[%s2 + $0xf0] sm:$0xff]
      %v1796 = vld [vmem:[%s2 + $0xf8] sm:$0xff]
      %v1797 = vld [vmem:[%s2 + $0x100] sm:$0xff]
      %v1798 = vld [vmem:[%s3 + $0x8] sm:$0x1]
      %v1799 = vperm.slane %v1798, 0
      %v1801 = vsel %vm265, %v1774, 0
      %v1804 = vsel %vm265, %v1775, 0
      %v1807 = vsel %vm265, %v1776, 0
      %v1810 = vsel %vm265, %v1777, 0
      %v1813 = vsel %vm265, %v1778, 0
      %v1816 = vsel %vm265, %v1779, 0
      %v1819 = vsel %vm265, %v1780, 0
      %v1822 = vsel %vm265, %v1781, 0
      %v1825 = vsel %vm265, %v1782, 0
      %v1828 = vsel %vm265, %v1783, 0
      %v1831 = vsel %vm265, %v1784, 0
      %v1834 = vsel %vm265, %v1785, 0
      %v1837 = vsel %vm265, %v1786, 0
      %v1840 = vsel %vm265, %v1787, 0
      %v1843 = vsel %vm265, %v1788, 0
      %v1846 = vsel %vm265, %v1789, 0
      %1848 = vmatpush.msra.mxu0 0.0
      %1849 = vmatpush.msra.mxu0 0.0
      %1850 = vmatpush.msra.mxu0 0.0
      %1851 = vmatpush.msra.mxu0 0.0
      %1852 = vmatpush.msra.mxu0 0.0
      %1853 = vmatpush.msra.mxu0 0.0
      %1854 = vmatpush.msra.mxu0 0.0
      %1855 = vmatpush.msra.mxu0 0.0
      %1856 = vmatpush.msra.mxu0 %v1797
      %1857 = vmatpush.msra.mxu0 %v1796
      %1858 = vmatpush.msra.mxu0 %v1795
      %1859 = vmatpush.msra.mxu0 %v1794
      %1860 = vmatpush.msra.mxu0 %v1793
      %1861 = vmatpush.msra.mxu0 %v1792
      %1862 = vmatpush.msra.mxu0 %v1791
      %1863 = vmatpush.msra.mxu0 %v1790
      %1864 = vmatmul.f32.gmra.mxu0 %v1801
      %v1865 = vpop.f32.mrf.mxu0
      %v1866 = vadd.f32 %v1799, %v1865
      %1867 = vmatmul.f32.gmra.mxu0 %v1804
      %v1868 = vpop.f32.mrf.mxu0
      %v1869 = vadd.f32 %v1799, %v1868
      %1870 = vmatmul.f32.gmra.mxu0 %v1807
      %v1871 = vpop.f32.mrf.mxu0
      %v1872 = vadd.f32 %v1799, %v1871
      %1873 = vmatmul.f32.gmra.mxu0 %v1810
      %v1874 = vpop.f32.mrf.mxu0
      %v1875 = vadd.f32 %v1799, %v1874
      %1876 = vmatmul.f32.gmra.mxu0 %v1813
      %v1877 = vpop.f32.mrf.mxu0
      %v1878 = vadd.f32 %v1799, %v1877
      %1879 = vmatmul.f32.gmra.mxu0 %v1816
      %v1880 = vpop.f32.mrf.mxu0
      %v1881 = vadd.f32 %v1799, %v1880
      %1882 = vmatmul.f32.gmra.mxu0 %v1819
      %v1883 = vpop.f32.mrf.mxu0
      %v1884 = vadd.f32 %v1799, %v1883
      %1885 = vmatmul.f32.gmra.mxu0 %v1822
      %v1886 = vpop.f32.mrf.mxu0
      %v1887 = vadd.f32 %v1799, %v1886
      %1888 = vmatmul.f32.gmra.mxu0 %v1825
      %v1889 = vpop.f32.mrf.mxu0
      %v1890 = vadd.f32 %v1799, %v1889
      %1891 = vmatmul.f32.gmra.mxu0 %v1828
      %v1892 = vpop.f32.mrf.mxu0
      %v1893 = vadd.f32 %v1799, %v1892
      %1894 = vmatmul.f32.gmra.mxu0 %v1831
      %v1895 = vpop.f32.mrf.mxu0
      %v1896 = vadd.f32 %v1799, %v1895
      %1897 = vmatmul.f32.gmra.mxu0 %v1834
      %v1898 = vpop.f32.mrf.mxu0
      %v1899 = vadd.f32 %v1799, %v1898
      %1900 = vmatmul.f32.gmra.mxu0 %v1837
      %v1901 = vpop.f32.mrf.mxu0
      %v1902 = vadd.f32 %v1799, %v1901
      %1903 = vmatmul.f32.gmra.mxu0 %v1840
      %v1904 = vpop.f32.mrf.mxu0
      %v1905 = vadd.f32 %v1799, %v1904
      %1906 = vmatmul.f32.gmra.mxu0 %v1843
      %v1907 = vpop.f32.mrf.mxu0
      %v1908 = vadd.f32 %v1799, %v1907
      %1909 = vmatmul.f32.gmra.mxu0 %v1846
      %v1910 = vpop.f32.mrf.mxu0
      %v1911 = vadd.f32 %v1799, %v1910
      %1912 = vdwg.mxu0
      %v1913 = vld [vmem:[%s3 + $0x9] sm:$0x1]
      %v1914 = vld [vmem:[%s3 + $0xa] sm:$0x1]
      %vm1915 = vcmask 261120
      %v1916 = vsel %vm1915, %v1866, 0.0
      %1917 = vadd.xlane.f32.xlu0 %v1916
      %v1918 = vpop.xlane.xlu0 %1917
      %v1919 = vsel %vm1915, %v1869, 0.0
      %1920 = vadd.xlane.f32.xlu0 %v1919
      %v1921 = vpop.xlane.xlu0 %1920
      %v1922 = vsel %vm1915, %v1872, 0.0
      %1923 = vadd.xlane.f32.xlu0 %v1922
      %v1924 = vpop.xlane.xlu0 %1923
      %v1925 = vsel %vm1915, %v1875, 0.0
      %1926 = vadd.xlane.f32.xlu0 %v1925
      %v1927 = vpop.xlane.xlu0 %1926
      %v1928 = vsel %vm1915, %v1878, 0.0
      %1929 = vadd.xlane.f32.xlu0 %v1928
      %v1930 = vpop.xlane.xlu0 %1929
      %v1931 = vsel %vm1915, %v1881, 0.0
      %1932 = vadd.xlane.f32.xlu0 %v1931
      %v1933 = vpop.xlane.xlu0 %1932
      %v1934 = vsel %vm1915, %v1884, 0.0
      %1935 = vadd.xlane.f32.xlu0 %v1934
      %v1936 = vpop.xlane.xlu0 %1935
      %v1937 = vsel %vm1915, %v1887, 0.0
      %1938 = vadd.xlane.f32.xlu0 %v1937
      %v1939 = vpop.xlane.xlu0 %1938
      %v1940 = vsel %vm1915, %v1890, 0.0
      %1941 = vadd.xlane.f32.xlu0 %v1940
      %v1942 = vpop.xlane.xlu0 %1941
      %v1943 = vsel %vm1915, %v1893, 0.0
      %1944 = vadd.xlane.f32.xlu0 %v1943
      %v1945 = vpop.xlane.xlu0 %1944
      %v1946 = vsel %vm1915, %v1896, 0.0
      %1947 = vadd.xlane.f32.xlu0 %v1946
      %v1948 = vpop.xlane.xlu0 %1947
      %v1949 = vsel %vm1915, %v1899, 0.0
      %1950 = vadd.xlane.f32.xlu0 %v1949
      %v1951 = vpop.xlane.xlu0 %1950
      %v1952 = vsel %vm1915, %v1902, 0.0
      %1953 = vadd.xlane.f32.xlu0 %v1952
      %v1954 = vpop.xlane.xlu0 %1953
      %v1955 = vsel %vm1915, %v1905, 0.0
      %1956 = vadd.xlane.f32.xlu0 %v1955
      %v1957 = vpop.xlane.xlu0 %1956
      %v1958 = vsel %vm1915, %v1908, 0.0
      %1959 = vadd.xlane.f32.xlu0 %v1958
      %v1960 = vpop.xlane.xlu0 %1959
      %v1961 = vsel %vm1915, %v1911, 0.0
      %1962 = vadd.xlane.f32.xlu0 %v1961
      %v1963 = vpop.xlane.xlu0 %1962
      %v1964 = vmul.f32 %v1866, %v1866
      %v1965 = vmul.f32 %v1869, %v1869
      %v1966 = vmul.f32 %v1872, %v1872
      %v1967 = vmul.f32 %v1875, %v1875
      %v1968 = vmul.f32 %v1878, %v1878
      %v1969 = vmul.f32 %v1881, %v1881
      %v1970 = vmul.f32 %v1884, %v1884
      %v1971 = vmul.f32 %v1887, %v1887
      %v1972 = vmul.f32 %v1890, %v1890
      %v1973 = vmul.f32 %v1893, %v1893
      %v1974 = vmul.f32 %v1896, %v1896
      %v1975 = vmul.f32 %v1899, %v1899
      %v1976 = vmul.f32 %v1902, %v1902
      %v1977 = vmul.f32 %v1905, %v1905
      %v1978 = vmul.f32 %v1908, %v1908
      %v1979 = vmul.f32 %v1911, %v1911
      %v1980 = vsel %vm1915, %v1964, 0.0
      %1981 = vadd.xlane.f32.xlu0 %v1980
      %v1982 = vpop.xlane.xlu0 %1981
      %v1983 = vsel %vm1915, %v1965, 0.0
      %1984 = vadd.xlane.f32.xlu0 %v1983
      %v1985 = vpop.xlane.xlu0 %1984
      %v1986 = vsel %vm1915, %v1966, 0.0
      %1987 = vadd.xlane.f32.xlu0 %v1986
      %v1988 = vpop.xlane.xlu0 %1987
      %v1989 = vsel %vm1915, %v1967, 0.0
      %1990 = vadd.xlane.f32.xlu0 %v1989
      %v1991 = vpop.xlane.xlu0 %1990
      %v1992 = vsel %vm1915, %v1968, 0.0
      %1993 = vadd.xlane.f32.xlu0 %v1992
      %v1994 = vpop.xlane.xlu0 %1993
      %v1995 = vsel %vm1915, %v1969, 0.0
      %1996 = vadd.xlane.f32.xlu0 %v1995
      %v1997 = vpop.xlane.xlu0 %1996
      %v1998 = vsel %vm1915, %v1970, 0.0
      %1999 = vadd.xlane.f32.xlu0 %v1998
      %v2000 = vpop.xlane.xlu0 %1999
      %v2001 = vsel %vm1915, %v1971, 0.0
      %2002 = vadd.xlane.f32.xlu0 %v2001
      %v2003 = vpop.xlane.xlu0 %2002
      %v2004 = vsel %vm1915, %v1972, 0.0
      %2005 = vadd.xlane.f32.xlu0 %v2004
      %v2006 = vpop.xlane.xlu0 %2005
      %v2007 = vsel %vm1915, %v1973, 0.0
      %2008 = vadd.xlane.f32.xlu0 %v2007
      %v2009 = vpop.xlane.xlu0 %2008
      %v2010 = vsel %vm1915, %v1974, 0.0
      %2011 = vadd.xlane.f32.xlu0 %v2010
      %v2012 = vpop.xlane.xlu0 %2011
      %v2013 = vsel %vm1915, %v1975, 0.0
      %2014 = vadd.xlane.f32.xlu0 %v2013
      %v2015 = vpop.xlane.xlu0 %2014
      %v2016 = vsel %vm1915, %v1976, 0.0
      %2017 = vadd.xlane.f32.xlu0 %v2016
      %v2018 = vpop.xlane.xlu0 %2017
      %v2019 = vsel %vm1915, %v1977, 0.0
      %2020 = vadd.xlane.f32.xlu0 %v2019
      %v2021 = vpop.xlane.xlu0 %2020
      %v2022 = vsel %vm1915, %v1978, 0.0
      %2023 = vadd.xlane.f32.xlu0 %v2022
      %v2024 = vpop.xlane.xlu0 %2023
      %v2025 = vsel %vm1915, %v1979, 0.0
      %2026 = vadd.xlane.f32.xlu0 %v2025
      %v2027 = vpop.xlane.xlu0 %2026
      %v2028 = vmul.f32 %v1918, 0.03125
      %v2029 = vmul.f32 %v1921, 0.03125
      %v2030 = vmul.f32 %v1924, 0.03125
      %v2031 = vmul.f32 %v1927, 0.03125
      %v2032 = vmul.f32 %v1930, 0.03125
      %v2033 = vmul.f32 %v1933, 0.03125
      %v2034 = vmul.f32 %v1936, 0.03125
      %v2035 = vmul.f32 %v1939, 0.03125
      %v2036 = vmul.f32 %v1942, 0.03125
      %v2037 = vmul.f32 %v1945, 0.03125
      %v2038 = vmul.f32 %v1948, 0.03125
      %v2039 = vmul.f32 %v1951, 0.03125
      %v2040 = vmul.f32 %v1954, 0.03125
      %v2041 = vmul.f32 %v1957, 0.03125
      %v2042 = vmul.f32 %v1960, 0.03125
      %v2043 = vmul.f32 %v1963, 0.03125
      %v2044 = vmul.f32 %v1982, 0.03125
      %v2045 = vmul.f32 %v1985, 0.03125
      %v2046 = vmul.f32 %v1988, 0.03125
      %v2047 = vmul.f32 %v1991, 0.03125
      %v2048 = vmul.f32 %v1994, 0.03125
      %v2049 = vmul.f32 %v1997, 0.03125
      %v2050 = vmul.f32 %v2000, 0.03125
      %v2051 = vmul.f32 %v2003, 0.03125
      %v2052 = vmul.f32 %v2006, 0.03125
      %v2053 = vmul.f32 %v2009, 0.03125
      %v2054 = vmul.f32 %v2012, 0.03125
      %v2055 = vmul.f32 %v2015, 0.03125
      %v2056 = vmul.f32 %v2018, 0.03125
      %v2057 = vmul.f32 %v2021, 0.03125
      %v2058 = vmul.f32 %v2024, 0.03125
      %v2059 = vmul.f32 %v2027, 0.03125
      %v2060 = vmul.f32 %v2028, %v2028
      %v2061 = vmul.f32 %v2029, %v2029
      %v2062 = vmul.f32 %v2030, %v2030
      %v2063 = vmul.f32 %v2031, %v2031
      %v2064 = vmul.f32 %v2032, %v2032
      %v2065 = vmul.f32 %v2033, %v2033
      %v2066 = vmul.f32 %v2034, %v2034
      %v2067 = vmul.f32 %v2035, %v2035
      %v2068 = vmul.f32 %v2036, %v2036
      %v2069 = vmul.f32 %v2037, %v2037
      %v2070 = vmul.f32 %v2038, %v2038
      %v2071 = vmul.f32 %v2039, %v2039
      %v2072 = vmul.f32 %v2040, %v2040
      %v2073 = vmul.f32 %v2041, %v2041
      %v2074 = vmul.f32 %v2042, %v2042
      %v2075 = vmul.f32 %v2043, %v2043
      %v2076 = vsub.f32 %v2044, %v2060
      %v2077 = vsub.f32 %v2045, %v2061
      %v2078 = vsub.f32 %v2046, %v2062
      %v2079 = vsub.f32 %v2047, %v2063
      %v2080 = vsub.f32 %v2048, %v2064
      %v2081 = vsub.f32 %v2049, %v2065
      %v2082 = vsub.f32 %v2050, %v2066
      %v2083 = vsub.f32 %v2051, %v2067
      %v2084 = vsub.f32 %v2052, %v2068
      %v2085 = vsub.f32 %v2053, %v2069
      %v2086 = vsub.f32 %v2054, %v2070
      %v2087 = vsub.f32 %v2055, %v2071
      %v2088 = vsub.f32 %v2056, %v2072
      %v2089 = vsub.f32 %v2057, %v2073
      %v2090 = vsub.f32 %v2058, %v2074
      %v2091 = vsub.f32 %v2059, %v2075
      %v2092 = vsub.f32 %v1866, %v2028
      %v2093 = vsub.f32 %v1869, %v2029
      %v2094 = vsub.f32 %v1872, %v2030
      %v2095 = vsub.f32 %v1875, %v2031
      %v2096 = vsub.f32 %v1878, %v2032
      %v2097 = vsub.f32 %v1881, %v2033
      %v2098 = vsub.f32 %v1884, %v2034
      %v2099 = vsub.f32 %v1887, %v2035
      %v2100 = vsub.f32 %v1890, %v2036
      %v2101 = vsub.f32 %v1893, %v2037
      %v2102 = vsub.f32 %v1896, %v2038
      %v2103 = vsub.f32 %v1899, %v2039
      %v2104 = vsub.f32 %v1902, %v2040
      %v2105 = vsub.f32 %v1905, %v2041
      %v2106 = vsub.f32 %v1908, %v2042
      %v2107 = vsub.f32 %v1911, %v2043
      %v2108 = vadd.f32 %v2076, 1e-05
      %v2109 = vadd.f32 %v2077, 1e-05
      %v2110 = vadd.f32 %v2078, 1e-05
      %v2111 = vadd.f32 %v2079, 1e-05
      %v2112 = vadd.f32 %v2080, 1e-05
      %v2113 = vadd.f32 %v2081, 1e-05
      %v2114 = vadd.f32 %v2082, 1e-05
      %v2115 = vadd.f32 %v2083, 1e-05
      %v2116 = vadd.f32 %v2084, 1e-05
      %v2117 = vadd.f32 %v2085, 1e-05
      %v2118 = vadd.f32 %v2086, 1e-05
      %v2119 = vadd.f32 %v2087, 1e-05
      %v2120 = vadd.f32 %v2088, 1e-05
      %v2121 = vadd.f32 %v2089, 1e-05
      %v2122 = vadd.f32 %v2090, 1e-05
      %v2123 = vadd.f32 %v2091, 1e-05
      %v2124 = vrsqrt.pop %v2108
      %v2125 = vmul.f32 %v2124, %v2108
      %v2126 = vmul.f32 %v2125, %v2124
      %v2127 = vmul.f32 0.5, %v2126
      %v2128 = vsub.f32 1.5, %v2127
      %v2129 = vmul.f32 %v2124, %v2128
      %vm2130 = vweird.f32 %v2108
      %vm2131 = vweird.f32 %v2124
      %vm2132 = vmor %vm2130, %vm2131
      %v2133 = vsel %vm2132, %v2124, %v2129
      %v2134 = vrsqrt.pop %v2109
      %v2135 = vmul.f32 %v2134, %v2109
      %v2136 = vmul.f32 %v2135, %v2134
      %v2137 = vmul.f32 0.5, %v2136
      %v2138 = vsub.f32 1.5, %v2137
      %v2139 = vmul.f32 %v2134, %v2138
      %vm2140 = vweird.f32 %v2109
      %vm2141 = vweird.f32 %v2134
      %vm2142 = vmor %vm2140, %vm2141
      %v2143 = vsel %vm2142, %v2134, %v2139
      %v2144 = vrsqrt.pop %v2110
      %v2145 = vmul.f32 %v2144, %v2110
      %v2146 = vmul.f32 %v2145, %v2144
      %v2147 = vmul.f32 0.5, %v2146
      %v2148 = vsub.f32 1.5, %v2147
      %v2149 = vmul.f32 %v2144, %v2148
      %vm2150 = vweird.f32 %v2110
      %vm2151 = vweird.f32 %v2144
      %vm2152 = vmor %vm2150, %vm2151
      %v2153 = vsel %vm2152, %v2144, %v2149
      %v2154 = vrsqrt.pop %v2111
      %v2155 = vmul.f32 %v2154, %v2111
      %v2156 = vmul.f32 %v2155, %v2154
      %v2157 = vmul.f32 0.5, %v2156
      %v2158 = vsub.f32 1.5, %v2157
      %v2159 = vmul.f32 %v2154, %v2158
      %vm2160 = vweird.f32 %v2111
      %vm2161 = vweird.f32 %v2154
      %vm2162 = vmor %vm2160, %vm2161
      %v2163 = vsel %vm2162, %v2154, %v2159
      %v2164 = vrsqrt.pop %v2112
      %v2165 = vmul.f32 %v2164, %v2112
      %v2166 = vmul.f32 %v2165, %v2164
      %v2167 = vmul.f32 0.5, %v2166
      %v2168 = vsub.f32 1.5, %v2167
      %v2169 = vmul.f32 %v2164, %v2168
      %vm2170 = vweird.f32 %v2112
      %vm2171 = vweird.f32 %v2164
      %vm2172 = vmor %vm2170, %vm2171
      %v2173 = vsel %vm2172, %v2164, %v2169
      %v2174 = vrsqrt.pop %v2113
      %v2175 = vmul.f32 %v2174, %v2113
      %v2176 = vmul.f32 %v2175, %v2174
      %v2177 = vmul.f32 0.5, %v2176
      %v2178 = vsub.f32 1.5, %v2177
      %v2179 = vmul.f32 %v2174, %v2178
      %vm2180 = vweird.f32 %v2113
      %vm2181 = vweird.f32 %v2174
      %vm2182 = vmor %vm2180, %vm2181
      %v2183 = vsel %vm2182, %v2174, %v2179
      %v2184 = vrsqrt.pop %v2114
      %v2185 = vmul.f32 %v2184, %v2114
      %v2186 = vmul.f32 %v2185, %v2184
      %v2187 = vmul.f32 0.5, %v2186
      %v2188 = vsub.f32 1.5, %v2187
      %v2189 = vmul.f32 %v2184, %v2188
      %vm2190 = vweird.f32 %v2114
      %vm2191 = vweird.f32 %v2184
      %vm2192 = vmor %vm2190, %vm2191
      %v2193 = vsel %vm2192, %v2184, %v2189
      %v2194 = vrsqrt.pop %v2115
      %v2195 = vmul.f32 %v2194, %v2115
      %v2196 = vmul.f32 %v2195, %v2194
      %v2197 = vmul.f32 0.5, %v2196
      %v2198 = vsub.f32 1.5, %v2197
      %v2199 = vmul.f32 %v2194, %v2198
      %vm2200 = vweird.f32 %v2115
      %vm2201 = vweird.f32 %v2194
      %vm2202 = vmor %vm2200, %vm2201
      %v2203 = vsel %vm2202, %v2194, %v2199
      %v2204 = vrsqrt.pop %v2116
      %v2205 = vmul.f32 %v2204, %v2116
      %v2206 = vmul.f32 %v2205, %v2204
      %v2207 = vmul.f32 0.5, %v2206
      %v2208 = vsub.f32 1.5, %v2207
      %v2209 = vmul.f32 %v2204, %v2208
      %vm2210 = vweird.f32 %v2116
      %vm2211 = vweird.f32 %v2204
      %vm2212 = vmor %vm2210, %vm2211
      %v2213 = vsel %vm2212, %v2204, %v2209
      %v2214 = vrsqrt.pop %v2117
      %v2215 = vmul.f32 %v2214, %v2117
      %v2216 = vmul.f32 %v2215, %v2214
      %v2217 = vmul.f32 0.5, %v2216
      %v2218 = vsub.f32 1.5, %v2217
      %v2219 = vmul.f32 %v2214, %v2218
      %vm2220 = vweird.f32 %v2117
      %vm2221 = vweird.f32 %v2214
      %vm2222 = vmor %vm2220, %vm2221
      %v2223 = vsel %vm2222, %v2214, %v2219
      %v2224 = vrsqrt.pop %v2118
      %v2225 = vmul.f32 %v2224, %v2118
      %v2226 = vmul.f32 %v2225, %v2224
      %v2227 = vmul.f32 0.5, %v2226
      %v2228 = vsub.f32 1.5, %v2227
      %v2229 = vmul.f32 %v2224, %v2228
      %vm2230 = vweird.f32 %v2118
      %vm2231 = vweird.f32 %v2224
      %vm2232 = vmor %vm2230, %vm2231
      %v2233 = vsel %vm2232, %v2224, %v2229
      %v2234 = vrsqrt.pop %v2119
      %v2235 = vmul.f32 %v2234, %v2119
      %v2236 = vmul.f32 %v2235, %v2234
      %v2237 = vmul.f32 0.5, %v2236
      %v2238 = vsub.f32 1.5, %v2237
      %v2239 = vmul.f32 %v2234, %v2238
      %vm2240 = vweird.f32 %v2119
      %vm2241 = vweird.f32 %v2234
      %vm2242 = vmor %vm2240, %vm2241
      %v2243 = vsel %vm2242, %v2234, %v2239
      %v2244 = vrsqrt.pop %v2120
      %v2245 = vmul.f32 %v2244, %v2120
      %v2246 = vmul.f32 %v2245, %v2244
      %v2247 = vmul.f32 0.5, %v2246
      %v2248 = vsub.f32 1.5, %v2247
      %v2249 = vmul.f32 %v2244, %v2248
      %vm2250 = vweird.f32 %v2120
      %vm2251 = vweird.f32 %v2244
      %vm2252 = vmor %vm2250, %vm2251
      %v2253 = vsel %vm2252, %v2244, %v2249
      %v2254 = vrsqrt.pop %v2121
      %v2255 = vmul.f32 %v2254, %v2121
      %v2256 = vmul.f32 %v2255, %v2254
      %v2257 = vmul.f32 0.5, %v2256
      %v2258 = vsub.f32 1.5, %v2257
      %v2259 = vmul.f32 %v2254, %v2258
      %vm2260 = vweird.f32 %v2121
      %vm2261 = vweird.f32 %v2254
      %vm2262 = vmor %vm2260, %vm2261
      %v2263 = vsel %vm2262, %v2254, %v2259
      %v2264 = vrsqrt.pop %v2122
      %v2265 = vmul.f32 %v2264, %v2122
      %v2266 = vmul.f32 %v2265, %v2264
      %v2267 = vmul.f32 0.5, %v2266
      %v2268 = vsub.f32 1.5, %v2267
      %v2269 = vmul.f32 %v2264, %v2268
      %vm2270 = vweird.f32 %v2122
      %vm2271 = vweird.f32 %v2264
      %vm2272 = vmor %vm2270, %vm2271
      %v2273 = vsel %vm2272, %v2264, %v2269
      %v2274 = vrsqrt.pop %v2123
      %v2275 = vmul.f32 %v2274, %v2123
      %v2276 = vmul.f32 %v2275, %v2274
      %v2277 = vmul.f32 0.5, %v2276
      %v2278 = vsub.f32 1.5, %v2277
      %v2279 = vmul.f32 %v2274, %v2278
      %vm2280 = vweird.f32 %v2123
      %vm2281 = vweird.f32 %v2274
      %vm2282 = vmor %vm2280, %vm2281
      %v2283 = vsel %vm2282, %v2274, %v2279
      %v2284 = vmul.f32 %v2092, %v2133
      %v2285 = vmul.f32 %v2093, %v2143
      %v2286 = vmul.f32 %v2094, %v2153
      %v2287 = vmul.f32 %v2095, %v2163
      %v2288 = vmul.f32 %v2096, %v2173
      %v2289 = vmul.f32 %v2097, %v2183
      %v2290 = vmul.f32 %v2098, %v2193
      %v2291 = vmul.f32 %v2099, %v2203
      %v2292 = vmul.f32 %v2100, %v2213
      %v2293 = vmul.f32 %v2101, %v2223
      %v2294 = vmul.f32 %v2102, %v2233
      %v2295 = vmul.f32 %v2103, %v2243
      %v2296 = vmul.f32 %v2104, %v2253
      %v2297 = vmul.f32 %v2105, %v2263
      %v2298 = vmul.f32 %v2106, %v2273
      %v2299 = vmul.f32 %v2107, %v2283
      %v2300 = vperm.slane %v1913, 0
      %v2301 = vmul.f32 %v2284, %v2300
      %v2302 = vmul.f32 %v2285, %v2300
      %v2303 = vmul.f32 %v2286, %v2300
      %v2304 = vmul.f32 %v2287, %v2300
      %v2305 = vmul.f32 %v2288, %v2300
      %v2306 = vmul.f32 %v2289, %v2300
      %v2307 = vmul.f32 %v2290, %v2300
      %v2308 = vmul.f32 %v2291, %v2300
      %v2309 = vmul.f32 %v2292, %v2300
      %v2310 = vmul.f32 %v2293, %v2300
      %v2311 = vmul.f32 %v2294, %v2300
      %v2312 = vmul.f32 %v2295, %v2300
      %v2313 = vmul.f32 %v2296, %v2300
      %v2314 = vmul.f32 %v2297, %v2300
      %v2315 = vmul.f32 %v2298, %v2300
      %v2316 = vmul.f32 %v2299, %v2300
      %v2317 = vperm.slane %v1914, 0
      %v2318 = vadd.f32 %v2301, %v2317
      %v2319 = vadd.f32 %v2302, %v2317
      %v2320 = vadd.f32 %v2303, %v2317
      %v2321 = vadd.f32 %v2304, %v2317
      %v2322 = vadd.f32 %v2305, %v2317
      %v2323 = vadd.f32 %v2306, %v2317
      %v2324 = vadd.f32 %v2307, %v2317
      %v2325 = vadd.f32 %v2308, %v2317
      %v2326 = vadd.f32 %v2309, %v2317
      %v2327 = vadd.f32 %v2310, %v2317
      %v2328 = vadd.f32 %v2311, %v2317
      %v2329 = vadd.f32 %v2312, %v2317
      %v2330 = vadd.f32 %v2313, %v2317
      %v2331 = vadd.f32 %v2314, %v2317
      %v2332 = vadd.f32 %v2315, %v2317
      %v2333 = vadd.f32 %v2316, %v2317
      %vm2334 = vcmp.ge.f32.partialorder %v2318, 0.0
      %vm2335 = vcmp.ge.f32.partialorder %v2319, 0.0
      %vm2336 = vcmp.ge.f32.partialorder %v2320, 0.0
      %vm2337 = vcmp.ge.f32.partialorder %v2321, 0.0
      %vm2338 = vcmp.ge.f32.partialorder %v2322, 0.0
      %vm2339 = vcmp.ge.f32.partialorder %v2323, 0.0
      %vm2340 = vcmp.ge.f32.partialorder %v2324, 0.0
      %vm2341 = vcmp.ge.f32.partialorder %v2325, 0.0
      %vm2342 = vcmp.ge.f32.partialorder %v2326, 0.0
      %vm2343 = vcmp.ge.f32.partialorder %v2327, 0.0
      %vm2344 = vcmp.ge.f32.partialorder %v2328, 0.0
      %vm2345 = vcmp.ge.f32.partialorder %v2329, 0.0
      %vm2346 = vcmp.ge.f32.partialorder %v2330, 0.0
      %vm2347 = vcmp.ge.f32.partialorder %v2331, 0.0
      %vm2348 = vcmp.ge.f32.partialorder %v2332, 0.0
      %vm2349 = vcmp.ge.f32.partialorder %v2333, 0.0
      %v2350 = vmul.f32 %v2318, 0.2
      %v2351 = vmul.f32 %v2319, 0.2
      %v2352 = vmul.f32 %v2320, 0.2
      %v2353 = vmul.f32 %v2321, 0.2
      %v2354 = vmul.f32 %v2322, 0.2
      %v2355 = vmul.f32 %v2323, 0.2
      %v2356 = vmul.f32 %v2324, 0.2
      %v2357 = vmul.f32 %v2325, 0.2
      %v2358 = vmul.f32 %v2326, 0.2
      %v2359 = vmul.f32 %v2327, 0.2
      %v2360 = vmul.f32 %v2328, 0.2
      %v2361 = vmul.f32 %v2329, 0.2
      %v2362 = vmul.f32 %v2330, 0.2
      %v2363 = vmul.f32 %v2331, 0.2
      %v2364 = vmul.f32 %v2332, 0.2
      %v2365 = vmul.f32 %v2333, 0.2
      %v2366 = vsel %vm2334, %v2318, %v2350
      %v2367 = vsel %vm2335, %v2319, %v2351
      %v2368 = vsel %vm2336, %v2320, %v2352
      %v2369 = vsel %vm2337, %v2321, %v2353
      %v2370 = vsel %vm2338, %v2322, %v2354
      %v2371 = vsel %vm2339, %v2323, %v2355
      %v2372 = vsel %vm2340, %v2324, %v2356
      %v2373 = vsel %vm2341, %v2325, %v2357
      %v2374 = vsel %vm2342, %v2326, %v2358
      %v2375 = vsel %vm2343, %v2327, %v2359
      %v2376 = vsel %vm2344, %v2328, %v2360
      %v2377 = vsel %vm2345, %v2329, %v2361
      %v2378 = vsel %vm2346, %v2330, %v2362
      %v2379 = vsel %vm2347, %v2331, %v2363
      %v2380 = vsel %vm2348, %v2332, %v2364
      %v2381 = vsel %vm2349, %v2333, %v2365
      %v2382 = vld [vmem:[%s2 + $0x108] sm:$0xff]
      %v2383 = vld [vmem:[%s2 + $0x110] sm:$0xff]
      %v2384 = vld [vmem:[%s2 + $0x118] sm:$0xff]
      %v2385 = vld [vmem:[%s2 + $0x120] sm:$0xff]
      %v2386 = vld [vmem:[%s3 + $0xb] sm:$0x1]
      %v2387 = vperm.slane %v2386, 0
      %v2389 = vsel %vm1915, %v2366, 0
      %v2392 = vsel %vm1915, %v2367, 0
      %v2395 = vsel %vm1915, %v2368, 0
      %v2398 = vsel %vm1915, %v2369, 0
      %v2401 = vsel %vm1915, %v2370, 0
      %v2404 = vsel %vm1915, %v2371, 0
      %v2407 = vsel %vm1915, %v2372, 0
      %v2410 = vsel %vm1915, %v2373, 0
      %v2413 = vsel %vm1915, %v2374, 0
      %v2416 = vsel %vm1915, %v2375, 0
      %v2419 = vsel %vm1915, %v2376, 0
      %v2422 = vsel %vm1915, %v2377, 0
      %v2425 = vsel %vm1915, %v2378, 0
      %v2428 = vsel %vm1915, %v2379, 0
      %v2431 = vsel %vm1915, %v2380, 0
      %v2434 = vsel %vm1915, %v2381, 0
      %2436 = vmatpush.msra.mxu0 0.0
      %2437 = vmatpush.msra.mxu0 0.0
      %2438 = vmatpush.msra.mxu0 0.0
      %2439 = vmatpush.msra.mxu0 0.0
      %2440 = vmatpush.msra.mxu0 0.0
      %2441 = vmatpush.msra.mxu0 0.0
      %2442 = vmatpush.msra.mxu0 0.0
      %2443 = vmatpush.msra.mxu0 0.0
      %2444 = vmatpush.msra.mxu0 0.0
      %2445 = vmatpush.msra.mxu0 0.0
      %2446 = vmatpush.msra.mxu0 0.0
      %2447 = vmatpush.msra.mxu0 0.0
      %2448 = vmatpush.msra.mxu0 %v2385
      %2449 = vmatpush.msra.mxu0 %v2384
      %2450 = vmatpush.msra.mxu0 %v2383
      %2451 = vmatpush.msra.mxu0 %v2382
      %2452 = vmatmul.f32.gmra.mxu0 %v2389
      %v2453 = vpop.f32.mrf.mxu0
      %v2454 = vadd.f32 %v2387, %v2453
      %2455 = vmatmul.f32.gmra.mxu0 %v2392
      %v2456 = vpop.f32.mrf.mxu0
      %v2457 = vadd.f32 %v2387, %v2456
      %2458 = vmatmul.f32.gmra.mxu0 %v2395
      %v2459 = vpop.f32.mrf.mxu0
      %v2460 = vadd.f32 %v2387, %v2459
      %2461 = vmatmul.f32.gmra.mxu0 %v2398
      %v2462 = vpop.f32.mrf.mxu0
      %v2463 = vadd.f32 %v2387, %v2462
      %2464 = vmatmul.f32.gmra.mxu0 %v2401
      %v2465 = vpop.f32.mrf.mxu0
      %v2466 = vadd.f32 %v2387, %v2465
      %2467 = vmatmul.f32.gmra.mxu0 %v2404
      %v2468 = vpop.f32.mrf.mxu0
      %v2469 = vadd.f32 %v2387, %v2468
      %2470 = vmatmul.f32.gmra.mxu0 %v2407
      %v2471 = vpop.f32.mrf.mxu0
      %v2472 = vadd.f32 %v2387, %v2471
      %2473 = vmatmul.f32.gmra.mxu0 %v2410
      %v2474 = vpop.f32.mrf.mxu0
      %v2475 = vadd.f32 %v2387, %v2474
      %2476 = vmatmul.f32.gmra.mxu0 %v2413
      %v2477 = vpop.f32.mrf.mxu0
      %v2478 = vadd.f32 %v2387, %v2477
      %2479 = vmatmul.f32.gmra.mxu0 %v2416
      %v2480 = vpop.f32.mrf.mxu0
      %v2481 = vadd.f32 %v2387, %v2480
      %2482 = vmatmul.f32.gmra.mxu0 %v2419
      %v2483 = vpop.f32.mrf.mxu0
      %v2484 = vadd.f32 %v2387, %v2483
      %2485 = vmatmul.f32.gmra.mxu0 %v2422
      %v2486 = vpop.f32.mrf.mxu0
      %v2487 = vadd.f32 %v2387, %v2486
      %2488 = vmatmul.f32.gmra.mxu0 %v2425
      %v2489 = vpop.f32.mrf.mxu0
      %v2490 = vadd.f32 %v2387, %v2489
      %2491 = vmatmul.f32.gmra.mxu0 %v2428
      %v2492 = vpop.f32.mrf.mxu0
      %v2493 = vadd.f32 %v2387, %v2492
      %2494 = vmatmul.f32.gmra.mxu0 %v2431
      %v2495 = vpop.f32.mrf.mxu0
      %v2496 = vadd.f32 %v2387, %v2495
      %2497 = vmatmul.f32.gmra.mxu0 %v2434
      %v2498 = vpop.f32.mrf.mxu0
      %v2499 = vadd.f32 %v2387, %v2498
      %2500 = vdwg.mxu0
      %v2501 = vmul.f32 %v2454, 0.5
      %v2502 = vmul.f32 %v2457, 0.5
      %v2503 = vmul.f32 %v2460, 0.5
      %v2504 = vmul.f32 %v2463, 0.5
      %v2505 = vmul.f32 %v2466, 0.5
      %v2506 = vmul.f32 %v2469, 0.5
      %v2507 = vmul.f32 %v2472, 0.5
      %v2508 = vmul.f32 %v2475, 0.5
      %v2509 = vmul.f32 %v2478, 0.5
      %v2510 = vmul.f32 %v2481, 0.5
      %v2511 = vmul.f32 %v2484, 0.5
      %v2512 = vmul.f32 %v2487, 0.5
      %v2513 = vmul.f32 %v2490, 0.5
      %v2514 = vmul.f32 %v2493, 0.5
      %v2515 = vmul.f32 %v2496, 0.5
      %v2516 = vmul.f32 %v2499, 0.5
      %v2517 = vmul.f32 %v2501, 1.442695
      %v2518 = vpow.pop %v2517
      %v2519 = vmul.f32 %v2502, 1.442695
      %v2520 = vpow.pop %v2519
      %v2521 = vmul.f32 %v2503, 1.442695
      %v2522 = vpow.pop %v2521
      %v2523 = vmul.f32 %v2504, 1.442695
      %v2524 = vpow.pop %v2523
      %v2525 = vmul.f32 %v2505, 1.442695
      %v2526 = vpow.pop %v2525
      %v2527 = vmul.f32 %v2506, 1.442695
      %v2528 = vpow.pop %v2527
      %v2529 = vmul.f32 %v2507, 1.442695
      %v2530 = vpow.pop %v2529
      %v2531 = vmul.f32 %v2508, 1.442695
      %v2532 = vpow.pop %v2531
      %v2533 = vmul.f32 %v2509, 1.442695
      %v2534 = vpow.pop %v2533
      %v2535 = vmul.f32 %v2510, 1.442695
      %v2536 = vpow.pop %v2535
      %v2537 = vmul.f32 %v2511, 1.442695
      %v2538 = vpow.pop %v2537
      %v2539 = vmul.f32 %v2512, 1.442695
      %v2540 = vpow.pop %v2539
      %v2541 = vmul.f32 %v2513, 1.442695
      %v2542 = vpow.pop %v2541
      %v2543 = vmul.f32 %v2514, 1.442695
      %v2544 = vpow.pop %v2543
      %v2545 = vmul.f32 %v2515, 1.442695
      %v2546 = vpow.pop %v2545
      %v2547 = vmul.f32 %v2516, 1.442695
      %v2548 = vpow.pop %v2547
      %2565 = vrot.lane.b32.xlu0 %v2518, 112
      %v2566 = vpop.permute.xlu0 %2565
      %2567 = vrot.lane.b32.xlu0 %v2520, 112
      %v2568 = vpop.permute.xlu0 %2567
      %2569 = vrot.lane.b32.xlu0 %v2522, 112
      %v2570 = vpop.permute.xlu0 %2569
      %2571 = vrot.lane.b32.xlu0 %v2524, 112
      %v2572 = vpop.permute.xlu0 %2571
      %2573 = vrot.lane.b32.xlu0 %v2526, 112
      %v2574 = vpop.permute.xlu0 %2573
      %2575 = vrot.lane.b32.xlu0 %v2528, 112
      %v2576 = vpop.permute.xlu0 %2575
      %2577 = vrot.lane.b32.xlu0 %v2530, 112
      %v2578 = vpop.permute.xlu0 %2577
      %2579 = vrot.lane.b32.xlu0 %v2532, 112
      %v2580 = vpop.permute.xlu0 %2579
      %2581 = vrot.lane.b32.xlu0 %v2534, 112
      %v2582 = vpop.permute.xlu0 %2581
      %2583 = vrot.lane.b32.xlu0 %v2536, 112
      %v2584 = vpop.permute.xlu0 %2583
      %2585 = vrot.lane.b32.xlu0 %v2538, 112
      %v2586 = vpop.permute.xlu0 %2585
      %2587 = vrot.lane.b32.xlu0 %v2540, 112
      %v2588 = vpop.permute.xlu0 %2587
      %2589 = vrot.lane.b32.xlu0 %v2542, 112
      %v2590 = vpop.permute.xlu0 %2589
      %2591 = vrot.lane.b32.xlu0 %v2544, 112
      %v2592 = vpop.permute.xlu0 %2591
      %2593 = vrot.lane.b32.xlu0 %v2546, 112
      %v2594 = vpop.permute.xlu0 %2593
      %2595 = vrot.lane.b32.xlu0 %v2548, 112
      %v2596 = vpop.permute.xlu0 %2595
      %v2613 = vmul.f32 %v239, %v2566
      %v2614 = vmul.f32 %v240, %v2568
      %v2615 = vmul.f32 %v241, %v2570
      %v2616 = vmul.f32 %v242, %v2572
      %v2617 = vmul.f32 %v243, %v2574
      %v2618 = vmul.f32 %v244, %v2576
      %v2619 = vmul.f32 %v245, %v2578
      %v2620 = vmul.f32 %v246, %v2580
      %v2621 = vmul.f32 %v247, %v2582
      %v2622 = vmul.f32 %v248, %v2584
      %v2623 = vmul.f32 %v249, %v2586
      %v2624 = vmul.f32 %v250, %v2588
      %v2625 = vmul.f32 %v251, %v2590
      %v2626 = vmul.f32 %v252, %v2592
      %v2627 = vmul.f32 %v253, %v2594
      %v2628 = vmul.f32 %v254, %v2596
      %v2629 = vadd.f32 %v2454, %v2613
      %v2630 = vadd.f32 %v2457, %v2614
      %v2631 = vadd.f32 %v2460, %v2615
      %v2632 = vadd.f32 %v2463, %v2616
      %v2633 = vadd.f32 %v2466, %v2617
      %v2634 = vadd.f32 %v2469, %v2618
      %v2635 = vadd.f32 %v2472, %v2619
      %v2636 = vadd.f32 %v2475, %v2620
      %v2637 = vadd.f32 %v2478, %v2621
      %v2638 = vadd.f32 %v2481, %v2622
      %v2639 = vadd.f32 %v2484, %v2623
      %v2640 = vadd.f32 %v2487, %v2624
      %v2641 = vadd.f32 %v2490, %v2625
      %v2642 = vadd.f32 %v2493, %v2626
      %v2643 = vadd.f32 %v2496, %v2627
      %v2644 = vadd.f32 %v2499, %v2628
      %v2645 = vld [vmem:[%s2 + $0x128] sm:$0xff]
      %v2646 = vld [vmem:[%s2 + $0x130] sm:$0xff]
      %v2647 = vld [vmem:[%s3 + $0xc] sm:$0x1]
      %v2648 = vperm.slane %v2647, 0
      %vm2649 = vcmask 130048
      %v2651 = vsel %vm2649, %v2629, 0
      %v2654 = vsel %vm2649, %v2630, 0
      %v2657 = vsel %vm2649, %v2631, 0
      %v2660 = vsel %vm2649, %v2632, 0
      %v2663 = vsel %vm2649, %v2633, 0
      %v2666 = vsel %vm2649, %v2634, 0
      %v2669 = vsel %vm2649, %v2635, 0
      %v2672 = vsel %vm2649, %v2636, 0
      %v2675 = vsel %vm2649, %v2637, 0
      %v2678 = vsel %vm2649, %v2638, 0
      %v2681 = vsel %vm2649, %v2639, 0
      %v2684 = vsel %vm2649, %v2640, 0
      %v2687 = vsel %vm2649, %v2641, 0
      %v2690 = vsel %vm2649, %v2642, 0
      %v2693 = vsel %vm2649, %v2643, 0
      %v2696 = vsel %vm2649, %v2644, 0
      %2698 = vmatpush.msra.mxu0 0.0
      %2699 = vmatpush.msra.mxu0 0.0
      %2700 = vmatpush.msra.mxu0 0.0
      %2701 = vmatpush.msra.mxu0 0.0
      %2702 = vmatpush.msra.mxu0 0.0
      %2703 = vmatpush.msra.mxu0 0.0
      %2704 = vmatpush.msra.mxu0 0.0
      %2705 = vmatpush.msra.mxu0 0.0
      %2706 = vmatpush.msra.mxu0 0.0
      %2707 = vmatpush.msra.mxu0 0.0
      %2708 = vmatpush.msra.mxu0 0.0
      %2709 = vmatpush.msra.mxu0 0.0
      %2710 = vmatpush.msra.mxu0 0.0
      %2711 = vmatpush.msra.mxu0 0.0
      %2712 = vmatpush.msra.mxu0 %v2646
      %2713 = vmatpush.msra.mxu0 %v2645
      %2714 = vmatmul.f32.gmra.mxu0 %v2651
      %v2715 = vpop.f32.mrf.mxu0
      %v2716 = vadd.f32 %v2648, %v2715
      %2717 = vmatmul.f32.gmra.mxu0 %v2654
      %v2718 = vpop.f32.mrf.mxu0
      %v2719 = vadd.f32 %v2648, %v2718
      %2720 = vmatmul.f32.gmra.mxu0 %v2657
      %v2721 = vpop.f32.mrf.mxu0
      %v2722 = vadd.f32 %v2648, %v2721
      %2723 = vmatmul.f32.gmra.mxu0 %v2660
      %v2724 = vpop.f32.mrf.mxu0
      %v2725 = vadd.f32 %v2648, %v2724
      %2726 = vmatmul.f32.gmra.mxu0 %v2663
      %v2727 = vpop.f32.mrf.mxu0
      %v2728 = vadd.f32 %v2648, %v2727
      %2729 = vmatmul.f32.gmra.mxu0 %v2666
      %v2730 = vpop.f32.mrf.mxu0
      %v2731 = vadd.f32 %v2648, %v2730
      %2732 = vmatmul.f32.gmra.mxu0 %v2669
      %v2733 = vpop.f32.mrf.mxu0
      %v2734 = vadd.f32 %v2648, %v2733
      %2735 = vmatmul.f32.gmra.mxu0 %v2672
      %v2736 = vpop.f32.mrf.mxu0
      %v2737 = vadd.f32 %v2648, %v2736
      %2738 = vmatmul.f32.gmra.mxu0 %v2675
      %v2739 = vpop.f32.mrf.mxu0
      %v2740 = vadd.f32 %v2648, %v2739
      %2741 = vmatmul.f32.gmra.mxu0 %v2678
      %v2742 = vpop.f32.mrf.mxu0
      %v2743 = vadd.f32 %v2648, %v2742
      %2744 = vmatmul.f32.gmra.mxu0 %v2681
      %v2745 = vpop.f32.mrf.mxu0
      %v2746 = vadd.f32 %v2648, %v2745
      %2747 = vmatmul.f32.gmra.mxu0 %v2684
      %v2748 = vpop.f32.mrf.mxu0
      %v2749 = vadd.f32 %v2648, %v2748
      %2750 = vmatmul.f32.gmra.mxu0 %v2687
      %v2751 = vpop.f32.mrf.mxu0
      %v2752 = vadd.f32 %v2648, %v2751
      %2753 = vmatmul.f32.gmra.mxu0 %v2690
      %v2754 = vpop.f32.mrf.mxu0
      %v2755 = vadd.f32 %v2648, %v2754
      %2756 = vmatmul.f32.gmra.mxu0 %v2693
      %v2757 = vpop.f32.mrf.mxu0
      %v2758 = vadd.f32 %v2648, %v2757
      %2759 = vmatmul.f32.gmra.mxu0 %v2696
      %v2760 = vpop.f32.mrf.mxu0
      %v2761 = vadd.f32 %v2648, %v2760
      %2762 = vdwg.mxu0
      %v2763 = vld [vmem:[%s3 + $0xd] sm:$0x1]
      %v2764 = vld [vmem:[%s3 + $0xe] sm:$0x1]
      %v2765 = vsel %vm1915, %v2716, 0.0
      %2766 = vadd.xlane.f32.xlu0 %v2765
      %v2767 = vpop.xlane.xlu0 %2766
      %v2768 = vsel %vm1915, %v2719, 0.0
      %2769 = vadd.xlane.f32.xlu0 %v2768
      %v2770 = vpop.xlane.xlu0 %2769
      %v2771 = vsel %vm1915, %v2722, 0.0
      %2772 = vadd.xlane.f32.xlu0 %v2771
      %v2773 = vpop.xlane.xlu0 %2772
      %v2774 = vsel %vm1915, %v2725, 0.0
      %2775 = vadd.xlane.f32.xlu0 %v2774
      %v2776 = vpop.xlane.xlu0 %2775
      %v2777 = vsel %vm1915, %v2728, 0.0
      %2778 = vadd.xlane.f32.xlu0 %v2777
      %v2779 = vpop.xlane.xlu0 %2778
      %v2780 = vsel %vm1915, %v2731, 0.0
      %2781 = vadd.xlane.f32.xlu0 %v2780
      %v2782 = vpop.xlane.xlu0 %2781
      %v2783 = vsel %vm1915, %v2734, 0.0
      %2784 = vadd.xlane.f32.xlu0 %v2783
      %v2785 = vpop.xlane.xlu0 %2784
      %v2786 = vsel %vm1915, %v2737, 0.0
      %2787 = vadd.xlane.f32.xlu0 %v2786
      %v2788 = vpop.xlane.xlu0 %2787
      %v2789 = vsel %vm1915, %v2740, 0.0
      %2790 = vadd.xlane.f32.xlu0 %v2789
      %v2791 = vpop.xlane.xlu0 %2790
      %v2792 = vsel %vm1915, %v2743, 0.0
      %2793 = vadd.xlane.f32.xlu0 %v2792
      %v2794 = vpop.xlane.xlu0 %2793
      %v2795 = vsel %vm1915, %v2746, 0.0
      %2796 = vadd.xlane.f32.xlu0 %v2795
      %v2797 = vpop.xlane.xlu0 %2796
      %v2798 = vsel %vm1915, %v2749, 0.0
      %2799 = vadd.xlane.f32.xlu0 %v2798
      %v2800 = vpop.xlane.xlu0 %2799
      %v2801 = vsel %vm1915, %v2752, 0.0
      %2802 = vadd.xlane.f32.xlu0 %v2801
      %v2803 = vpop.xlane.xlu0 %2802
      %v2804 = vsel %vm1915, %v2755, 0.0
      %2805 = vadd.xlane.f32.xlu0 %v2804
      %v2806 = vpop.xlane.xlu0 %2805
      %v2807 = vsel %vm1915, %v2758, 0.0
      %2808 = vadd.xlane.f32.xlu0 %v2807
      %v2809 = vpop.xlane.xlu0 %2808
      %v2810 = vsel %vm1915, %v2761, 0.0
      %2811 = vadd.xlane.f32.xlu0 %v2810
      %v2812 = vpop.xlane.xlu0 %2811
      %v2813 = vmul.f32 %v2716, %v2716
      %v2814 = vmul.f32 %v2719, %v2719
      %v2815 = vmul.f32 %v2722, %v2722
      %v2816 = vmul.f32 %v2725, %v2725
      %v2817 = vmul.f32 %v2728, %v2728
      %v2818 = vmul.f32 %v2731, %v2731
      %v2819 = vmul.f32 %v2734, %v2734
      %v2820 = vmul.f32 %v2737, %v2737
      %v2821 = vmul.f32 %v2740, %v2740
      %v2822 = vmul.f32 %v2743, %v2743
      %v2823 = vmul.f32 %v2746, %v2746
      %v2824 = vmul.f32 %v2749, %v2749
      %v2825 = vmul.f32 %v2752, %v2752
      %v2826 = vmul.f32 %v2755, %v2755
      %v2827 = vmul.f32 %v2758, %v2758
      %v2828 = vmul.f32 %v2761, %v2761
      %v2829 = vsel %vm1915, %v2813, 0.0
      %2830 = vadd.xlane.f32.xlu0 %v2829
      %v2831 = vpop.xlane.xlu0 %2830
      %v2832 = vsel %vm1915, %v2814, 0.0
      %2833 = vadd.xlane.f32.xlu0 %v2832
      %v2834 = vpop.xlane.xlu0 %2833
      %v2835 = vsel %vm1915, %v2815, 0.0
      %2836 = vadd.xlane.f32.xlu0 %v2835
      %v2837 = vpop.xlane.xlu0 %2836
      %v2838 = vsel %vm1915, %v2816, 0.0
      %2839 = vadd.xlane.f32.xlu0 %v2838
      %v2840 = vpop.xlane.xlu0 %2839
      %v2841 = vsel %vm1915, %v2817, 0.0
      %2842 = vadd.xlane.f32.xlu0 %v2841
      %v2843 = vpop.xlane.xlu0 %2842
      %v2844 = vsel %vm1915, %v2818, 0.0
      %2845 = vadd.xlane.f32.xlu0 %v2844
      %v2846 = vpop.xlane.xlu0 %2845
      %v2847 = vsel %vm1915, %v2819, 0.0
      %2848 = vadd.xlane.f32.xlu0 %v2847
      %v2849 = vpop.xlane.xlu0 %2848
      %v2850 = vsel %vm1915, %v2820, 0.0
      %2851 = vadd.xlane.f32.xlu0 %v2850
      %v2852 = vpop.xlane.xlu0 %2851
      %v2853 = vsel %vm1915, %v2821, 0.0
      %2854 = vadd.xlane.f32.xlu0 %v2853
      %v2855 = vpop.xlane.xlu0 %2854
      %v2856 = vsel %vm1915, %v2822, 0.0
      %2857 = vadd.xlane.f32.xlu0 %v2856
      %v2858 = vpop.xlane.xlu0 %2857
      %v2859 = vsel %vm1915, %v2823, 0.0
      %2860 = vadd.xlane.f32.xlu0 %v2859
      %v2861 = vpop.xlane.xlu0 %2860
      %v2862 = vsel %vm1915, %v2824, 0.0
      %2863 = vadd.xlane.f32.xlu0 %v2862
      %v2864 = vpop.xlane.xlu0 %2863
      %v2865 = vsel %vm1915, %v2825, 0.0
      %2866 = vadd.xlane.f32.xlu0 %v2865
      %v2867 = vpop.xlane.xlu0 %2866
      %v2868 = vsel %vm1915, %v2826, 0.0
      %2869 = vadd.xlane.f32.xlu0 %v2868
      %v2870 = vpop.xlane.xlu0 %2869
      %v2871 = vsel %vm1915, %v2827, 0.0
      %2872 = vadd.xlane.f32.xlu0 %v2871
      %v2873 = vpop.xlane.xlu0 %2872
      %v2874 = vsel %vm1915, %v2828, 0.0
      %2875 = vadd.xlane.f32.xlu0 %v2874
      %v2876 = vpop.xlane.xlu0 %2875
      %v2877 = vmul.f32 %v2767, 0.03125
      %v2878 = vmul.f32 %v2770, 0.03125
      %v2879 = vmul.f32 %v2773, 0.03125
      %v2880 = vmul.f32 %v2776, 0.03125
      %v2881 = vmul.f32 %v2779, 0.03125
      %v2882 = vmul.f32 %v2782, 0.03125
      %v2883 = vmul.f32 %v2785, 0.03125
      %v2884 = vmul.f32 %v2788, 0.03125
      %v2885 = vmul.f32 %v2791, 0.03125
      %v2886 = vmul.f32 %v2794, 0.03125
      %v2887 = vmul.f32 %v2797, 0.03125
      %v2888 = vmul.f32 %v2800, 0.03125
      %v2889 = vmul.f32 %v2803, 0.03125
      %v2890 = vmul.f32 %v2806, 0.03125
      %v2891 = vmul.f32 %v2809, 0.03125
      %v2892 = vmul.f32 %v2812, 0.03125
      %v2893 = vmul.f32 %v2831, 0.03125
      %v2894 = vmul.f32 %v2834, 0.03125
      %v2895 = vmul.f32 %v2837, 0.03125
      %v2896 = vmul.f32 %v2840, 0.03125
      %v2897 = vmul.f32 %v2843, 0.03125
      %v2898 = vmul.f32 %v2846, 0.03125
      %v2899 = vmul.f32 %v2849, 0.03125
      %v2900 = vmul.f32 %v2852, 0.03125
      %v2901 = vmul.f32 %v2855, 0.03125
      %v2902 = vmul.f32 %v2858, 0.03125
      %v2903 = vmul.f32 %v2861, 0.03125
      %v2904 = vmul.f32 %v2864, 0.03125
      %v2905 = vmul.f32 %v2867, 0.03125
      %v2906 = vmul.f32 %v2870, 0.03125
      %v2907 = vmul.f32 %v2873, 0.03125
      %v2908 = vmul.f32 %v2876, 0.03125
      %v2909 = vmul.f32 %v2877, %v2877
      %v2910 = vmul.f32 %v2878, %v2878
      %v2911 = vmul.f32 %v2879, %v2879
      %v2912 = vmul.f32 %v2880, %v2880
      %v2913 = vmul.f32 %v2881, %v2881
      %v2914 = vmul.f32 %v2882, %v2882
      %v2915 = vmul.f32 %v2883, %v2883
      %v2916 = vmul.f32 %v2884, %v2884
      %v2917 = vmul.f32 %v2885, %v2885
      %v2918 = vmul.f32 %v2886, %v2886
      %v2919 = vmul.f32 %v2887, %v2887
      %v2920 = vmul.f32 %v2888, %v2888
      %v2921 = vmul.f32 %v2889, %v2889
      %v2922 = vmul.f32 %v2890, %v2890
      %v2923 = vmul.f32 %v2891, %v2891
      %v2924 = vmul.f32 %v2892, %v2892
      %v2925 = vsub.f32 %v2893, %v2909
      %v2926 = vsub.f32 %v2894, %v2910
      %v2927 = vsub.f32 %v2895, %v2911
      %v2928 = vsub.f32 %v2896, %v2912
      %v2929 = vsub.f32 %v2897, %v2913
      %v2930 = vsub.f32 %v2898, %v2914
      %v2931 = vsub.f32 %v2899, %v2915
      %v2932 = vsub.f32 %v2900, %v2916
      %v2933 = vsub.f32 %v2901, %v2917
      %v2934 = vsub.f32 %v2902, %v2918
      %v2935 = vsub.f32 %v2903, %v2919
      %v2936 = vsub.f32 %v2904, %v2920
      %v2937 = vsub.f32 %v2905, %v2921
      %v2938 = vsub.f32 %v2906, %v2922
      %v2939 = vsub.f32 %v2907, %v2923
      %v2940 = vsub.f32 %v2908, %v2924
      %v2941 = vsub.f32 %v2716, %v2877
      %v2942 = vsub.f32 %v2719, %v2878
      %v2943 = vsub.f32 %v2722, %v2879
      %v2944 = vsub.f32 %v2725, %v2880
      %v2945 = vsub.f32 %v2728, %v2881
      %v2946 = vsub.f32 %v2731, %v2882
      %v2947 = vsub.f32 %v2734, %v2883
      %v2948 = vsub.f32 %v2737, %v2884
      %v2949 = vsub.f32 %v2740, %v2885
      %v2950 = vsub.f32 %v2743, %v2886
      %v2951 = vsub.f32 %v2746, %v2887
      %v2952 = vsub.f32 %v2749, %v2888
      %v2953 = vsub.f32 %v2752, %v2889
      %v2954 = vsub.f32 %v2755, %v2890
      %v2955 = vsub.f32 %v2758, %v2891
      %v2956 = vsub.f32 %v2761, %v2892
      %v2957 = vadd.f32 %v2925, 1e-05
      %v2958 = vadd.f32 %v2926, 1e-05
      %v2959 = vadd.f32 %v2927, 1e-05
      %v2960 = vadd.f32 %v2928, 1e-05
      %v2961 = vadd.f32 %v2929, 1e-05
      %v2962 = vadd.f32 %v2930, 1e-05
      %v2963 = vadd.f32 %v2931, 1e-05
      %v2964 = vadd.f32 %v2932, 1e-05
      %v2965 = vadd.f32 %v2933, 1e-05
      %v2966 = vadd.f32 %v2934, 1e-05
      %v2967 = vadd.f32 %v2935, 1e-05
      %v2968 = vadd.f32 %v2936, 1e-05
      %v2969 = vadd.f32 %v2937, 1e-05
      %v2970 = vadd.f32 %v2938, 1e-05
      %v2971 = vadd.f32 %v2939, 1e-05
      %v2972 = vadd.f32 %v2940, 1e-05
      %v2973 = vrsqrt.pop %v2957
      %v2974 = vmul.f32 %v2973, %v2957
      %v2975 = vmul.f32 %v2974, %v2973
      %v2976 = vmul.f32 0.5, %v2975
      %v2977 = vsub.f32 1.5, %v2976
      %v2978 = vmul.f32 %v2973, %v2977
      %vm2979 = vweird.f32 %v2957
      %vm2980 = vweird.f32 %v2973
      %vm2981 = vmor %vm2979, %vm2980
      %v2982 = vsel %vm2981, %v2973, %v2978
      %v2983 = vrsqrt.pop %v2958
      %v2984 = vmul.f32 %v2983, %v2958
      %v2985 = vmul.f32 %v2984, %v2983
      %v2986 = vmul.f32 0.5, %v2985
      %v2987 = vsub.f32 1.5, %v2986
      %v2988 = vmul.f32 %v2983, %v2987
      %vm2989 = vweird.f32 %v2958
      %vm2990 = vweird.f32 %v2983
      %vm2991 = vmor %vm2989, %vm2990
      %v2992 = vsel %vm2991, %v2983, %v2988
      %v2993 = vrsqrt.pop %v2959
      %v2994 = vmul.f32 %v2993, %v2959
      %v2995 = vmul.f32 %v2994, %v2993
      %v2996 = vmul.f32 0.5, %v2995
      %v2997 = vsub.f32 1.5, %v2996
      %v2998 = vmul.f32 %v2993, %v2997
      %vm2999 = vweird.f32 %v2959
      %vm3000 = vweird.f32 %v2993
      %vm3001 = vmor %vm2999, %vm3000
      %v3002 = vsel %vm3001, %v2993, %v2998
      %v3003 = vrsqrt.pop %v2960
      %v3004 = vmul.f32 %v3003, %v2960
      %v3005 = vmul.f32 %v3004, %v3003
      %v3006 = vmul.f32 0.5, %v3005
      %v3007 = vsub.f32 1.5, %v3006
      %v3008 = vmul.f32 %v3003, %v3007
      %vm3009 = vweird.f32 %v2960
      %vm3010 = vweird.f32 %v3003
      %vm3011 = vmor %vm3009, %vm3010
      %v3012 = vsel %vm3011, %v3003, %v3008
      %v3013 = vrsqrt.pop %v2961
      %v3014 = vmul.f32 %v3013, %v2961
      %v3015 = vmul.f32 %v3014, %v3013
      %v3016 = vmul.f32 0.5, %v3015
      %v3017 = vsub.f32 1.5, %v3016
      %v3018 = vmul.f32 %v3013, %v3017
      %vm3019 = vweird.f32 %v2961
      %vm3020 = vweird.f32 %v3013
      %vm3021 = vmor %vm3019, %vm3020
      %v3022 = vsel %vm3021, %v3013, %v3018
      %v3023 = vrsqrt.pop %v2962
      %v3024 = vmul.f32 %v3023, %v2962
      %v3025 = vmul.f32 %v3024, %v3023
      %v3026 = vmul.f32 0.5, %v3025
      %v3027 = vsub.f32 1.5, %v3026
      %v3028 = vmul.f32 %v3023, %v3027
      %vm3029 = vweird.f32 %v2962
      %vm3030 = vweird.f32 %v3023
      %vm3031 = vmor %vm3029, %vm3030
      %v3032 = vsel %vm3031, %v3023, %v3028
      %v3033 = vrsqrt.pop %v2963
      %v3034 = vmul.f32 %v3033, %v2963
      %v3035 = vmul.f32 %v3034, %v3033
      %v3036 = vmul.f32 0.5, %v3035
      %v3037 = vsub.f32 1.5, %v3036
      %v3038 = vmul.f32 %v3033, %v3037
      %vm3039 = vweird.f32 %v2963
      %vm3040 = vweird.f32 %v3033
      %vm3041 = vmor %vm3039, %vm3040
      %v3042 = vsel %vm3041, %v3033, %v3038
      %v3043 = vrsqrt.pop %v2964
      %v3044 = vmul.f32 %v3043, %v2964
      %v3045 = vmul.f32 %v3044, %v3043
      %v3046 = vmul.f32 0.5, %v3045
      %v3047 = vsub.f32 1.5, %v3046
      %v3048 = vmul.f32 %v3043, %v3047
      %vm3049 = vweird.f32 %v2964
      %vm3050 = vweird.f32 %v3043
      %vm3051 = vmor %vm3049, %vm3050
      %v3052 = vsel %vm3051, %v3043, %v3048
      %v3053 = vrsqrt.pop %v2965
      %v3054 = vmul.f32 %v3053, %v2965
      %v3055 = vmul.f32 %v3054, %v3053
      %v3056 = vmul.f32 0.5, %v3055
      %v3057 = vsub.f32 1.5, %v3056
      %v3058 = vmul.f32 %v3053, %v3057
      %vm3059 = vweird.f32 %v2965
      %vm3060 = vweird.f32 %v3053
      %vm3061 = vmor %vm3059, %vm3060
      %v3062 = vsel %vm3061, %v3053, %v3058
      %v3063 = vrsqrt.pop %v2966
      %v3064 = vmul.f32 %v3063, %v2966
      %v3065 = vmul.f32 %v3064, %v3063
      %v3066 = vmul.f32 0.5, %v3065
      %v3067 = vsub.f32 1.5, %v3066
      %v3068 = vmul.f32 %v3063, %v3067
      %vm3069 = vweird.f32 %v2966
      %vm3070 = vweird.f32 %v3063
      %vm3071 = vmor %vm3069, %vm3070
      %v3072 = vsel %vm3071, %v3063, %v3068
      %v3073 = vrsqrt.pop %v2967
      %v3074 = vmul.f32 %v3073, %v2967
      %v3075 = vmul.f32 %v3074, %v3073
      %v3076 = vmul.f32 0.5, %v3075
      %v3077 = vsub.f32 1.5, %v3076
      %v3078 = vmul.f32 %v3073, %v3077
      %vm3079 = vweird.f32 %v2967
      %vm3080 = vweird.f32 %v3073
      %vm3081 = vmor %vm3079, %vm3080
      %v3082 = vsel %vm3081, %v3073, %v3078
      %v3083 = vrsqrt.pop %v2968
      %v3084 = vmul.f32 %v3083, %v2968
      %v3085 = vmul.f32 %v3084, %v3083
      %v3086 = vmul.f32 0.5, %v3085
      %v3087 = vsub.f32 1.5, %v3086
      %v3088 = vmul.f32 %v3083, %v3087
      %vm3089 = vweird.f32 %v2968
      %vm3090 = vweird.f32 %v3083
      %vm3091 = vmor %vm3089, %vm3090
      %v3092 = vsel %vm3091, %v3083, %v3088
      %v3093 = vrsqrt.pop %v2969
      %v3094 = vmul.f32 %v3093, %v2969
      %v3095 = vmul.f32 %v3094, %v3093
      %v3096 = vmul.f32 0.5, %v3095
      %v3097 = vsub.f32 1.5, %v3096
      %v3098 = vmul.f32 %v3093, %v3097
      %vm3099 = vweird.f32 %v2969
      %vm3100 = vweird.f32 %v3093
      %vm3101 = vmor %vm3099, %vm3100
      %v3102 = vsel %vm3101, %v3093, %v3098
      %v3103 = vrsqrt.pop %v2970
      %v3104 = vmul.f32 %v3103, %v2970
      %v3105 = vmul.f32 %v3104, %v3103
      %v3106 = vmul.f32 0.5, %v3105
      %v3107 = vsub.f32 1.5, %v3106
      %v3108 = vmul.f32 %v3103, %v3107
      %vm3109 = vweird.f32 %v2970
      %vm3110 = vweird.f32 %v3103
      %vm3111 = vmor %vm3109, %vm3110
      %v3112 = vsel %vm3111, %v3103, %v3108
      %v3113 = vrsqrt.pop %v2971
      %v3114 = vmul.f32 %v3113, %v2971
      %v3115 = vmul.f32 %v3114, %v3113
      %v3116 = vmul.f32 0.5, %v3115
      %v3117 = vsub.f32 1.5, %v3116
      %v3118 = vmul.f32 %v3113, %v3117
      %vm3119 = vweird.f32 %v2971
      %vm3120 = vweird.f32 %v3113
      %vm3121 = vmor %vm3119, %vm3120
      %v3122 = vsel %vm3121, %v3113, %v3118
      %v3123 = vrsqrt.pop %v2972
      %v3124 = vmul.f32 %v3123, %v2972
      %v3125 = vmul.f32 %v3124, %v3123
      %v3126 = vmul.f32 0.5, %v3125
      %v3127 = vsub.f32 1.5, %v3126
      %v3128 = vmul.f32 %v3123, %v3127
      %vm3129 = vweird.f32 %v2972
      %vm3130 = vweird.f32 %v3123
      %vm3131 = vmor %vm3129, %vm3130
      %v3132 = vsel %vm3131, %v3123, %v3128
      %v3133 = vmul.f32 %v2941, %v2982
      %v3134 = vmul.f32 %v2942, %v2992
      %v3135 = vmul.f32 %v2943, %v3002
      %v3136 = vmul.f32 %v2944, %v3012
      %v3137 = vmul.f32 %v2945, %v3022
      %v3138 = vmul.f32 %v2946, %v3032
      %v3139 = vmul.f32 %v2947, %v3042
      %v3140 = vmul.f32 %v2948, %v3052
      %v3141 = vmul.f32 %v2949, %v3062
      %v3142 = vmul.f32 %v2950, %v3072
      %v3143 = vmul.f32 %v2951, %v3082
      %v3144 = vmul.f32 %v2952, %v3092
      %v3145 = vmul.f32 %v2953, %v3102
      %v3146 = vmul.f32 %v2954, %v3112
      %v3147 = vmul.f32 %v2955, %v3122
      %v3148 = vmul.f32 %v2956, %v3132
      %v3149 = vperm.slane %v2763, 0
      %v3150 = vmul.f32 %v3133, %v3149
      %v3151 = vmul.f32 %v3134, %v3149
      %v3152 = vmul.f32 %v3135, %v3149
      %v3153 = vmul.f32 %v3136, %v3149
      %v3154 = vmul.f32 %v3137, %v3149
      %v3155 = vmul.f32 %v3138, %v3149
      %v3156 = vmul.f32 %v3139, %v3149
      %v3157 = vmul.f32 %v3140, %v3149
      %v3158 = vmul.f32 %v3141, %v3149
      %v3159 = vmul.f32 %v3142, %v3149
      %v3160 = vmul.f32 %v3143, %v3149
      %v3161 = vmul.f32 %v3144, %v3149
      %v3162 = vmul.f32 %v3145, %v3149
      %v3163 = vmul.f32 %v3146, %v3149
      %v3164 = vmul.f32 %v3147, %v3149
      %v3165 = vmul.f32 %v3148, %v3149
      %v3166 = vperm.slane %v2764, 0
      %v3167 = vadd.f32 %v3150, %v3166
      %v3168 = vadd.f32 %v3151, %v3166
      %v3169 = vadd.f32 %v3152, %v3166
      %v3170 = vadd.f32 %v3153, %v3166
      %v3171 = vadd.f32 %v3154, %v3166
      %v3172 = vadd.f32 %v3155, %v3166
      %v3173 = vadd.f32 %v3156, %v3166
      %v3174 = vadd.f32 %v3157, %v3166
      %v3175 = vadd.f32 %v3158, %v3166
      %v3176 = vadd.f32 %v3159, %v3166
      %v3177 = vadd.f32 %v3160, %v3166
      %v3178 = vadd.f32 %v3161, %v3166
      %v3179 = vadd.f32 %v3162, %v3166
      %v3180 = vadd.f32 %v3163, %v3166
      %v3181 = vadd.f32 %v3164, %v3166
      %v3182 = vadd.f32 %v3165, %v3166
      %vm3183 = vcmp.ge.f32.partialorder %v3167, 0.0
      %vm3184 = vcmp.ge.f32.partialorder %v3168, 0.0
      %vm3185 = vcmp.ge.f32.partialorder %v3169, 0.0
      %vm3186 = vcmp.ge.f32.partialorder %v3170, 0.0
      %vm3187 = vcmp.ge.f32.partialorder %v3171, 0.0
      %vm3188 = vcmp.ge.f32.partialorder %v3172, 0.0
      %vm3189 = vcmp.ge.f32.partialorder %v3173, 0.0
      %vm3190 = vcmp.ge.f32.partialorder %v3174, 0.0
      %vm3191 = vcmp.ge.f32.partialorder %v3175, 0.0
      %vm3192 = vcmp.ge.f32.partialorder %v3176, 0.0
      %vm3193 = vcmp.ge.f32.partialorder %v3177, 0.0
      %vm3194 = vcmp.ge.f32.partialorder %v3178, 0.0
      %vm3195 = vcmp.ge.f32.partialorder %v3179, 0.0
      %vm3196 = vcmp.ge.f32.partialorder %v3180, 0.0
      %vm3197 = vcmp.ge.f32.partialorder %v3181, 0.0
      %vm3198 = vcmp.ge.f32.partialorder %v3182, 0.0
      %v3199 = vmul.f32 %v3167, 0.2
      %v3200 = vmul.f32 %v3168, 0.2
      %v3201 = vmul.f32 %v3169, 0.2
      %v3202 = vmul.f32 %v3170, 0.2
      %v3203 = vmul.f32 %v3171, 0.2
      %v3204 = vmul.f32 %v3172, 0.2
      %v3205 = vmul.f32 %v3173, 0.2
      %v3206 = vmul.f32 %v3174, 0.2
      %v3207 = vmul.f32 %v3175, 0.2
      %v3208 = vmul.f32 %v3176, 0.2
      %v3209 = vmul.f32 %v3177, 0.2
      %v3210 = vmul.f32 %v3178, 0.2
      %v3211 = vmul.f32 %v3179, 0.2
      %v3212 = vmul.f32 %v3180, 0.2
      %v3213 = vmul.f32 %v3181, 0.2
      %v3214 = vmul.f32 %v3182, 0.2
      %v3215 = vsel %vm3183, %v3167, %v3199
      %v3216 = vsel %vm3184, %v3168, %v3200
      %v3217 = vsel %vm3185, %v3169, %v3201
      %v3218 = vsel %vm3186, %v3170, %v3202
      %v3219 = vsel %vm3187, %v3171, %v3203
      %v3220 = vsel %vm3188, %v3172, %v3204
      %v3221 = vsel %vm3189, %v3173, %v3205
      %v3222 = vsel %vm3190, %v3174, %v3206
      %v3223 = vsel %vm3191, %v3175, %v3207
      %v3224 = vsel %vm3192, %v3176, %v3208
      %v3225 = vsel %vm3193, %v3177, %v3209
      %v3226 = vsel %vm3194, %v3178, %v3210
      %v3227 = vsel %vm3195, %v3179, %v3211
      %v3228 = vsel %vm3196, %v3180, %v3212
      %v3229 = vsel %vm3197, %v3181, %v3213
      %v3230 = vsel %vm3198, %v3182, %v3214
      %v3231 = vld [vmem:[%s2 + $0x138] sm:$0xff]
      %v3232 = vld [vmem:[%s2 + $0x140] sm:$0xff]
      %v3233 = vld [vmem:[%s2 + $0x148] sm:$0xff]
      %v3234 = vld [vmem:[%s2 + $0x150] sm:$0xff]
      %v3235 = vld [vmem:[%s3 + $0xf] sm:$0x1]
      %v3236 = vperm.slane %v3235, 0
      %v3238 = vsel %vm1915, %v3215, 0
      %v3241 = vsel %vm1915, %v3216, 0
      %v3244 = vsel %vm1915, %v3217, 0
      %v3247 = vsel %vm1915, %v3218, 0
      %v3250 = vsel %vm1915, %v3219, 0
      %v3253 = vsel %vm1915, %v3220, 0
      %v3256 = vsel %vm1915, %v3221, 0
      %v3259 = vsel %vm1915, %v3222, 0
      %v3262 = vsel %vm1915, %v3223, 0
      %v3265 = vsel %vm1915, %v3224, 0
      %v3268 = vsel %vm1915, %v3225, 0
      %v3271 = vsel %vm1915, %v3226, 0
      %v3274 = vsel %vm1915, %v3227, 0
      %v3277 = vsel %vm1915, %v3228, 0
      %v3280 = vsel %vm1915, %v3229, 0
      %v3283 = vsel %vm1915, %v3230, 0
      %3285 = vmatpush.msra.mxu0 0.0
      %3286 = vmatpush.msra.mxu0 0.0
      %3287 = vmatpush.msra.mxu0 0.0
      %3288 = vmatpush.msra.mxu0 0.0
      %3289 = vmatpush.msra.mxu0 0.0
      %3290 = vmatpush.msra.mxu0 0.0
      %3291 = vmatpush.msra.mxu0 0.0
      %3292 = vmatpush.msra.mxu0 0.0
      %3293 = vmatpush.msra.mxu0 0.0
      %3294 = vmatpush.msra.mxu0 0.0
      %3295 = vmatpush.msra.mxu0 0.0
      %3296 = vmatpush.msra.mxu0 0.0
      %3297 = vmatpush.msra.mxu0 %v3234
      %3298 = vmatpush.msra.mxu0 %v3233
      %3299 = vmatpush.msra.mxu0 %v3232
      %3300 = vmatpush.msra.mxu0 %v3231
      %3301 = vmatmul.f32.gmra.mxu0 %v3238
      %v3302 = vpop.f32.mrf.mxu0
      %v3303 = vadd.f32 %v3236, %v3302
      %3304 = vmatmul.f32.gmra.mxu0 %v3241
      %v3305 = vpop.f32.mrf.mxu0
      %v3306 = vadd.f32 %v3236, %v3305
      %3307 = vmatmul.f32.gmra.mxu0 %v3244
      %v3308 = vpop.f32.mrf.mxu0
      %v3309 = vadd.f32 %v3236, %v3308
      %3310 = vmatmul.f32.gmra.mxu0 %v3247
      %v3311 = vpop.f32.mrf.mxu0
      %v3312 = vadd.f32 %v3236, %v3311
      %3313 = vmatmul.f32.gmra.mxu0 %v3250
      %v3314 = vpop.f32.mrf.mxu0
      %v3315 = vadd.f32 %v3236, %v3314
      %3316 = vmatmul.f32.gmra.mxu0 %v3253
      %v3317 = vpop.f32.mrf.mxu0
      %v3318 = vadd.f32 %v3236, %v3317
      %3319 = vmatmul.f32.gmra.mxu0 %v3256
      %v3320 = vpop.f32.mrf.mxu0
      %v3321 = vadd.f32 %v3236, %v3320
      %3322 = vmatmul.f32.gmra.mxu0 %v3259
      %v3323 = vpop.f32.mrf.mxu0
      %v3324 = vadd.f32 %v3236, %v3323
      %3325 = vmatmul.f32.gmra.mxu0 %v3262
      %v3326 = vpop.f32.mrf.mxu0
      %v3327 = vadd.f32 %v3236, %v3326
      %3328 = vmatmul.f32.gmra.mxu0 %v3265
      %v3329 = vpop.f32.mrf.mxu0
      %v3330 = vadd.f32 %v3236, %v3329
      %3331 = vmatmul.f32.gmra.mxu0 %v3268
      %v3332 = vpop.f32.mrf.mxu0
      %v3333 = vadd.f32 %v3236, %v3332
      %3334 = vmatmul.f32.gmra.mxu0 %v3271
      %v3335 = vpop.f32.mrf.mxu0
      %v3336 = vadd.f32 %v3236, %v3335
      %3337 = vmatmul.f32.gmra.mxu0 %v3274
      %v3338 = vpop.f32.mrf.mxu0
      %v3339 = vadd.f32 %v3236, %v3338
      %3340 = vmatmul.f32.gmra.mxu0 %v3277
      %v3341 = vpop.f32.mrf.mxu0
      %v3342 = vadd.f32 %v3236, %v3341
      %3343 = vmatmul.f32.gmra.mxu0 %v3280
      %v3344 = vpop.f32.mrf.mxu0
      %v3345 = vadd.f32 %v3236, %v3344
      %3346 = vmatmul.f32.gmra.mxu0 %v3283
      %v3347 = vpop.f32.mrf.mxu0
      %v3348 = vadd.f32 %v3236, %v3347
      %3349 = vdwg.mxu0
      %v3350 = vld [vmem:[%s3 + $0x10] sm:$0x1]
      %v3351 = vld [vmem:[%s3 + $0x11] sm:$0x1]
      %v3352 = vsel %vm265, %v3303, 0.0
      %3353 = vadd.xlane.f32.xlu0 %v3352
      %v3354 = vpop.xlane.xlu0 %3353
      %v3355 = vsel %vm265, %v3306, 0.0
      %3356 = vadd.xlane.f32.xlu0 %v3355
      %v3357 = vpop.xlane.xlu0 %3356
      %v3358 = vsel %vm265, %v3309, 0.0
      %3359 = vadd.xlane.f32.xlu0 %v3358
      %v3360 = vpop.xlane.xlu0 %3359
      %v3361 = vsel %vm265, %v3312, 0.0
      %3362 = vadd.xlane.f32.xlu0 %v3361
      %v3363 = vpop.xlane.xlu0 %3362
      %v3364 = vsel %vm265, %v3315, 0.0
      %3365 = vadd.xlane.f32.xlu0 %v3364
      %v3366 = vpop.xlane.xlu0 %3365
      %v3367 = vsel %vm265, %v3318, 0.0
      %3368 = vadd.xlane.f32.xlu0 %v3367
      %v3369 = vpop.xlane.xlu0 %3368
      %v3370 = vsel %vm265, %v3321, 0.0
      %3371 = vadd.xlane.f32.xlu0 %v3370
      %v3372 = vpop.xlane.xlu0 %3371
      %v3373 = vsel %vm265, %v3324, 0.0
      %3374 = vadd.xlane.f32.xlu0 %v3373
      %v3375 = vpop.xlane.xlu0 %3374
      %v3376 = vsel %vm265, %v3327, 0.0
      %3377 = vadd.xlane.f32.xlu0 %v3376
      %v3378 = vpop.xlane.xlu0 %3377
      %v3379 = vsel %vm265, %v3330, 0.0
      %3380 = vadd.xlane.f32.xlu0 %v3379
      %v3381 = vpop.xlane.xlu0 %3380
      %v3382 = vsel %vm265, %v3333, 0.0
      %3383 = vadd.xlane.f32.xlu0 %v3382
      %v3384 = vpop.xlane.xlu0 %3383
      %v3385 = vsel %vm265, %v3336, 0.0
      %3386 = vadd.xlane.f32.xlu0 %v3385
      %v3387 = vpop.xlane.xlu0 %3386
      %v3388 = vsel %vm265, %v3339, 0.0
      %3389 = vadd.xlane.f32.xlu0 %v3388
      %v3390 = vpop.xlane.xlu0 %3389
      %v3391 = vsel %vm265, %v3342, 0.0
      %3392 = vadd.xlane.f32.xlu0 %v3391
      %v3393 = vpop.xlane.xlu0 %3392
      %v3394 = vsel %vm265, %v3345, 0.0
      %3395 = vadd.xlane.f32.xlu0 %v3394
      %v3396 = vpop.xlane.xlu0 %3395
      %v3397 = vsel %vm265, %v3348, 0.0
      %3398 = vadd.xlane.f32.xlu0 %v3397
      %v3399 = vpop.xlane.xlu0 %3398
      %v3400 = vmul.f32 %v3303, %v3303
      %v3401 = vmul.f32 %v3306, %v3306
      %v3402 = vmul.f32 %v3309, %v3309
      %v3403 = vmul.f32 %v3312, %v3312
      %v3404 = vmul.f32 %v3315, %v3315
      %v3405 = vmul.f32 %v3318, %v3318
      %v3406 = vmul.f32 %v3321, %v3321
      %v3407 = vmul.f32 %v3324, %v3324
      %v3408 = vmul.f32 %v3327, %v3327
      %v3409 = vmul.f32 %v3330, %v3330
      %v3410 = vmul.f32 %v3333, %v3333
      %v3411 = vmul.f32 %v3336, %v3336
      %v3412 = vmul.f32 %v3339, %v3339
      %v3413 = vmul.f32 %v3342, %v3342
      %v3414 = vmul.f32 %v3345, %v3345
      %v3415 = vmul.f32 %v3348, %v3348
      %v3416 = vsel %vm265, %v3400, 0.0
      %3417 = vadd.xlane.f32.xlu0 %v3416
      %v3418 = vpop.xlane.xlu0 %3417
      %v3419 = vsel %vm265, %v3401, 0.0
      %3420 = vadd.xlane.f32.xlu0 %v3419
      %v3421 = vpop.xlane.xlu0 %3420
      %v3422 = vsel %vm265, %v3402, 0.0
      %3423 = vadd.xlane.f32.xlu0 %v3422
      %v3424 = vpop.xlane.xlu0 %3423
      %v3425 = vsel %vm265, %v3403, 0.0
      %3426 = vadd.xlane.f32.xlu0 %v3425
      %v3427 = vpop.xlane.xlu0 %3426
      %v3428 = vsel %vm265, %v3404, 0.0
      %3429 = vadd.xlane.f32.xlu0 %v3428
      %v3430 = vpop.xlane.xlu0 %3429
      %v3431 = vsel %vm265, %v3405, 0.0
      %3432 = vadd.xlane.f32.xlu0 %v3431
      %v3433 = vpop.xlane.xlu0 %3432
      %v3434 = vsel %vm265, %v3406, 0.0
      %3435 = vadd.xlane.f32.xlu0 %v3434
      %v3436 = vpop.xlane.xlu0 %3435
      %v3437 = vsel %vm265, %v3407, 0.0
      %3438 = vadd.xlane.f32.xlu0 %v3437
      %v3439 = vpop.xlane.xlu0 %3438
      %v3440 = vsel %vm265, %v3408, 0.0
      %3441 = vadd.xlane.f32.xlu0 %v3440
      %v3442 = vpop.xlane.xlu0 %3441
      %v3443 = vsel %vm265, %v3409, 0.0
      %3444 = vadd.xlane.f32.xlu0 %v3443
      %v3445 = vpop.xlane.xlu0 %3444
      %v3446 = vsel %vm265, %v3410, 0.0
      %3447 = vadd.xlane.f32.xlu0 %v3446
      %v3448 = vpop.xlane.xlu0 %3447
      %v3449 = vsel %vm265, %v3411, 0.0
      %3450 = vadd.xlane.f32.xlu0 %v3449
      %v3451 = vpop.xlane.xlu0 %3450
      %v3452 = vsel %vm265, %v3412, 0.0
      %3453 = vadd.xlane.f32.xlu0 %v3452
      %v3454 = vpop.xlane.xlu0 %3453
      %v3455 = vsel %vm265, %v3413, 0.0
      %3456 = vadd.xlane.f32.xlu0 %v3455
      %v3457 = vpop.xlane.xlu0 %3456
      %v3458 = vsel %vm265, %v3414, 0.0
      %3459 = vadd.xlane.f32.xlu0 %v3458
      %v3460 = vpop.xlane.xlu0 %3459
      %v3461 = vsel %vm265, %v3415, 0.0
      %3462 = vadd.xlane.f32.xlu0 %v3461
      %v3463 = vpop.xlane.xlu0 %3462
      %v3464 = vmul.f32 %v3354, 0.015625
      %v3465 = vmul.f32 %v3357, 0.015625
      %v3466 = vmul.f32 %v3360, 0.015625
      %v3467 = vmul.f32 %v3363, 0.015625
      %v3468 = vmul.f32 %v3366, 0.015625
      %v3469 = vmul.f32 %v3369, 0.015625
      %v3470 = vmul.f32 %v3372, 0.015625
      %v3471 = vmul.f32 %v3375, 0.015625
      %v3472 = vmul.f32 %v3378, 0.015625
      %v3473 = vmul.f32 %v3381, 0.015625
      %v3474 = vmul.f32 %v3384, 0.015625
      %v3475 = vmul.f32 %v3387, 0.015625
      %v3476 = vmul.f32 %v3390, 0.015625
      %v3477 = vmul.f32 %v3393, 0.015625
      %v3478 = vmul.f32 %v3396, 0.015625
      %v3479 = vmul.f32 %v3399, 0.015625
      %v3480 = vmul.f32 %v3418, 0.015625
      %v3481 = vmul.f32 %v3421, 0.015625
      %v3482 = vmul.f32 %v3424, 0.015625
      %v3483 = vmul.f32 %v3427, 0.015625
      %v3484 = vmul.f32 %v3430, 0.015625
      %v3485 = vmul.f32 %v3433, 0.015625
      %v3486 = vmul.f32 %v3436, 0.015625
      %v3487 = vmul.f32 %v3439, 0.015625
      %v3488 = vmul.f32 %v3442, 0.015625
      %v3489 = vmul.f32 %v3445, 0.015625
      %v3490 = vmul.f32 %v3448, 0.015625
      %v3491 = vmul.f32 %v3451, 0.015625
      %v3492 = vmul.f32 %v3454, 0.015625
      %v3493 = vmul.f32 %v3457, 0.015625
      %v3494 = vmul.f32 %v3460, 0.015625
      %v3495 = vmul.f32 %v3463, 0.015625
      %v3496 = vmul.f32 %v3464, %v3464
      %v3497 = vmul.f32 %v3465, %v3465
      %v3498 = vmul.f32 %v3466, %v3466
      %v3499 = vmul.f32 %v3467, %v3467
      %v3500 = vmul.f32 %v3468, %v3468
      %v3501 = vmul.f32 %v3469, %v3469
      %v3502 = vmul.f32 %v3470, %v3470
      %v3503 = vmul.f32 %v3471, %v3471
      %v3504 = vmul.f32 %v3472, %v3472
      %v3505 = vmul.f32 %v3473, %v3473
      %v3506 = vmul.f32 %v3474, %v3474
      %v3507 = vmul.f32 %v3475, %v3475
      %v3508 = vmul.f32 %v3476, %v3476
      %v3509 = vmul.f32 %v3477, %v3477
      %v3510 = vmul.f32 %v3478, %v3478
      %v3511 = vmul.f32 %v3479, %v3479
      %v3512 = vsub.f32 %v3480, %v3496
      %v3513 = vsub.f32 %v3481, %v3497
      %v3514 = vsub.f32 %v3482, %v3498
      %v3515 = vsub.f32 %v3483, %v3499
      %v3516 = vsub.f32 %v3484, %v3500
      %v3517 = vsub.f32 %v3485, %v3501
      %v3518 = vsub.f32 %v3486, %v3502
      %v3519 = vsub.f32 %v3487, %v3503
      %v3520 = vsub.f32 %v3488, %v3504
      %v3521 = vsub.f32 %v3489, %v3505
      %v3522 = vsub.f32 %v3490, %v3506
      %v3523 = vsub.f32 %v3491, %v3507
      %v3524 = vsub.f32 %v3492, %v3508
      %v3525 = vsub.f32 %v3493, %v3509
      %v3526 = vsub.f32 %v3494, %v3510
      %v3527 = vsub.f32 %v3495, %v3511
      %v3528 = vsub.f32 %v3303, %v3464
      %v3529 = vsub.f32 %v3306, %v3465
      %v3530 = vsub.f32 %v3309, %v3466
      %v3531 = vsub.f32 %v3312, %v3467
      %v3532 = vsub.f32 %v3315, %v3468
      %v3533 = vsub.f32 %v3318, %v3469
      %v3534 = vsub.f32 %v3321, %v3470
      %v3535 = vsub.f32 %v3324, %v3471
      %v3536 = vsub.f32 %v3327, %v3472
      %v3537 = vsub.f32 %v3330, %v3473
      %v3538 = vsub.f32 %v3333, %v3474
      %v3539 = vsub.f32 %v3336, %v3475
      %v3540 = vsub.f32 %v3339, %v3476
      %v3541 = vsub.f32 %v3342, %v3477
      %v3542 = vsub.f32 %v3345, %v3478
      %v3543 = vsub.f32 %v3348, %v3479
      %v3544 = vadd.f32 %v3512, 1e-05
      %v3545 = vadd.f32 %v3513, 1e-05
      %v3546 = vadd.f32 %v3514, 1e-05
      %v3547 = vadd.f32 %v3515, 1e-05
      %v3548 = vadd.f32 %v3516, 1e-05
      %v3549 = vadd.f32 %v3517, 1e-05
      %v3550 = vadd.f32 %v3518, 1e-05
      %v3551 = vadd.f32 %v3519, 1e-05
      %v3552 = vadd.f32 %v3520, 1e-05
      %v3553 = vadd.f32 %v3521, 1e-05
      %v3554 = vadd.f32 %v3522, 1e-05
      %v3555 = vadd.f32 %v3523, 1e-05
      %v3556 = vadd.f32 %v3524, 1e-05
      %v3557 = vadd.f32 %v3525, 1e-05
      %v3558 = vadd.f32 %v3526, 1e-05
      %v3559 = vadd.f32 %v3527, 1e-05
      %v3560 = vrsqrt.pop %v3544
      %v3561 = vmul.f32 %v3560, %v3544
      %v3562 = vmul.f32 %v3561, %v3560
      %v3563 = vmul.f32 0.5, %v3562
      %v3564 = vsub.f32 1.5, %v3563
      %v3565 = vmul.f32 %v3560, %v3564
      %vm3566 = vweird.f32 %v3544
      %vm3567 = vweird.f32 %v3560
      %vm3568 = vmor %vm3566, %vm3567
      %v3569 = vsel %vm3568, %v3560, %v3565
      %v3570 = vrsqrt.pop %v3545
      %v3571 = vmul.f32 %v3570, %v3545
      %v3572 = vmul.f32 %v3571, %v3570
      %v3573 = vmul.f32 0.5, %v3572
      %v3574 = vsub.f32 1.5, %v3573
      %v3575 = vmul.f32 %v3570, %v3574
      %vm3576 = vweird.f32 %v3545
      %vm3577 = vweird.f32 %v3570
      %vm3578 = vmor %vm3576, %vm3577
      %v3579 = vsel %vm3578, %v3570, %v3575
      %v3580 = vrsqrt.pop %v3546
      %v3581 = vmul.f32 %v3580, %v3546
      %v3582 = vmul.f32 %v3581, %v3580
      %v3583 = vmul.f32 0.5, %v3582
      %v3584 = vsub.f32 1.5, %v3583
      %v3585 = vmul.f32 %v3580, %v3584
      %vm3586 = vweird.f32 %v3546
      %vm3587 = vweird.f32 %v3580
      %vm3588 = vmor %vm3586, %vm3587
      %v3589 = vsel %vm3588, %v3580, %v3585
      %v3590 = vrsqrt.pop %v3547
      %v3591 = vmul.f32 %v3590, %v3547
      %v3592 = vmul.f32 %v3591, %v3590
      %v3593 = vmul.f32 0.5, %v3592
      %v3594 = vsub.f32 1.5, %v3593
      %v3595 = vmul.f32 %v3590, %v3594
      %vm3596 = vweird.f32 %v3547
      %vm3597 = vweird.f32 %v3590
      %vm3598 = vmor %vm3596, %vm3597
      %v3599 = vsel %vm3598, %v3590, %v3595
      %v3600 = vrsqrt.pop %v3548
      %v3601 = vmul.f32 %v3600, %v3548
      %v3602 = vmul.f32 %v3601, %v3600
      %v3603 = vmul.f32 0.5, %v3602
      %v3604 = vsub.f32 1.5, %v3603
      %v3605 = vmul.f32 %v3600, %v3604
      %vm3606 = vweird.f32 %v3548
      %vm3607 = vweird.f32 %v3600
      %vm3608 = vmor %vm3606, %vm3607
      %v3609 = vsel %vm3608, %v3600, %v3605
      %v3610 = vrsqrt.pop %v3549
      %v3611 = vmul.f32 %v3610, %v3549
      %v3612 = vmul.f32 %v3611, %v3610
      %v3613 = vmul.f32 0.5, %v3612
      %v3614 = vsub.f32 1.5, %v3613
      %v3615 = vmul.f32 %v3610, %v3614
      %vm3616 = vweird.f32 %v3549
      %vm3617 = vweird.f32 %v3610
      %vm3618 = vmor %vm3616, %vm3617
      %v3619 = vsel %vm3618, %v3610, %v3615
      %v3620 = vrsqrt.pop %v3550
      %v3621 = vmul.f32 %v3620, %v3550
      %v3622 = vmul.f32 %v3621, %v3620
      %v3623 = vmul.f32 0.5, %v3622
      %v3624 = vsub.f32 1.5, %v3623
      %v3625 = vmul.f32 %v3620, %v3624
      %vm3626 = vweird.f32 %v3550
      %vm3627 = vweird.f32 %v3620
      %vm3628 = vmor %vm3626, %vm3627
      %v3629 = vsel %vm3628, %v3620, %v3625
      %v3630 = vrsqrt.pop %v3551
      %v3631 = vmul.f32 %v3630, %v3551
      %v3632 = vmul.f32 %v3631, %v3630
      %v3633 = vmul.f32 0.5, %v3632
      %v3634 = vsub.f32 1.5, %v3633
      %v3635 = vmul.f32 %v3630, %v3634
      %vm3636 = vweird.f32 %v3551
      %vm3637 = vweird.f32 %v3630
      %vm3638 = vmor %vm3636, %vm3637
      %v3639 = vsel %vm3638, %v3630, %v3635
      %v3640 = vrsqrt.pop %v3552
      %v3641 = vmul.f32 %v3640, %v3552
      %v3642 = vmul.f32 %v3641, %v3640
      %v3643 = vmul.f32 0.5, %v3642
      %v3644 = vsub.f32 1.5, %v3643
      %v3645 = vmul.f32 %v3640, %v3644
      %vm3646 = vweird.f32 %v3552
      %vm3647 = vweird.f32 %v3640
      %vm3648 = vmor %vm3646, %vm3647
      %v3649 = vsel %vm3648, %v3640, %v3645
      %v3650 = vrsqrt.pop %v3553
      %v3651 = vmul.f32 %v3650, %v3553
      %v3652 = vmul.f32 %v3651, %v3650
      %v3653 = vmul.f32 0.5, %v3652
      %v3654 = vsub.f32 1.5, %v3653
      %v3655 = vmul.f32 %v3650, %v3654
      %vm3656 = vweird.f32 %v3553
      %vm3657 = vweird.f32 %v3650
      %vm3658 = vmor %vm3656, %vm3657
      %v3659 = vsel %vm3658, %v3650, %v3655
      %v3660 = vrsqrt.pop %v3554
      %v3661 = vmul.f32 %v3660, %v3554
      %v3662 = vmul.f32 %v3661, %v3660
      %v3663 = vmul.f32 0.5, %v3662
      %v3664 = vsub.f32 1.5, %v3663
      %v3665 = vmul.f32 %v3660, %v3664
      %vm3666 = vweird.f32 %v3554
      %vm3667 = vweird.f32 %v3660
      %vm3668 = vmor %vm3666, %vm3667
      %v3669 = vsel %vm3668, %v3660, %v3665
      %v3670 = vrsqrt.pop %v3555
      %v3671 = vmul.f32 %v3670, %v3555
      %v3672 = vmul.f32 %v3671, %v3670
      %v3673 = vmul.f32 0.5, %v3672
      %v3674 = vsub.f32 1.5, %v3673
      %v3675 = vmul.f32 %v3670, %v3674
      %vm3676 = vweird.f32 %v3555
      %vm3677 = vweird.f32 %v3670
      %vm3678 = vmor %vm3676, %vm3677
      %v3679 = vsel %vm3678, %v3670, %v3675
      %v3680 = vrsqrt.pop %v3556
      %v3681 = vmul.f32 %v3680, %v3556
      %v3682 = vmul.f32 %v3681, %v3680
      %v3683 = vmul.f32 0.5, %v3682
      %v3684 = vsub.f32 1.5, %v3683
      %v3685 = vmul.f32 %v3680, %v3684
      %vm3686 = vweird.f32 %v3556
      %vm3687 = vweird.f32 %v3680
      %vm3688 = vmor %vm3686, %vm3687
      %v3689 = vsel %vm3688, %v3680, %v3685
      %v3690 = vrsqrt.pop %v3557
      %v3691 = vmul.f32 %v3690, %v3557
      %v3692 = vmul.f32 %v3691, %v3690
      %v3693 = vmul.f32 0.5, %v3692
      %v3694 = vsub.f32 1.5, %v3693
      %v3695 = vmul.f32 %v3690, %v3694
      %vm3696 = vweird.f32 %v3557
      %vm3697 = vweird.f32 %v3690
      %vm3698 = vmor %vm3696, %vm3697
      %v3699 = vsel %vm3698, %v3690, %v3695
      %v3700 = vrsqrt.pop %v3558
      %v3701 = vmul.f32 %v3700, %v3558
      %v3702 = vmul.f32 %v3701, %v3700
      %v3703 = vmul.f32 0.5, %v3702
      %v3704 = vsub.f32 1.5, %v3703
      %v3705 = vmul.f32 %v3700, %v3704
      %vm3706 = vweird.f32 %v3558
      %vm3707 = vweird.f32 %v3700
      %vm3708 = vmor %vm3706, %vm3707
      %v3709 = vsel %vm3708, %v3700, %v3705
      %v3710 = vrsqrt.pop %v3559
      %v3711 = vmul.f32 %v3710, %v3559
      %v3712 = vmul.f32 %v3711, %v3710
      %v3713 = vmul.f32 0.5, %v3712
      %v3714 = vsub.f32 1.5, %v3713
      %v3715 = vmul.f32 %v3710, %v3714
      %vm3716 = vweird.f32 %v3559
      %vm3717 = vweird.f32 %v3710
      %vm3718 = vmor %vm3716, %vm3717
      %v3719 = vsel %vm3718, %v3710, %v3715
      %v3720 = vmul.f32 %v3528, %v3569
      %v3721 = vmul.f32 %v3529, %v3579
      %v3722 = vmul.f32 %v3530, %v3589
      %v3723 = vmul.f32 %v3531, %v3599
      %v3724 = vmul.f32 %v3532, %v3609
      %v3725 = vmul.f32 %v3533, %v3619
      %v3726 = vmul.f32 %v3534, %v3629
      %v3727 = vmul.f32 %v3535, %v3639
      %v3728 = vmul.f32 %v3536, %v3649
      %v3729 = vmul.f32 %v3537, %v3659
      %v3730 = vmul.f32 %v3538, %v3669
      %v3731 = vmul.f32 %v3539, %v3679
      %v3732 = vmul.f32 %v3540, %v3689
      %v3733 = vmul.f32 %v3541, %v3699
      %v3734 = vmul.f32 %v3542, %v3709
      %v3735 = vmul.f32 %v3543, %v3719
      %v3736 = vperm.slane %v3350, 0
      %v3737 = vmul.f32 %v3720, %v3736
      %v3738 = vmul.f32 %v3721, %v3736
      %v3739 = vmul.f32 %v3722, %v3736
      %v3740 = vmul.f32 %v3723, %v3736
      %v3741 = vmul.f32 %v3724, %v3736
      %v3742 = vmul.f32 %v3725, %v3736
      %v3743 = vmul.f32 %v3726, %v3736
      %v3744 = vmul.f32 %v3727, %v3736
      %v3745 = vmul.f32 %v3728, %v3736
      %v3746 = vmul.f32 %v3729, %v3736
      %v3747 = vmul.f32 %v3730, %v3736
      %v3748 = vmul.f32 %v3731, %v3736
      %v3749 = vmul.f32 %v3732, %v3736
      %v3750 = vmul.f32 %v3733, %v3736
      %v3751 = vmul.f32 %v3734, %v3736
      %v3752 = vmul.f32 %v3735, %v3736
      %v3753 = vperm.slane %v3351, 0
      %v3754 = vadd.f32 %v3737, %v3753
      %v3755 = vadd.f32 %v3738, %v3753
      %v3756 = vadd.f32 %v3739, %v3753
      %v3757 = vadd.f32 %v3740, %v3753
      %v3758 = vadd.f32 %v3741, %v3753
      %v3759 = vadd.f32 %v3742, %v3753
      %v3760 = vadd.f32 %v3743, %v3753
      %v3761 = vadd.f32 %v3744, %v3753
      %v3762 = vadd.f32 %v3745, %v3753
      %v3763 = vadd.f32 %v3746, %v3753
      %v3764 = vadd.f32 %v3747, %v3753
      %v3765 = vadd.f32 %v3748, %v3753
      %v3766 = vadd.f32 %v3749, %v3753
      %v3767 = vadd.f32 %v3750, %v3753
      %v3768 = vadd.f32 %v3751, %v3753
      %v3769 = vadd.f32 %v3752, %v3753
      %vm3770 = vcmp.ge.f32.partialorder %v3754, 0.0
      %vm3771 = vcmp.ge.f32.partialorder %v3755, 0.0
      %vm3772 = vcmp.ge.f32.partialorder %v3756, 0.0
      %vm3773 = vcmp.ge.f32.partialorder %v3757, 0.0
      %vm3774 = vcmp.ge.f32.partialorder %v3758, 0.0
      %vm3775 = vcmp.ge.f32.partialorder %v3759, 0.0
      %vm3776 = vcmp.ge.f32.partialorder %v3760, 0.0
      %vm3777 = vcmp.ge.f32.partialorder %v3761, 0.0
      %vm3778 = vcmp.ge.f32.partialorder %v3762, 0.0
      %vm3779 = vcmp.ge.f32.partialorder %v3763, 0.0
      %vm3780 = vcmp.ge.f32.partialorder %v3764, 0.0
      %vm3781 = vcmp.ge.f32.partialorder %v3765, 0.0
      %vm3782 = vcmp.ge.f32.partialorder %v3766, 0.0
      %vm3783 = vcmp.ge.f32.partialorder %v3767, 0.0
      %vm3784 = vcmp.ge.f32.partialorder %v3768, 0.0
      %vm3785 = vcmp.ge.f32.partialorder %v3769, 0.0
      %v3786 = vmul.f32 %v3754, 0.2
      %v3787 = vmul.f32 %v3755, 0.2
      %v3788 = vmul.f32 %v3756, 0.2
      %v3789 = vmul.f32 %v3757, 0.2
      %v3790 = vmul.f32 %v3758, 0.2
      %v3791 = vmul.f32 %v3759, 0.2
      %v3792 = vmul.f32 %v3760, 0.2
      %v3793 = vmul.f32 %v3761, 0.2
      %v3794 = vmul.f32 %v3762, 0.2
      %v3795 = vmul.f32 %v3763, 0.2
      %v3796 = vmul.f32 %v3764, 0.2
      %v3797 = vmul.f32 %v3765, 0.2
      %v3798 = vmul.f32 %v3766, 0.2
      %v3799 = vmul.f32 %v3767, 0.2
      %v3800 = vmul.f32 %v3768, 0.2
      %v3801 = vmul.f32 %v3769, 0.2
      %v3802 = vsel %vm3770, %v3754, %v3786
      %v3803 = vsel %vm3771, %v3755, %v3787
      %v3804 = vsel %vm3772, %v3756, %v3788
      %v3805 = vsel %vm3773, %v3757, %v3789
      %v3806 = vsel %vm3774, %v3758, %v3790
      %v3807 = vsel %vm3775, %v3759, %v3791
      %v3808 = vsel %vm3776, %v3760, %v3792
      %v3809 = vsel %vm3777, %v3761, %v3793
      %v3810 = vsel %vm3778, %v3762, %v3794
      %v3811 = vsel %vm3779, %v3763, %v3795
      %v3812 = vsel %vm3780, %v3764, %v3796
      %v3813 = vsel %vm3781, %v3765, %v3797
      %v3814 = vsel %vm3782, %v3766, %v3798
      %v3815 = vsel %vm3783, %v3767, %v3799
      %v3816 = vsel %vm3784, %v3768, %v3800
      %v3817 = vsel %vm3785, %v3769, %v3801
      %v3818 = vld [vmem:[%s2 + $0x158] sm:$0xff]
      %v3819 = vld [vmem:[%s2 + $0x160] sm:$0xff]
      %v3820 = vld [vmem:[%s2 + $0x168] sm:$0xff]
      %v3821 = vld [vmem:[%s2 + $0x170] sm:$0xff]
      %v3822 = vld [vmem:[%s2 + $0x178] sm:$0xff]
      %v3823 = vld [vmem:[%s2 + $0x180] sm:$0xff]
      %v3824 = vld [vmem:[%s2 + $0x188] sm:$0xff]
      %v3825 = vld [vmem:[%s2 + $0x190] sm:$0xff]
      %v3826 = vld [vmem:[%s3 + $0x12] sm:$0x1]
      %v3827 = vperm.slane %v3826, 0
      %v3829 = vsel %vm265, %v3802, 0
      %v3832 = vsel %vm265, %v3803, 0
      %v3835 = vsel %vm265, %v3804, 0
      %v3838 = vsel %vm265, %v3805, 0
      %v3841 = vsel %vm265, %v3806, 0
      %v3844 = vsel %vm265, %v3807, 0
      %v3847 = vsel %vm265, %v3808, 0
      %v3850 = vsel %vm265, %v3809, 0
      %v3853 = vsel %vm265, %v3810, 0
      %v3856 = vsel %vm265, %v3811, 0
      %v3859 = vsel %vm265, %v3812, 0
      %v3862 = vsel %vm265, %v3813, 0
      %v3865 = vsel %vm265, %v3814, 0
      %v3868 = vsel %vm265, %v3815, 0
      %v3871 = vsel %vm265, %v3816, 0
      %v3874 = vsel %vm265, %v3817, 0
      %3876 = vmatpush.msra.mxu0 0.0
      %3877 = vmatpush.msra.mxu0 0.0
      %3878 = vmatpush.msra.mxu0 0.0
      %3879 = vmatpush.msra.mxu0 0.0
      %3880 = vmatpush.msra.mxu0 0.0
      %3881 = vmatpush.msra.mxu0 0.0
      %3882 = vmatpush.msra.mxu0 0.0
      %3883 = vmatpush.msra.mxu0 0.0
      %3884 = vmatpush.msra.mxu0 %v3825
      %3885 = vmatpush.msra.mxu0 %v3824
      %3886 = vmatpush.msra.mxu0 %v3823
      %3887 = vmatpush.msra.mxu0 %v3822
      %3888 = vmatpush.msra.mxu0 %v3821
      %3889 = vmatpush.msra.mxu0 %v3820
      %3890 = vmatpush.msra.mxu0 %v3819
      %3891 = vmatpush.msra.mxu0 %v3818
      %3892 = vmatmul.f32.gmra.mxu0 %v3829
      %v3893 = vpop.f32.mrf.mxu0
      %v3894 = vadd.f32 %v3827, %v3893
      %3895 = vmatmul.f32.gmra.mxu0 %v3832
      %v3896 = vpop.f32.mrf.mxu0
      %v3897 = vadd.f32 %v3827, %v3896
      %3898 = vmatmul.f32.gmra.mxu0 %v3835
      %v3899 = vpop.f32.mrf.mxu0
      %v3900 = vadd.f32 %v3827, %v3899
      %3901 = vmatmul.f32.gmra.mxu0 %v3838
      %v3902 = vpop.f32.mrf.mxu0
      %v3903 = vadd.f32 %v3827, %v3902
      %3904 = vmatmul.f32.gmra.mxu0 %v3841
      %v3905 = vpop.f32.mrf.mxu0
      %v3906 = vadd.f32 %v3827, %v3905
      %3907 = vmatmul.f32.gmra.mxu0 %v3844
      %v3908 = vpop.f32.mrf.mxu0
      %v3909 = vadd.f32 %v3827, %v3908
      %3910 = vmatmul.f32.gmra.mxu0 %v3847
      %v3911 = vpop.f32.mrf.mxu0
      %v3912 = vadd.f32 %v3827, %v3911
      %3913 = vmatmul.f32.gmra.mxu0 %v3850
      %v3914 = vpop.f32.mrf.mxu0
      %v3915 = vadd.f32 %v3827, %v3914
      %3916 = vmatmul.f32.gmra.mxu0 %v3853
      %v3917 = vpop.f32.mrf.mxu0
      %v3918 = vadd.f32 %v3827, %v3917
      %3919 = vmatmul.f32.gmra.mxu0 %v3856
      %v3920 = vpop.f32.mrf.mxu0
      %v3921 = vadd.f32 %v3827, %v3920
      %3922 = vmatmul.f32.gmra.mxu0 %v3859
      %v3923 = vpop.f32.mrf.mxu0
      %v3924 = vadd.f32 %v3827, %v3923
      %3925 = vmatmul.f32.gmra.mxu0 %v3862
      %v3926 = vpop.f32.mrf.mxu0
      %v3927 = vadd.f32 %v3827, %v3926
      %3928 = vmatmul.f32.gmra.mxu0 %v3865
      %v3929 = vpop.f32.mrf.mxu0
      %v3930 = vadd.f32 %v3827, %v3929
      %3931 = vmatmul.f32.gmra.mxu0 %v3868
      %v3932 = vpop.f32.mrf.mxu0
      %v3933 = vadd.f32 %v3827, %v3932
      %3934 = vmatmul.f32.gmra.mxu0 %v3871
      %v3935 = vpop.f32.mrf.mxu0
      %v3936 = vadd.f32 %v3827, %v3935
      %3937 = vmatmul.f32.gmra.mxu0 %v3874
      %v3938 = vpop.f32.mrf.mxu0
      %v3939 = vadd.f32 %v3827, %v3938
      %3940 = vdwg.mxu0
      %v3941 = vld [vmem:[%s3 + $0x13] sm:$0x1]
      %v3942 = vld [vmem:[%s3 + $0x14] sm:$0x1]
      %v3943 = vsel %vm265, %v3894, 0.0
      %3944 = vadd.xlane.f32.xlu0 %v3943
      %v3945 = vpop.xlane.xlu0 %3944
      %v3946 = vsel %vm265, %v3897, 0.0
      %3947 = vadd.xlane.f32.xlu0 %v3946
      %v3948 = vpop.xlane.xlu0 %3947
      %v3949 = vsel %vm265, %v3900, 0.0
      %3950 = vadd.xlane.f32.xlu0 %v3949
      %v3951 = vpop.xlane.xlu0 %3950
      %v3952 = vsel %vm265, %v3903, 0.0
      %3953 = vadd.xlane.f32.xlu0 %v3952
      %v3954 = vpop.xlane.xlu0 %3953
      %v3955 = vsel %vm265, %v3906, 0.0
      %3956 = vadd.xlane.f32.xlu0 %v3955
      %v3957 = vpop.xlane.xlu0 %3956
      %v3958 = vsel %vm265, %v3909, 0.0
      %3959 = vadd.xlane.f32.xlu0 %v3958
      %v3960 = vpop.xlane.xlu0 %3959
      %v3961 = vsel %vm265, %v3912, 0.0
      %3962 = vadd.xlane.f32.xlu0 %v3961
      %v3963 = vpop.xlane.xlu0 %3962
      %v3964 = vsel %vm265, %v3915, 0.0
      %3965 = vadd.xlane.f32.xlu0 %v3964
      %v3966 = vpop.xlane.xlu0 %3965
      %v3967 = vsel %vm265, %v3918, 0.0
      %3968 = vadd.xlane.f32.xlu0 %v3967
      %v3969 = vpop.xlane.xlu0 %3968
      %v3970 = vsel %vm265, %v3921, 0.0
      %3971 = vadd.xlane.f32.xlu0 %v3970
      %v3972 = vpop.xlane.xlu0 %3971
      %v3973 = vsel %vm265, %v3924, 0.0
      %3974 = vadd.xlane.f32.xlu0 %v3973
      %v3975 = vpop.xlane.xlu0 %3974
      %v3976 = vsel %vm265, %v3927, 0.0
      %3977 = vadd.xlane.f32.xlu0 %v3976
      %v3978 = vpop.xlane.xlu0 %3977
      %v3979 = vsel %vm265, %v3930, 0.0
      %3980 = vadd.xlane.f32.xlu0 %v3979
      %v3981 = vpop.xlane.xlu0 %3980
      %v3982 = vsel %vm265, %v3933, 0.0
      %3983 = vadd.xlane.f32.xlu0 %v3982
      %v3984 = vpop.xlane.xlu0 %3983
      %v3985 = vsel %vm265, %v3936, 0.0
      %3986 = vadd.xlane.f32.xlu0 %v3985
      %v3987 = vpop.xlane.xlu0 %3986
      %v3988 = vsel %vm265, %v3939, 0.0
      %3989 = vadd.xlane.f32.xlu0 %v3988
      %v3990 = vpop.xlane.xlu0 %3989
      %v3991 = vmul.f32 %v3894, %v3894
      %v3992 = vmul.f32 %v3897, %v3897
      %v3993 = vmul.f32 %v3900, %v3900
      %v3994 = vmul.f32 %v3903, %v3903
      %v3995 = vmul.f32 %v3906, %v3906
      %v3996 = vmul.f32 %v3909, %v3909
      %v3997 = vmul.f32 %v3912, %v3912
      %v3998 = vmul.f32 %v3915, %v3915
      %v3999 = vmul.f32 %v3918, %v3918
      %v4000 = vmul.f32 %v3921, %v3921
      %v4001 = vmul.f32 %v3924, %v3924
      %v4002 = vmul.f32 %v3927, %v3927
      %v4003 = vmul.f32 %v3930, %v3930
      %v4004 = vmul.f32 %v3933, %v3933
      %v4005 = vmul.f32 %v3936, %v3936
      %v4006 = vmul.f32 %v3939, %v3939
      %v4007 = vsel %vm265, %v3991, 0.0
      %4008 = vadd.xlane.f32.xlu0 %v4007
      %v4009 = vpop.xlane.xlu0 %4008
      %v4010 = vsel %vm265, %v3992, 0.0
      %4011 = vadd.xlane.f32.xlu0 %v4010
      %v4012 = vpop.xlane.xlu0 %4011
      %v4013 = vsel %vm265, %v3993, 0.0
      %4014 = vadd.xlane.f32.xlu0 %v4013
      %v4015 = vpop.xlane.xlu0 %4014
      %v4016 = vsel %vm265, %v3994, 0.0
      %4017 = vadd.xlane.f32.xlu0 %v4016
      %v4018 = vpop.xlane.xlu0 %4017
      %v4019 = vsel %vm265, %v3995, 0.0
      %4020 = vadd.xlane.f32.xlu0 %v4019
      %v4021 = vpop.xlane.xlu0 %4020
      %v4022 = vsel %vm265, %v3996, 0.0
      %4023 = vadd.xlane.f32.xlu0 %v4022
      %v4024 = vpop.xlane.xlu0 %4023
      %v4025 = vsel %vm265, %v3997, 0.0
      %4026 = vadd.xlane.f32.xlu0 %v4025
      %v4027 = vpop.xlane.xlu0 %4026
      %v4028 = vsel %vm265, %v3998, 0.0
      %4029 = vadd.xlane.f32.xlu0 %v4028
      %v4030 = vpop.xlane.xlu0 %4029
      %v4031 = vsel %vm265, %v3999, 0.0
      %4032 = vadd.xlane.f32.xlu0 %v4031
      %v4033 = vpop.xlane.xlu0 %4032
      %v4034 = vsel %vm265, %v4000, 0.0
      %4035 = vadd.xlane.f32.xlu0 %v4034
      %v4036 = vpop.xlane.xlu0 %4035
      %v4037 = vsel %vm265, %v4001, 0.0
      %4038 = vadd.xlane.f32.xlu0 %v4037
      %v4039 = vpop.xlane.xlu0 %4038
      %v4040 = vsel %vm265, %v4002, 0.0
      %4041 = vadd.xlane.f32.xlu0 %v4040
      %v4042 = vpop.xlane.xlu0 %4041
      %v4043 = vsel %vm265, %v4003, 0.0
      %4044 = vadd.xlane.f32.xlu0 %v4043
      %v4045 = vpop.xlane.xlu0 %4044
      %v4046 = vsel %vm265, %v4004, 0.0
      %4047 = vadd.xlane.f32.xlu0 %v4046
      %v4048 = vpop.xlane.xlu0 %4047
      %v4049 = vsel %vm265, %v4005, 0.0
      %4050 = vadd.xlane.f32.xlu0 %v4049
      %v4051 = vpop.xlane.xlu0 %4050
      %v4052 = vsel %vm265, %v4006, 0.0
      %4053 = vadd.xlane.f32.xlu0 %v4052
      %v4054 = vpop.xlane.xlu0 %4053
      %v4055 = vmul.f32 %v3945, 0.015625
      %v4056 = vmul.f32 %v3948, 0.015625
      %v4057 = vmul.f32 %v3951, 0.015625
      %v4058 = vmul.f32 %v3954, 0.015625
      %v4059 = vmul.f32 %v3957, 0.015625
      %v4060 = vmul.f32 %v3960, 0.015625
      %v4061 = vmul.f32 %v3963, 0.015625
      %v4062 = vmul.f32 %v3966, 0.015625
      %v4063 = vmul.f32 %v3969, 0.015625
      %v4064 = vmul.f32 %v3972, 0.015625
      %v4065 = vmul.f32 %v3975, 0.015625
      %v4066 = vmul.f32 %v3978, 0.015625
      %v4067 = vmul.f32 %v3981, 0.015625
      %v4068 = vmul.f32 %v3984, 0.015625
      %v4069 = vmul.f32 %v3987, 0.015625
      %v4070 = vmul.f32 %v3990, 0.015625
      %v4071 = vmul.f32 %v4009, 0.015625
      %v4072 = vmul.f32 %v4012, 0.015625
      %v4073 = vmul.f32 %v4015, 0.015625
      %v4074 = vmul.f32 %v4018, 0.015625
      %v4075 = vmul.f32 %v4021, 0.015625
      %v4076 = vmul.f32 %v4024, 0.015625
      %v4077 = vmul.f32 %v4027, 0.015625
      %v4078 = vmul.f32 %v4030, 0.015625
      %v4079 = vmul.f32 %v4033, 0.015625
      %v4080 = vmul.f32 %v4036, 0.015625
      %v4081 = vmul.f32 %v4039, 0.015625
      %v4082 = vmul.f32 %v4042, 0.015625
      %v4083 = vmul.f32 %v4045, 0.015625
      %v4084 = vmul.f32 %v4048, 0.015625
      %v4085 = vmul.f32 %v4051, 0.015625
      %v4086 = vmul.f32 %v4054, 0.015625
      %v4087 = vmul.f32 %v4055, %v4055
      %v4088 = vmul.f32 %v4056, %v4056
      %v4089 = vmul.f32 %v4057, %v4057
      %v4090 = vmul.f32 %v4058, %v4058
      %v4091 = vmul.f32 %v4059, %v4059
      %v4092 = vmul.f32 %v4060, %v4060
      %v4093 = vmul.f32 %v4061, %v4061
      %v4094 = vmul.f32 %v4062, %v4062
      %v4095 = vmul.f32 %v4063, %v4063
      %v4096 = vmul.f32 %v4064, %v4064
      %v4097 = vmul.f32 %v4065, %v4065
      %v4098 = vmul.f32 %v4066, %v4066
      %v4099 = vmul.f32 %v4067, %v4067
      %v4100 = vmul.f32 %v4068, %v4068
      %v4101 = vmul.f32 %v4069, %v4069
      %v4102 = vmul.f32 %v4070, %v4070
      %v4103 = vsub.f32 %v4071, %v4087
      %v4104 = vsub.f32 %v4072, %v4088
      %v4105 = vsub.f32 %v4073, %v4089
      %v4106 = vsub.f32 %v4074, %v4090
      %v4107 = vsub.f32 %v4075, %v4091
      %v4108 = vsub.f32 %v4076, %v4092
      %v4109 = vsub.f32 %v4077, %v4093
      %v4110 = vsub.f32 %v4078, %v4094
      %v4111 = vsub.f32 %v4079, %v4095
      %v4112 = vsub.f32 %v4080, %v4096
      %v4113 = vsub.f32 %v4081, %v4097
      %v4114 = vsub.f32 %v4082, %v4098
      %v4115 = vsub.f32 %v4083, %v4099
      %v4116 = vsub.f32 %v4084, %v4100
      %v4117 = vsub.f32 %v4085, %v4101
      %v4118 = vsub.f32 %v4086, %v4102
      %v4119 = vsub.f32 %v3894, %v4055
      %v4120 = vsub.f32 %v3897, %v4056
      %v4121 = vsub.f32 %v3900, %v4057
      %v4122 = vsub.f32 %v3903, %v4058
      %v4123 = vsub.f32 %v3906, %v4059
      %v4124 = vsub.f32 %v3909, %v4060
      %v4125 = vsub.f32 %v3912, %v4061
      %v4126 = vsub.f32 %v3915, %v4062
      %v4127 = vsub.f32 %v3918, %v4063
      %v4128 = vsub.f32 %v3921, %v4064
      %v4129 = vsub.f32 %v3924, %v4065
      %v4130 = vsub.f32 %v3927, %v4066
      %v4131 = vsub.f32 %v3930, %v4067
      %v4132 = vsub.f32 %v3933, %v4068
      %v4133 = vsub.f32 %v3936, %v4069
      %v4134 = vsub.f32 %v3939, %v4070
      %v4135 = vadd.f32 %v4103, 1e-05
      %v4136 = vadd.f32 %v4104, 1e-05
      %v4137 = vadd.f32 %v4105, 1e-05
      %v4138 = vadd.f32 %v4106, 1e-05
      %v4139 = vadd.f32 %v4107, 1e-05
      %v4140 = vadd.f32 %v4108, 1e-05
      %v4141 = vadd.f32 %v4109, 1e-05
      %v4142 = vadd.f32 %v4110, 1e-05
      %v4143 = vadd.f32 %v4111, 1e-05
      %v4144 = vadd.f32 %v4112, 1e-05
      %v4145 = vadd.f32 %v4113, 1e-05
      %v4146 = vadd.f32 %v4114, 1e-05
      %v4147 = vadd.f32 %v4115, 1e-05
      %v4148 = vadd.f32 %v4116, 1e-05
      %v4149 = vadd.f32 %v4117, 1e-05
      %v4150 = vadd.f32 %v4118, 1e-05
      %v4151 = vrsqrt.pop %v4135
      %v4152 = vmul.f32 %v4151, %v4135
      %v4153 = vmul.f32 %v4152, %v4151
      %v4154 = vmul.f32 0.5, %v4153
      %v4155 = vsub.f32 1.5, %v4154
      %v4156 = vmul.f32 %v4151, %v4155
      %vm4157 = vweird.f32 %v4135
      %vm4158 = vweird.f32 %v4151
      %vm4159 = vmor %vm4157, %vm4158
      %v4160 = vsel %vm4159, %v4151, %v4156
      %v4161 = vrsqrt.pop %v4136
      %v4162 = vmul.f32 %v4161, %v4136
      %v4163 = vmul.f32 %v4162, %v4161
      %v4164 = vmul.f32 0.5, %v4163
      %v4165 = vsub.f32 1.5, %v4164
      %v4166 = vmul.f32 %v4161, %v4165
      %vm4167 = vweird.f32 %v4136
      %vm4168 = vweird.f32 %v4161
      %vm4169 = vmor %vm4167, %vm4168
      %v4170 = vsel %vm4169, %v4161, %v4166
      %v4171 = vrsqrt.pop %v4137
      %v4172 = vmul.f32 %v4171, %v4137
      %v4173 = vmul.f32 %v4172, %v4171
      %v4174 = vmul.f32 0.5, %v4173
      %v4175 = vsub.f32 1.5, %v4174
      %v4176 = vmul.f32 %v4171, %v4175
      %vm4177 = vweird.f32 %v4137
      %vm4178 = vweird.f32 %v4171
      %vm4179 = vmor %vm4177, %vm4178
      %v4180 = vsel %vm4179, %v4171, %v4176
      %v4181 = vrsqrt.pop %v4138
      %v4182 = vmul.f32 %v4181, %v4138
      %v4183 = vmul.f32 %v4182, %v4181
      %v4184 = vmul.f32 0.5, %v4183
      %v4185 = vsub.f32 1.5, %v4184
      %v4186 = vmul.f32 %v4181, %v4185
      %vm4187 = vweird.f32 %v4138
      %vm4188 = vweird.f32 %v4181
      %vm4189 = vmor %vm4187, %vm4188
      %v4190 = vsel %vm4189, %v4181, %v4186
      %v4191 = vrsqrt.pop %v4139
      %v4192 = vmul.f32 %v4191, %v4139
      %v4193 = vmul.f32 %v4192, %v4191
      %v4194 = vmul.f32 0.5, %v4193
      %v4195 = vsub.f32 1.5, %v4194
      %v4196 = vmul.f32 %v4191, %v4195
      %vm4197 = vweird.f32 %v4139
      %vm4198 = vweird.f32 %v4191
      %vm4199 = vmor %vm4197, %vm4198
      %v4200 = vsel %vm4199, %v4191, %v4196
      %v4201 = vrsqrt.pop %v4140
      %v4202 = vmul.f32 %v4201, %v4140
      %v4203 = vmul.f32 %v4202, %v4201
      %v4204 = vmul.f32 0.5, %v4203
      %v4205 = vsub.f32 1.5, %v4204
      %v4206 = vmul.f32 %v4201, %v4205
      %vm4207 = vweird.f32 %v4140
      %vm4208 = vweird.f32 %v4201
      %vm4209 = vmor %vm4207, %vm4208
      %v4210 = vsel %vm4209, %v4201, %v4206
      %v4211 = vrsqrt.pop %v4141
      %v4212 = vmul.f32 %v4211, %v4141
      %v4213 = vmul.f32 %v4212, %v4211
      %v4214 = vmul.f32 0.5, %v4213
      %v4215 = vsub.f32 1.5, %v4214
      %v4216 = vmul.f32 %v4211, %v4215
      %vm4217 = vweird.f32 %v4141
      %vm4218 = vweird.f32 %v4211
      %vm4219 = vmor %vm4217, %vm4218
      %v4220 = vsel %vm4219, %v4211, %v4216
      %v4221 = vrsqrt.pop %v4142
      %v4222 = vmul.f32 %v4221, %v4142
      %v4223 = vmul.f32 %v4222, %v4221
      %v4224 = vmul.f32 0.5, %v4223
      %v4225 = vsub.f32 1.5, %v4224
      %v4226 = vmul.f32 %v4221, %v4225
      %vm4227 = vweird.f32 %v4142
      %vm4228 = vweird.f32 %v4221
      %vm4229 = vmor %vm4227, %vm4228
      %v4230 = vsel %vm4229, %v4221, %v4226
      %v4231 = vrsqrt.pop %v4143
      %v4232 = vmul.f32 %v4231, %v4143
      %v4233 = vmul.f32 %v4232, %v4231
      %v4234 = vmul.f32 0.5, %v4233
      %v4235 = vsub.f32 1.5, %v4234
      %v4236 = vmul.f32 %v4231, %v4235
      %vm4237 = vweird.f32 %v4143
      %vm4238 = vweird.f32 %v4231
      %vm4239 = vmor %vm4237, %vm4238
      %v4240 = vsel %vm4239, %v4231, %v4236
      %v4241 = vrsqrt.pop %v4144
      %v4242 = vmul.f32 %v4241, %v4144
      %v4243 = vmul.f32 %v4242, %v4241
      %v4244 = vmul.f32 0.5, %v4243
      %v4245 = vsub.f32 1.5, %v4244
      %v4246 = vmul.f32 %v4241, %v4245
      %vm4247 = vweird.f32 %v4144
      %vm4248 = vweird.f32 %v4241
      %vm4249 = vmor %vm4247, %vm4248
      %v4250 = vsel %vm4249, %v4241, %v4246
      %v4251 = vrsqrt.pop %v4145
      %v4252 = vmul.f32 %v4251, %v4145
      %v4253 = vmul.f32 %v4252, %v4251
      %v4254 = vmul.f32 0.5, %v4253
      %v4255 = vsub.f32 1.5, %v4254
      %v4256 = vmul.f32 %v4251, %v4255
      %vm4257 = vweird.f32 %v4145
      %vm4258 = vweird.f32 %v4251
      %vm4259 = vmor %vm4257, %vm4258
      %v4260 = vsel %vm4259, %v4251, %v4256
      %v4261 = vrsqrt.pop %v4146
      %v4262 = vmul.f32 %v4261, %v4146
      %v4263 = vmul.f32 %v4262, %v4261
      %v4264 = vmul.f32 0.5, %v4263
      %v4265 = vsub.f32 1.5, %v4264
      %v4266 = vmul.f32 %v4261, %v4265
      %vm4267 = vweird.f32 %v4146
      %vm4268 = vweird.f32 %v4261
      %vm4269 = vmor %vm4267, %vm4268
      %v4270 = vsel %vm4269, %v4261, %v4266
      %v4271 = vrsqrt.pop %v4147
      %v4272 = vmul.f32 %v4271, %v4147
      %v4273 = vmul.f32 %v4272, %v4271
      %v4274 = vmul.f32 0.5, %v4273
      %v4275 = vsub.f32 1.5, %v4274
      %v4276 = vmul.f32 %v4271, %v4275
      %vm4277 = vweird.f32 %v4147
      %vm4278 = vweird.f32 %v4271
      %vm4279 = vmor %vm4277, %vm4278
      %v4280 = vsel %vm4279, %v4271, %v4276
      %v4281 = vrsqrt.pop %v4148
      %v4282 = vmul.f32 %v4281, %v4148
      %v4283 = vmul.f32 %v4282, %v4281
      %v4284 = vmul.f32 0.5, %v4283
      %v4285 = vsub.f32 1.5, %v4284
      %v4286 = vmul.f32 %v4281, %v4285
      %vm4287 = vweird.f32 %v4148
      %vm4288 = vweird.f32 %v4281
      %vm4289 = vmor %vm4287, %vm4288
      %v4290 = vsel %vm4289, %v4281, %v4286
      %v4291 = vrsqrt.pop %v4149
      %v4292 = vmul.f32 %v4291, %v4149
      %v4293 = vmul.f32 %v4292, %v4291
      %v4294 = vmul.f32 0.5, %v4293
      %v4295 = vsub.f32 1.5, %v4294
      %v4296 = vmul.f32 %v4291, %v4295
      %vm4297 = vweird.f32 %v4149
      %vm4298 = vweird.f32 %v4291
      %vm4299 = vmor %vm4297, %vm4298
      %v4300 = vsel %vm4299, %v4291, %v4296
      %v4301 = vrsqrt.pop %v4150
      %v4302 = vmul.f32 %v4301, %v4150
      %v4303 = vmul.f32 %v4302, %v4301
      %v4304 = vmul.f32 0.5, %v4303
      %v4305 = vsub.f32 1.5, %v4304
      %v4306 = vmul.f32 %v4301, %v4305
      %vm4307 = vweird.f32 %v4150
      %vm4308 = vweird.f32 %v4301
      %vm4309 = vmor %vm4307, %vm4308
      %v4310 = vsel %vm4309, %v4301, %v4306
      %v4311 = vmul.f32 %v4119, %v4160
      %v4312 = vmul.f32 %v4120, %v4170
      %v4313 = vmul.f32 %v4121, %v4180
      %v4314 = vmul.f32 %v4122, %v4190
      %v4315 = vmul.f32 %v4123, %v4200
      %v4316 = vmul.f32 %v4124, %v4210
      %v4317 = vmul.f32 %v4125, %v4220
      %v4318 = vmul.f32 %v4126, %v4230
      %v4319 = vmul.f32 %v4127, %v4240
      %v4320 = vmul.f32 %v4128, %v4250
      %v4321 = vmul.f32 %v4129, %v4260
      %v4322 = vmul.f32 %v4130, %v4270
      %v4323 = vmul.f32 %v4131, %v4280
      %v4324 = vmul.f32 %v4132, %v4290
      %v4325 = vmul.f32 %v4133, %v4300
      %v4326 = vmul.f32 %v4134, %v4310
      %v4327 = vperm.slane %v3941, 0
      %v4328 = vmul.f32 %v4311, %v4327
      %v4329 = vmul.f32 %v4312, %v4327
      %v4330 = vmul.f32 %v4313, %v4327
      %v4331 = vmul.f32 %v4314, %v4327
      %v4332 = vmul.f32 %v4315, %v4327
      %v4333 = vmul.f32 %v4316, %v4327
      %v4334 = vmul.f32 %v4317, %v4327
      %v4335 = vmul.f32 %v4318, %v4327
      %v4336 = vmul.f32 %v4319, %v4327
      %v4337 = vmul.f32 %v4320, %v4327
      %v4338 = vmul.f32 %v4321, %v4327
      %v4339 = vmul.f32 %v4322, %v4327
      %v4340 = vmul.f32 %v4323, %v4327
      %v4341 = vmul.f32 %v4324, %v4327
      %v4342 = vmul.f32 %v4325, %v4327
      %v4343 = vmul.f32 %v4326, %v4327
      %v4344 = vperm.slane %v3942, 0
      %v4345 = vadd.f32 %v4328, %v4344
      %v4346 = vadd.f32 %v4329, %v4344
      %v4347 = vadd.f32 %v4330, %v4344
      %v4348 = vadd.f32 %v4331, %v4344
      %v4349 = vadd.f32 %v4332, %v4344
      %v4350 = vadd.f32 %v4333, %v4344
      %v4351 = vadd.f32 %v4334, %v4344
      %v4352 = vadd.f32 %v4335, %v4344
      %v4353 = vadd.f32 %v4336, %v4344
      %v4354 = vadd.f32 %v4337, %v4344
      %v4355 = vadd.f32 %v4338, %v4344
      %v4356 = vadd.f32 %v4339, %v4344
      %v4357 = vadd.f32 %v4340, %v4344
      %v4358 = vadd.f32 %v4341, %v4344
      %v4359 = vadd.f32 %v4342, %v4344
      %v4360 = vadd.f32 %v4343, %v4344
      %v4361 = vld [vmem:[%s2 + $0x198] sm:$0xff]
      %v4362 = vld [vmem:[%s2 + $0x1a0] sm:$0xff]
      %v4363 = vld [vmem:[%s2 + $0x1a8] sm:$0xff]
      %v4364 = vld [vmem:[%s2 + $0x1b0] sm:$0xff]
      %v4365 = vld [vmem:[%s2 + $0x1b8] sm:$0xff]
      %v4366 = vld [vmem:[%s2 + $0x1c0] sm:$0xff]
      %v4367 = vld [vmem:[%s2 + $0x1c8] sm:$0xff]
      %v4368 = vld [vmem:[%s2 + $0x1d0] sm:$0xff]
      %v4369 = vld [vmem:[%s3 + $0x15] sm:$0x1]
      %v4370 = vperm.slane %v4369, 0
      %v4372 = vsel %vm265, %v4345, 0
      %v4375 = vsel %vm265, %v4346, 0
      %v4378 = vsel %vm265, %v4347, 0
      %v4381 = vsel %vm265, %v4348, 0
      %v4384 = vsel %vm265, %v4349, 0
      %v4387 = vsel %vm265, %v4350, 0
      %v4390 = vsel %vm265, %v4351, 0
      %v4393 = vsel %vm265, %v4352, 0
      %v4396 = vsel %vm265, %v4353, 0
      %v4399 = vsel %vm265, %v4354, 0
      %v4402 = vsel %vm265, %v4355, 0
      %v4405 = vsel %vm265, %v4356, 0
      %v4408 = vsel %vm265, %v4357, 0
      %v4411 = vsel %vm265, %v4358, 0
      %v4414 = vsel %vm265, %v4359, 0
      %v4417 = vsel %vm265, %v4360, 0
      %4419 = vmatpush.msra.mxu0 0.0
      %4420 = vmatpush.msra.mxu0 0.0
      %4421 = vmatpush.msra.mxu0 0.0
      %4422 = vmatpush.msra.mxu0 0.0
      %4423 = vmatpush.msra.mxu0 0.0
      %4424 = vmatpush.msra.mxu0 0.0
      %4425 = vmatpush.msra.mxu0 0.0
      %4426 = vmatpush.msra.mxu0 0.0
      %4427 = vmatpush.msra.mxu0 %v4368
      %4428 = vmatpush.msra.mxu0 %v4367
      %4429 = vmatpush.msra.mxu0 %v4366
      %4430 = vmatpush.msra.mxu0 %v4365
      %4431 = vmatpush.msra.mxu0 %v4364
      %4432 = vmatpush.msra.mxu0 %v4363
      %4433 = vmatpush.msra.mxu0 %v4362
      %4434 = vmatpush.msra.mxu0 %v4361
      %4435 = vmatmul.f32.gmra.mxu0 %v4372
      %v4436 = vpop.f32.mrf.mxu0
      %v4437 = vadd.f32 %v4370, %v4436
      %4438 = vmatmul.f32.gmra.mxu0 %v4375
      %v4439 = vpop.f32.mrf.mxu0
      %v4440 = vadd.f32 %v4370, %v4439
      %4441 = vmatmul.f32.gmra.mxu0 %v4378
      %v4442 = vpop.f32.mrf.mxu0
      %v4443 = vadd.f32 %v4370, %v4442
      %4444 = vmatmul.f32.gmra.mxu0 %v4381
      %v4445 = vpop.f32.mrf.mxu0
      %v4446 = vadd.f32 %v4370, %v4445
      %4447 = vmatmul.f32.gmra.mxu0 %v4384
      %v4448 = vpop.f32.mrf.mxu0
      %v4449 = vadd.f32 %v4370, %v4448
      %4450 = vmatmul.f32.gmra.mxu0 %v4387
      %v4451 = vpop.f32.mrf.mxu0
      %v4452 = vadd.f32 %v4370, %v4451
      %4453 = vmatmul.f32.gmra.mxu0 %v4390
      %v4454 = vpop.f32.mrf.mxu0
      %v4455 = vadd.f32 %v4370, %v4454
      %4456 = vmatmul.f32.gmra.mxu0 %v4393
      %v4457 = vpop.f32.mrf.mxu0
      %v4458 = vadd.f32 %v4370, %v4457
      %4459 = vmatmul.f32.gmra.mxu0 %v4396
      %v4460 = vpop.f32.mrf.mxu0
      %v4461 = vadd.f32 %v4370, %v4460
      %4462 = vmatmul.f32.gmra.mxu0 %v4399
      %v4463 = vpop.f32.mrf.mxu0
      %v4464 = vadd.f32 %v4370, %v4463
      %4465 = vmatmul.f32.gmra.mxu0 %v4402
      %v4466 = vpop.f32.mrf.mxu0
      %v4467 = vadd.f32 %v4370, %v4466
      %4468 = vmatmul.f32.gmra.mxu0 %v4405
      %v4469 = vpop.f32.mrf.mxu0
      %v4470 = vadd.f32 %v4370, %v4469
      %4471 = vmatmul.f32.gmra.mxu0 %v4408
      %v4472 = vpop.f32.mrf.mxu0
      %v4473 = vadd.f32 %v4370, %v4472
      %4474 = vmatmul.f32.gmra.mxu0 %v4411
      %v4475 = vpop.f32.mrf.mxu0
      %v4476 = vadd.f32 %v4370, %v4475
      %4477 = vmatmul.f32.gmra.mxu0 %v4414
      %v4478 = vpop.f32.mrf.mxu0
      %v4479 = vadd.f32 %v4370, %v4478
      %4480 = vmatmul.f32.gmra.mxu0 %v4417
      %v4481 = vpop.f32.mrf.mxu0
      %v4482 = vadd.f32 %v4370, %v4481
      %4483 = vdwg.mxu0
      %vm4484 = vcmp.ge.f32.partialorder %v4437, 0.0
      %vm4485 = vcmp.ge.f32.partialorder %v4440, 0.0
      %vm4486 = vcmp.ge.f32.partialorder %v4443, 0.0
      %vm4487 = vcmp.ge.f32.partialorder %v4446, 0.0
      %vm4488 = vcmp.ge.f32.partialorder %v4449, 0.0
      %vm4489 = vcmp.ge.f32.partialorder %v4452, 0.0
      %vm4490 = vcmp.ge.f32.partialorder %v4455, 0.0
      %vm4491 = vcmp.ge.f32.partialorder %v4458, 0.0
      %vm4492 = vcmp.ge.f32.partialorder %v4461, 0.0
      %vm4493 = vcmp.ge.f32.partialorder %v4464, 0.0
      %vm4494 = vcmp.ge.f32.partialorder %v4467, 0.0
      %vm4495 = vcmp.ge.f32.partialorder %v4470, 0.0
      %vm4496 = vcmp.ge.f32.partialorder %v4473, 0.0
      %vm4497 = vcmp.ge.f32.partialorder %v4476, 0.0
      %vm4498 = vcmp.ge.f32.partialorder %v4479, 0.0
      %vm4499 = vcmp.ge.f32.partialorder %v4482, 0.0
      %v4500 = vmul.f32 %v4437, 0.2
      %v4501 = vmul.f32 %v4440, 0.2
      %v4502 = vmul.f32 %v4443, 0.2
      %v4503 = vmul.f32 %v4446, 0.2
      %v4504 = vmul.f32 %v4449, 0.2
      %v4505 = vmul.f32 %v4452, 0.2
      %v4506 = vmul.f32 %v4455, 0.2
      %v4507 = vmul.f32 %v4458, 0.2
      %v4508 = vmul.f32 %v4461, 0.2
      %v4509 = vmul.f32 %v4464, 0.2
      %v4510 = vmul.f32 %v4467, 0.2
      %v4511 = vmul.f32 %v4470, 0.2
      %v4512 = vmul.f32 %v4473, 0.2
      %v4513 = vmul.f32 %v4476, 0.2
      %v4514 = vmul.f32 %v4479, 0.2
      %v4515 = vmul.f32 %v4482, 0.2
      %v4516 = vsel %vm4484, %v4437, %v4500
      %v4517 = vsel %vm4485, %v4440, %v4501
      %v4518 = vsel %vm4486, %v4443, %v4502
      %v4519 = vsel %vm4487, %v4446, %v4503
      %v4520 = vsel %vm4488, %v4449, %v4504
      %v4521 = vsel %vm4489, %v4452, %v4505
      %v4522 = vsel %vm4490, %v4455, %v4506
      %v4523 = vsel %vm4491, %v4458, %v4507
      %v4524 = vsel %vm4492, %v4461, %v4508
      %v4525 = vsel %vm4493, %v4464, %v4509
      %v4526 = vsel %vm4494, %v4467, %v4510
      %v4527 = vsel %vm4495, %v4470, %v4511
      %v4528 = vsel %vm4496, %v4473, %v4512
      %v4529 = vsel %vm4497, %v4476, %v4513
      %v4530 = vsel %vm4498, %v4479, %v4514
      %v4531 = vsel %vm4499, %v4482, %v4515
      %v4532 = vld [vmem:[%s2 + $0x1d8] sm:$0xff]
      %v4533 = vld [vmem:[%s3 + $0x16] sm:$0x1]
      %v4534 = vperm.slane %v4533, 0
      %v4536 = vsel %vm1580, %v4516, 0
      %v4539 = vsel %vm1580, %v4517, 0
      %v4542 = vsel %vm1580, %v4518, 0
      %v4545 = vsel %vm1580, %v4519, 0
      %v4548 = vsel %vm1580, %v4520, 0
      %v4551 = vsel %vm1580, %v4521, 0
      %v4554 = vsel %vm1580, %v4522, 0
      %v4557 = vsel %vm1580, %v4523, 0
      %v4560 = vsel %vm1580, %v4524, 0
      %v4563 = vsel %vm1580, %v4525, 0
      %v4566 = vsel %vm1580, %v4526, 0
      %v4569 = vsel %vm1580, %v4527, 0
      %v4572 = vsel %vm1580, %v4528, 0
      %v4575 = vsel %vm1580, %v4529, 0
      %v4578 = vsel %vm1580, %v4530, 0
      %v4581 = vsel %vm1580, %v4531, 0
      %4583 = vmatpush.msra.mxu0 0.0
      %4584 = vmatpush.msra.mxu0 0.0
      %4585 = vmatpush.msra.mxu0 0.0
      %4586 = vmatpush.msra.mxu0 0.0
      %4587 = vmatpush.msra.mxu0 0.0
      %4588 = vmatpush.msra.mxu0 0.0
      %4589 = vmatpush.msra.mxu0 0.0
      %4590 = vmatpush.msra.mxu0 0.0
      %4591 = vmatpush.msra.mxu0 0.0
      %4592 = vmatpush.msra.mxu0 0.0
      %4593 = vmatpush.msra.mxu0 0.0
      %4594 = vmatpush.msra.mxu0 0.0
      %4595 = vmatpush.msra.mxu0 0.0
      %4596 = vmatpush.msra.mxu0 0.0
      %4597 = vmatpush.msra.mxu0 0.0
      %4598 = vmatpush.msra.mxu0 %v4532
      %4599 = vmatmul.f32.gmra.mxu0 %v4536
      %v4600 = vpop.f32.mrf.mxu0
      %v4601 = vadd.f32 %v4534, %v4600
      %4602 = vmatmul.f32.gmra.mxu0 %v4539
      %v4603 = vpop.f32.mrf.mxu0
      %v4604 = vadd.f32 %v4534, %v4603
      %4605 = vmatmul.f32.gmra.mxu0 %v4542
      %v4606 = vpop.f32.mrf.mxu0
      %v4607 = vadd.f32 %v4534, %v4606
      %4608 = vmatmul.f32.gmra.mxu0 %v4545
      %v4609 = vpop.f32.mrf.mxu0
      %v4610 = vadd.f32 %v4534, %v4609
      %4611 = vmatmul.f32.gmra.mxu0 %v4548
      %v4612 = vpop.f32.mrf.mxu0
      %v4613 = vadd.f32 %v4534, %v4612
      %4614 = vmatmul.f32.gmra.mxu0 %v4551
      %v4615 = vpop.f32.mrf.mxu0
      %v4616 = vadd.f32 %v4534, %v4615
      %4617 = vmatmul.f32.gmra.mxu0 %v4554
      %v4618 = vpop.f32.mrf.mxu0
      %v4619 = vadd.f32 %v4534, %v4618
      %4620 = vmatmul.f32.gmra.mxu0 %v4557
      %v4621 = vpop.f32.mrf.mxu0
      %v4622 = vadd.f32 %v4534, %v4621
      %4623 = vmatmul.f32.gmra.mxu0 %v4560
      %v4624 = vpop.f32.mrf.mxu0
      %v4625 = vadd.f32 %v4534, %v4624
      %4626 = vmatmul.f32.gmra.mxu0 %v4563
      %v4627 = vpop.f32.mrf.mxu0
      %v4628 = vadd.f32 %v4534, %v4627
      %4629 = vmatmul.f32.gmra.mxu0 %v4566
      %v4630 = vpop.f32.mrf.mxu0
      %v4631 = vadd.f32 %v4534, %v4630
      %4632 = vmatmul.f32.gmra.mxu0 %v4569
      %v4633 = vpop.f32.mrf.mxu0
      %v4634 = vadd.f32 %v4534, %v4633
      %4635 = vmatmul.f32.gmra.mxu0 %v4572
      %v4636 = vpop.f32.mrf.mxu0
      %v4637 = vadd.f32 %v4534, %v4636
      %4638 = vmatmul.f32.gmra.mxu0 %v4575
      %v4639 = vpop.f32.mrf.mxu0
      %v4640 = vadd.f32 %v4534, %v4639
      %4641 = vmatmul.f32.gmra.mxu0 %v4578
      %v4642 = vpop.f32.mrf.mxu0
      %v4643 = vadd.f32 %v4534, %v4642
      %4644 = vmatmul.f32.gmra.mxu0 %v4581
      %v4645 = vpop.f32.mrf.mxu0
      %v4646 = vadd.f32 %v4534, %v4645
      %4647 = vdwg.mxu0
      %v4648 = vsub.f32 0.0, %v4601
      %v4649 = vsub.f32 0.0, %v4604
      %v4650 = vsub.f32 0.0, %v4607
      %v4651 = vsub.f32 0.0, %v4610
      %v4652 = vsub.f32 0.0, %v4613
      %v4653 = vsub.f32 0.0, %v4616
      %v4654 = vsub.f32 0.0, %v4619
      %v4655 = vsub.f32 0.0, %v4622
      %v4656 = vsub.f32 0.0, %v4625
      %v4657 = vsub.f32 0.0, %v4628
      %v4658 = vsub.f32 0.0, %v4631
      %v4659 = vsub.f32 0.0, %v4634
      %v4660 = vsub.f32 0.0, %v4637
      %v4661 = vsub.f32 0.0, %v4640
      %v4662 = vsub.f32 0.0, %v4643
      %v4663 = vsub.f32 0.0, %v4646
      %v4664 = vmul.f32 %v4648, 1.442695
      %v4665 = vpow.pop %v4664
      %v4666 = vmul.f32 %v4649, 1.442695
      %v4667 = vpow.pop %v4666
      %v4668 = vmul.f32 %v4650, 1.442695
      %v4669 = vpow.pop %v4668
      %v4670 = vmul.f32 %v4651, 1.442695
      %v4671 = vpow.pop %v4670
      %v4672 = vmul.f32 %v4652, 1.442695
      %v4673 = vpow.pop %v4672
      %v4674 = vmul.f32 %v4653, 1.442695
      %v4675 = vpow.pop %v4674
      %v4676 = vmul.f32 %v4654, 1.442695
      %v4677 = vpow.pop %v4676
      %v4678 = vmul.f32 %v4655, 1.442695
      %v4679 = vpow.pop %v4678
      %v4680 = vmul.f32 %v4656, 1.442695
      %v4681 = vpow.pop %v4680
      %v4682 = vmul.f32 %v4657, 1.442695
      %v4683 = vpow.pop %v4682
      %v4684 = vmul.f32 %v4658, 1.442695
      %v4685 = vpow.pop %v4684
      %v4686 = vmul.f32 %v4659, 1.442695
      %v4687 = vpow.pop %v4686
      %v4688 = vmul.f32 %v4660, 1.442695
      %v4689 = vpow.pop %v4688
      %v4690 = vmul.f32 %v4661, 1.442695
      %v4691 = vpow.pop %v4690
      %v4692 = vmul.f32 %v4662, 1.442695
      %v4693 = vpow.pop %v4692
      %v4694 = vmul.f32 %v4663, 1.442695
      %v4695 = vpow.pop %v4694
      %v4696 = vadd.f32 %v4665, 1.0
      %v4697 = vadd.f32 %v4667, 1.0
      %v4698 = vadd.f32 %v4669, 1.0
      %v4699 = vadd.f32 %v4671, 1.0
      %v4700 = vadd.f32 %v4673, 1.0
      %v4701 = vadd.f32 %v4675, 1.0
      %v4702 = vadd.f32 %v4677, 1.0
      %v4703 = vadd.f32 %v4679, 1.0
      %v4704 = vadd.f32 %v4681, 1.0
      %v4705 = vadd.f32 %v4683, 1.0
      %v4706 = vadd.f32 %v4685, 1.0
      %v4707 = vadd.f32 %v4687, 1.0
      %v4708 = vadd.f32 %v4689, 1.0
      %v4709 = vadd.f32 %v4691, 1.0
      %v4710 = vadd.f32 %v4693, 1.0
      %v4711 = vadd.f32 %v4695, 1.0
      %v4712 = vrcp.pop %v4696
      %v4713 = vrcp.pop %v4697
      %v4714 = vrcp.pop %v4698
      %v4715 = vrcp.pop %v4699
      %v4716 = vrcp.pop %v4700
      %v4717 = vrcp.pop %v4701
      %v4718 = vrcp.pop %v4702
      %v4719 = vrcp.pop %v4703
      %v4720 = vrcp.pop %v4704
      %v4721 = vrcp.pop %v4705
      %v4722 = vrcp.pop %v4706
      %v4723 = vrcp.pop %v4707
      %v4724 = vrcp.pop %v4708
      %v4725 = vrcp.pop %v4709
      %v4726 = vrcp.pop %v4710
      %v4727 = vrcp.pop %v4711
      %v4728 = vmul.f32 %v4345, %v4712
      %v4729 = vmul.f32 %v4346, %v4713
      %v4730 = vmul.f32 %v4347, %v4714
      %v4731 = vmul.f32 %v4348, %v4715
      %v4732 = vmul.f32 %v4349, %v4716
      %v4733 = vmul.f32 %v4350, %v4717
      %v4734 = vmul.f32 %v4351, %v4718
      %v4735 = vmul.f32 %v4352, %v4719
      %v4736 = vmul.f32 %v4353, %v4720
      %v4737 = vmul.f32 %v4354, %v4721
      %v4738 = vmul.f32 %v4355, %v4722
      %v4739 = vmul.f32 %v4356, %v4723
      %v4740 = vmul.f32 %v4357, %v4724
      %v4741 = vmul.f32 %v4358, %v4725
      %v4742 = vmul.f32 %v4359, %v4726
      %v4743 = vmul.f32 %v4360, %v4727
      %v4744 = vld [vmem:[%s2 + $0x1e0] sm:$0xff]
      %v4745 = vld [vmem:[%s2 + $0x1e8] sm:$0xff]
      %v4746 = vld [vmem:[%s2 + $0x1f0] sm:$0xff]
      %v4747 = vld [vmem:[%s2 + $0x1f8] sm:$0xff]
      %v4748 = vld [vmem:[%s2 + $0x200] sm:$0xff]
      %v4749 = vld [vmem:[%s2 + $0x208] sm:$0xff]
      %v4750 = vld [vmem:[%s2 + $0x210] sm:$0xff]
      %v4751 = vld [vmem:[%s2 + $0x218] sm:$0xff]
      %v4752 = vld [vmem:[%s3 + $0x17] sm:$0x1]
      %v4753 = vperm.slane %v4752, 0
      %v4755 = vsel %vm265, %v4728, 0
      %v4758 = vsel %vm265, %v4729, 0
      %v4761 = vsel %vm265, %v4730, 0
      %v4764 = vsel %vm265, %v4731, 0
      %v4767 = vsel %vm265, %v4732, 0
      %v4770 = vsel %vm265, %v4733, 0
      %v4773 = vsel %vm265, %v4734, 0
      %v4776 = vsel %vm265, %v4735, 0
      %v4779 = vsel %vm265, %v4736, 0
      %v4782 = vsel %vm265, %v4737, 0
      %v4785 = vsel %vm265, %v4738, 0
      %v4788 = vsel %vm265, %v4739, 0
      %v4791 = vsel %vm265, %v4740, 0
      %v4794 = vsel %vm265, %v4741, 0
      %v4797 = vsel %vm265, %v4742, 0
      %v4800 = vsel %vm265, %v4743, 0
      %4802 = vmatpush.msra.mxu0 0.0
      %4803 = vmatpush.msra.mxu0 0.0
      %4804 = vmatpush.msra.mxu0 0.0
      %4805 = vmatpush.msra.mxu0 0.0
      %4806 = vmatpush.msra.mxu0 0.0
      %4807 = vmatpush.msra.mxu0 0.0
      %4808 = vmatpush.msra.mxu0 0.0
      %4809 = vmatpush.msra.mxu0 0.0
      %4810 = vmatpush.msra.mxu0 %v4751
      %4811 = vmatpush.msra.mxu0 %v4750
      %4812 = vmatpush.msra.mxu0 %v4749
      %4813 = vmatpush.msra.mxu0 %v4748
      %4814 = vmatpush.msra.mxu0 %v4747
      %4815 = vmatpush.msra.mxu0 %v4746
      %4816 = vmatpush.msra.mxu0 %v4745
      %4817 = vmatpush.msra.mxu0 %v4744
      %4818 = vmatmul.f32.gmra.mxu0 %v4755
      %v4819 = vpop.f32.mrf.mxu0
      %v4820 = vadd.f32 %v4753, %v4819
      %4821 = vmatmul.f32.gmra.mxu0 %v4758
      %v4822 = vpop.f32.mrf.mxu0
      %v4823 = vadd.f32 %v4753, %v4822
      %4824 = vmatmul.f32.gmra.mxu0 %v4761
      %v4825 = vpop.f32.mrf.mxu0
      %v4826 = vadd.f32 %v4753, %v4825
      %4827 = vmatmul.f32.gmra.mxu0 %v4764
      %v4828 = vpop.f32.mrf.mxu0
      %v4829 = vadd.f32 %v4753, %v4828
      %4830 = vmatmul.f32.gmra.mxu0 %v4767
      %v4831 = vpop.f32.mrf.mxu0
      %v4832 = vadd.f32 %v4753, %v4831
      %4833 = vmatmul.f32.gmra.mxu0 %v4770
      %v4834 = vpop.f32.mrf.mxu0
      %v4835 = vadd.f32 %v4753, %v4834
      %4836 = vmatmul.f32.gmra.mxu0 %v4773
      %v4837 = vpop.f32.mrf.mxu0
      %v4838 = vadd.f32 %v4753, %v4837
      %4839 = vmatmul.f32.gmra.mxu0 %v4776
      %v4840 = vpop.f32.mrf.mxu0
      %v4841 = vadd.f32 %v4753, %v4840
      %4842 = vmatmul.f32.gmra.mxu0 %v4779
      %v4843 = vpop.f32.mrf.mxu0
      %v4844 = vadd.f32 %v4753, %v4843
      %4845 = vmatmul.f32.gmra.mxu0 %v4782
      %v4846 = vpop.f32.mrf.mxu0
      %v4847 = vadd.f32 %v4753, %v4846
      %4848 = vmatmul.f32.gmra.mxu0 %v4785
      %v4849 = vpop.f32.mrf.mxu0
      %v4850 = vadd.f32 %v4753, %v4849
      %4851 = vmatmul.f32.gmra.mxu0 %v4788
      %v4852 = vpop.f32.mrf.mxu0
      %v4853 = vadd.f32 %v4753, %v4852
      %4854 = vmatmul.f32.gmra.mxu0 %v4791
      %v4855 = vpop.f32.mrf.mxu0
      %v4856 = vadd.f32 %v4753, %v4855
      %4857 = vmatmul.f32.gmra.mxu0 %v4794
      %v4858 = vpop.f32.mrf.mxu0
      %v4859 = vadd.f32 %v4753, %v4858
      %4860 = vmatmul.f32.gmra.mxu0 %v4797
      %v4861 = vpop.f32.mrf.mxu0
      %v4862 = vadd.f32 %v4753, %v4861
      %4863 = vmatmul.f32.gmra.mxu0 %v4800
      %v4864 = vpop.f32.mrf.mxu0
      %v4865 = vadd.f32 %v4753, %v4864
      %4866 = vdwg.mxu0
      %4883 = vrot.lane.b32.xlu0 %v2454, 64
      %v4884 = vpop.permute.xlu0 %4883
      %4885 = vrot.lane.b32.xlu0 %v2457, 64
      %v4886 = vpop.permute.xlu0 %4885
      %4887 = vrot.lane.b32.xlu0 %v2460, 64
      %v4888 = vpop.permute.xlu0 %4887
      %4889 = vrot.lane.b32.xlu0 %v2463, 64
      %v4890 = vpop.permute.xlu0 %4889
      %4891 = vrot.lane.b32.xlu0 %v2466, 64
      %v4892 = vpop.permute.xlu0 %4891
      %4893 = vrot.lane.b32.xlu0 %v2469, 64
      %v4894 = vpop.permute.xlu0 %4893
      %4895 = vrot.lane.b32.xlu0 %v2472, 64
      %v4896 = vpop.permute.xlu0 %4895
      %4897 = vrot.lane.b32.xlu0 %v2475, 64
      %v4898 = vpop.permute.xlu0 %4897
      %4899 = vrot.lane.b32.xlu0 %v2478, 64
      %v4900 = vpop.permute.xlu0 %4899
      %4901 = vrot.lane.b32.xlu0 %v2481, 64
      %v4902 = vpop.permute.xlu0 %4901
      %4903 = vrot.lane.b32.xlu0 %v2484, 64
      %v4904 = vpop.permute.xlu0 %4903
      %4905 = vrot.lane.b32.xlu0 %v2487, 64
      %v4906 = vpop.permute.xlu0 %4905
      %4907 = vrot.lane.b32.xlu0 %v2490, 64
      %v4908 = vpop.permute.xlu0 %4907
      %4909 = vrot.lane.b32.xlu0 %v2493, 64
      %v4910 = vpop.permute.xlu0 %4909
      %4911 = vrot.lane.b32.xlu0 %v2496, 64
      %v4912 = vpop.permute.xlu0 %4911
      %4913 = vrot.lane.b32.xlu0 %v2499, 64
      %v4914 = vpop.permute.xlu0 %4913
      %v4931 = vsel %vm265, %v4820, %v4884
      %v4932 = vsel %vm265, %v4823, %v4886
      %v4933 = vsel %vm265, %v4826, %v4888
      %v4934 = vsel %vm265, %v4829, %v4890
      %v4935 = vsel %vm265, %v4832, %v4892
      %v4936 = vsel %vm265, %v4835, %v4894
      %v4937 = vsel %vm265, %v4838, %v4896
      %v4938 = vsel %vm265, %v4841, %v4898
      %v4939 = vsel %vm265, %v4844, %v4900
      %v4940 = vsel %vm265, %v4847, %v4902
      %v4941 = vsel %vm265, %v4850, %v4904
      %v4942 = vsel %vm265, %v4853, %v4906
      %v4943 = vsel %vm265, %v4856, %v4908
      %v4944 = vsel %vm265, %v4859, %v4910
      %v4945 = vsel %vm265, %v4862, %v4912
      %v4946 = vsel %vm265, %v4865, %v4914
      %vm4947 = vcmask 654336
      %v4948 = vsel %vm4947, %v4931, %v4884
      %v4949 = vsel %vm4947, %v4932, %v4886
      %v4950 = vsel %vm4947, %v4933, %v4888
      %v4951 = vsel %vm4947, %v4934, %v4890
      %v4952 = vsel %vm4947, %v4935, %v4892
      %v4953 = vsel %vm4947, %v4936, %v4894
      %v4954 = vsel %vm4947, %v4937, %v4896
      %v4955 = vsel %vm4947, %v4938, %v4898
      %v4956 = vsel %vm4947, %v4939, %v4900
      %v4957 = vsel %vm4947, %v4940, %v4902
      %v4958 = vsel %vm4947, %v4941, %v4904
      %v4959 = vsel %vm4947, %v4942, %v4906
      %v4960 = vsel %vm4947, %v4943, %v4908
      %v4961 = vsel %vm4947, %v4944, %v4910
      %v4962 = vsel %vm4947, %v4945, %v4912
      %v4963 = vsel %vm4947, %v4946, %v4914
      %vm4964 = vcmask 785408
      %v4965 = vsel %vm4964, %v4948, 0.0
      %v4966 = vsel %vm4964, %v4949, 0.0
      %v4967 = vsel %vm4964, %v4950, 0.0
      %v4968 = vsel %vm4964, %v4951, 0.0
      %v4969 = vsel %vm4964, %v4952, 0.0
      %v4970 = vsel %vm4964, %v4953, 0.0
      %v4971 = vsel %vm4964, %v4954, 0.0
      %v4972 = vsel %vm4964, %v4955, 0.0
      %v4973 = vsel %vm4964, %v4956, 0.0
      %v4974 = vsel %vm4964, %v4957, 0.0
      %v4975 = vsel %vm4964, %v4958, 0.0
      %v4976 = vsel %vm4964, %v4959, 0.0
      %v4977 = vsel %vm4964, %v4960, 0.0
      %v4978 = vsel %vm4964, %v4961, 0.0
      %v4979 = vsel %vm4964, %v4962, 0.0
      %v4980 = vsel %vm4964, %v4963, 0.0
      %4981 = vst [vmem:[%s221] sm:$0xff] %v4965
      %4982 = vst [vmem:[%s221 + $0x8] sm:$0xff] %v4966
      %4983 = vst [vmem:[%s221 + $0x10] sm:$0xff] %v4967
      %4984 = vst [vmem:[%s221 + $0x18] sm:$0xff] %v4968
      %4985 = vst [vmem:[%s221 + $0x20] sm:$0xff] %v4969
      %4986 = vst [vmem:[%s221 + $0x28] sm:$0xff] %v4970
      %4987 = vst [vmem:[%s221 + $0x30] sm:$0xff] %v4971
      %4988 = vst [vmem:[%s221 + $0x38] sm:$0xff] %v4972
      %4989 = vst [vmem:[%s221 + $0x40] sm:$0xff] %v4973
      %4990 = vst [vmem:[%s221 + $0x48] sm:$0xff] %v4974
      %4991 = vst [vmem:[%s221 + $0x50] sm:$0xff] %v4975
      %4992 = vst [vmem:[%s221 + $0x58] sm:$0xff] %v4976
      %4993 = vst [vmem:[%s221 + $0x60] sm:$0xff] %v4977
      %4994 = vst [vmem:[%s221 + $0x68] sm:$0xff] %v4978
      %4995 = vst [vmem:[%s221 + $0x70] sm:$0xff] %v4979
      %4996 = vst [vmem:[%s221 + $0x78] sm:$0xff] %v4980
      %s4997 = smul.u32 16, %s15
      %p4998 = scmp.lt.s32.totalorder %s4997, 31
      %s4999 = scalar_select %p4998, %s4997, 31
      %s5000 = smul.addr %s4999, 8
      %s5001 = scalar_lea.vmem %s4, %s5000
      // Predicated region
      $region37: #{vae_forward.1} parent=35 // pred_check
        %p5002 = pneg %p127
      $region38: #{vae_forward.1} parent=35 // pred_check_branch
        %5004 = sbr.rel (%p5002) target = $region40
      $region39: #{vae_forward.1} parent=35 // pred_region
        %s5005 = smul.u32 16, %s15
      $region40: #{vae_forward.1} parent=35 // pred_fallthru
        _
    $region36: #{vae_forward.1} parent=5 // pred_fallthru
      _
    %p5006 = scmp.le.s32.totalorder 2, %s10
    // Predicated region
    $region41: #{vae_forward.1} parent=5 // pred_check
      %p5007 = pneg %p5006
    $region42: #{vae_forward.1} parent=5 // pred_check_branch
      %5009 = sbr.rel (%p5007) target = $region44
    $region43: #{vae_forward.1} parent=5 // pred_region
      %s5010 = ssub.s32 %s10, 2
      // Predicated region
      $region45: #{vae_forward.1} parent=43 // pred_check
        %p5011 = pneg %p133
      $region46: #{vae_forward.1} parent=43 // pred_check_branch
        %5013 = sbr.rel (%p5011) target = $region48
      $region47: #{vae_forward.1} parent=43 // pred_region
        %s5014 = smul.u32 16, %s16
        %p5015 = scmp.lt.s32.totalorder %s5014, 31
        %s5016 = scalar_select %p5015, %s5014, 31
        %s5017 = smul.addr %s5016, 8
        %s5018 = scalar_lea.vmem %s4, %s5017
      $region48: #{vae_forward.1} parent=43 // pred_fallthru
        _
    $region44: #{vae_forward.1} parent=5 // pred_fallthru
      _
  $region6: #{vae_forward.1} parent=0 // loop_footer
    %s14 = sadd.s32 1, %s10
  $region7: #{vae_forward.1} parent=0 // loop_footer_branch
    %9 = sbr.rel target = $region3
  $region8: #{vae_forward.1} parent=0 // loop_exit
    _

</llo_original>
